<compile_context>
chip_gen: v5e
topology: v5e:2x2
jax: 0.10.0
libtpu: 0.0.40
codegen_flags: <defaults>
</compile_context>

<pallas_src>
import functools

import jax
import jax.numpy as jnp
from jax.experimental import pallas as pl
from jax.experimental.pallas import tpu as pltpu


# ---------------------------------------------------------------------------
# Chunk / VMEM sizing helpers (generation-aware)
# ---------------------------------------------------------------------------
def _round_up(x, m):
    return ((x + m - 1) // m) * m


def _vmem_capacity_bytes():
    cap = 64 * 1024 * 1024          # conservative default (v7x per-core VMEM)
    try:
        info = pltpu.get_tpu_info()
        cap = int(getattr(info, "vmem_capacity_bytes", cap)) or cap
    except Exception:
        pass
    return cap


def _vmem_bytes_estimate(TC, B, sd, H):
    """Rough per-grid-step VMEM working set in bytes (f32, double-buffered)."""
    f4 = 4
    x_chunks = 2 * TC * B * sd * f4 * 2          # fwd+bwd source chunks
    out_chunks = 2 * TC * B * H * f4 * 2         # fwd+bwd output chunks
    gates = 2 * TC * B * 4 * H * f4              # in-kernel gate pre-activations
    weights = (2 * sd * 4 * H + 2 * H * 4 * H) * f4 * 2
    misc = (2 * TC * B + 12 * B * H) * f4
    return x_chunks + out_chunks + gates + weights + misc


def _pick_chunk(T, B, sd_max, H, vmem_cap):
    budget = vmem_cap // 2
    t_cap = _round_up(max(T, 1), 8)              # don't pad time past need
    for tc in (64, 32, 16, 8):                   # TC multiple of 8 -> aligned blocks
        if tc <= t_cap and _vmem_bytes_estimate(tc, B, sd_max, H) <= budget:
            return tc
    return 8


# ---------------------------------------------------------------------------
# Fused bidirectional LSTM layer kernel
#   grid = (NC,)  time chunks (sequential / "arbitrary")
#   per step: project fwd chunk c and bwd chunk NC-1-c, then walk both
#   recurrences with register-carried state and static indices.
# ---------------------------------------------------------------------------
def make_layer_kernel(S, TC, B, H, NC):
    G = 4 * H

    def kernel(*refs):
        xf = refs[0:S]                       # fwd sources, chunk c
        xb = refs[S:2 * S]                   # bwd sources, chunk NC-1-c
        (wf_ref, wb_ref, whh_ref, b_ref, mf_ref, mb_ref,
         h0_ref, c0_ref) = refs[2 * S:2 * S + 8]
        outf_ref, outb_ref, hfin_ref = refs[2 * S + 8:2 * S + 11]
        hf_scr, cf_scr, hb_scr, cb_scr = refs[2 * S + 11:2 * S + 15]

        c = pl.program_id(0)

        @pl.when(c == 0)
        def _init():
            hf_scr[...] = h0_ref[0]
            cf_scr[...] = c0_ref[0]
            hb_scr[...] = h0_ref[1]
            cb_scr[...] = c0_ref[1]

        # ---- hoisted per-chunk input projection (off the serial path) ----
        gf = jnp.dot(xf[0][...], wf_ref[0], preferred_element_type=jnp.float32)
        gb = jnp.dot(xb[0][...], wb_ref[0], preferred_element_type=jnp.float32)
        for s in range(1, S):
            gf = gf + jnp.dot(xf[s][...], wf_ref[s],
                              preferred_element_type=jnp.float32)
            gb = gb + jnp.dot(xb[s][...], wb_ref[s],
                              preferred_element_type=jnp.float32)
        gf = gf + b_ref[0]                   # (TC*B, 4H) + (1, 4H)
        gb = gb + b_ref[1]

        whh_f = whh_ref[0]                   # (H, 4H), hoisted
        whh_b = whh_ref[1]
        mf = mf_ref[...]                     # (TC*B, 1) live mask, precomputed
        mb = mb_ref[...]

        # state carried in registers inside the chunk
        hf = hf_scr[...]
        cf = cf_scr[...]
        hb = hb_scr[...]
        cb = cb_scr[...]

        for t in range(TC):                  # static unroll; all indices static
            tb = TC - 1 - t
            # ---------------- forward chain ----------------
            gate_f = gf[t * B:(t + 1) * B, :] + jnp.dot(
                hf, whh_f, preferred_element_type=jnp.float32)
            sg_f = jax.nn.sigmoid(gate_f[:, :3 * H])     # [i, f, o] in one pass
            tg_f = jnp.tanh(gate_f[:, 3 * H:])           # g
            cf_new = sg_f[:, H:2 * H] * cf + sg_f[:, :H] * tg_f
            hf_new = sg_f[:, 2 * H:3 * H] * jnp.tanh(cf_new)
            m_f = mf[t * B:(t + 1) * B, :]
            hf = hf + m_f * (hf_new - hf)                # freeze dead rows
            cf = cf + m_f * (cf_new - cf)
            outf_ref[pl.ds(t * B, B), :] = m_f * hf_new  # padded rows -> 0
            # ---------------- backward chain (independent -> interleaves) ----
            gate_b = gb[tb * B:(tb + 1) * B, :] + jnp.dot(
                hb, whh_b, preferred_element_type=jnp.float32)
            sg_b = jax.nn.sigmoid(gate_b[:, :3 * H])
            tg_b = jnp.tanh(gate_b[:, 3 * H:])
            cb_new = sg_b[:, H:2 * H] * cb + sg_b[:, :H] * tg_b
            hb_new = sg_b[:, 2 * H:3 * H] * jnp.tanh(cb_new)
            m_b = mb[tb * B:(tb + 1) * B, :]
            hb = hb + m_b * (hb_new - hb)
            cb = cb + m_b * (cb_new - cb)
            outb_ref[pl.ds(tb * B, B), :] = m_b * hb_new

        # state back to scratch only at the chunk boundary
        hf_scr[...] = hf
        cf_scr[...] = cf
        hb_scr[...] = hb
        cb_scr[...] = cb
        # constant-index output block: last grid step's write is what lands in HBM
        hfin_ref[0] = hf
        hfin_ref[1] = hb

    return kernel


def bilstm_layer(srcs, lp, mask_flat, h0_l, c0_l, T_pad, B, H, TC, vmem_limit):
    S = len(srcs)
    D = srcs[0].shape[-1]
    G = 4 * H
    NC = T_pad // TC
    kernel = make_layer_kernel(S, TC, B, H, NC)

    src_fwd_specs = [pl.BlockSpec((TC * B, D), lambda c: (c, 0))
                     for _ in range(S)]
    src_bwd_specs = [pl.BlockSpec((TC * B, D), lambda c: (NC - 1 - c, 0))
                     for _ in range(S)]
    in_specs = src_fwd_specs + src_bwd_specs + [
        pl.BlockSpec((S, D, G), lambda c: (0, 0, 0)),        # W_ih^T (fwd dest)
        pl.BlockSpec((S, D, G), lambda c: (0, 0, 0)),        # W_ih^T (bwd dest)
        pl.BlockSpec((2, H, G), lambda c: (0, 0, 0)),        # W_hh^T
        pl.BlockSpec((2, 1, G), lambda c: (0, 0, 0)),        # bias (b_ih + b_hh)
        pl.BlockSpec((TC * B, 1), lambda c: (c, 0)),         # live mask, fwd chunk
        pl.BlockSpec((TC * B, 1), lambda c: (NC - 1 - c, 0)),  # live mask, bwd chunk
        pl.BlockSpec((2, B, H), lambda c: (0, 0, 0)),        # h0
        pl.BlockSpec((2, B, H), lambda c: (0, 0, 0)),        # c0
    ]
    out_specs = (
        pl.BlockSpec((TC * B, H), lambda c: (c, 0)),           # fwd output slab
        pl.BlockSpec((TC * B, H), lambda c: (NC - 1 - c, 0)),  # bwd output slab
        pl.BlockSpec((2, B, H), lambda c: (0, 0, 0)),          # final hidden
    )

    outf, outb, hfin = pl.pallas_call(
        kernel,
        out_shape=(jax.ShapeDtypeStruct((T_pad * B, H), jnp.float32),
                   jax.ShapeDtypeStruct((T_pad * B, H), jnp.float32),
                   jax.ShapeDtypeStruct((2, B, H), jnp.float32)),
        grid=(NC,),
        in_specs=in_specs,
        out_specs=out_specs,
        scratch_shapes=[pltpu.VMEM((B, H), jnp.float32)] * 4,
        compiler_params=pltpu.CompilerParams(
            dimension_semantics=("arbitrary",),
            vmem_limit_bytes=vmem_limit),
    )(*(list(srcs) + list(srcs) + [lp["wihT_f"], lp["wihT_b"], lp["whhT"],
                                   lp["b"], mask_flat, mask_flat, h0_l, c0_l]))
    return outf, outb, hfin


# ---------------------------------------------------------------------------
# Full model forward (hot path in Pallas, tiny glue in XLA)
# ---------------------------------------------------------------------------
def bilstm_bert_forward(encoded_sentence, sentences_length, params, h0, c0):
    """
    encoded_sentence: (B, T, E) float32, batch_first
    sentences_length: (B,) int, descending (pack_padded_sequence contract)
    Returns (log_probs (B, label_size), X (B, 2*H)).
    """
    B, T, E = encoded_sentence.shape
    H = h0.shape[-1]

    vmem_cap = _vmem_capacity_bytes()
    vmem_limit = min(vmem_cap * 3 // 4, 96 * 1024 * 1024)
    sd_max = max(E, 2 * H)
    TC = _pick_chunk(T, B, sd_max, H, vmem_cap)
    NC = _round_up(T, TC) // TC
    T_pad = NC * TC

    # time-major, padded to a whole number of chunks, flattened to (T_pad*B, E)
    x = jnp.transpose(encoded_sentence, (1, 0, 2))
    if T_pad > T:
        x = jnp.concatenate(
            [x, jnp.zeros((T_pad - T, B, E), x.dtype)], axis=0)
    srcs = [x.reshape(T_pad * B, E)]

    # live mask hoisted fully out of the kernels; shared by all layers
    t_ids = jnp.arange(T_pad, dtype=jnp.int32)[:, None]
    mask_flat = (t_ids < sentences_length.astype(jnp.int32)[None, :]
                 ).astype(jnp.float32).reshape(T_pad * B, 1)

    hfin = None
    for l, lp in enumerate(params["layers"]):
        outf, outb, hfin = bilstm_layer(
            srcs, lp, mask_flat, h0[2 * l:2 * l + 2], c0[2 * l:2 * l + 2],
            T_pad, B, H, TC, vmem_limit)
        srcs = [outf, outb]          # next layer consumes fwd/bwd slabs directly
        # TODO(synk): nn.LSTM inter-layer dropout is train-mode only; eval
        # (no-dropout) semantics implemented here.

    # x1 = fwd output at t=len-1 (== final fwd hidden), x2 = bwd output at t=0
    x_feat = jnp.concatenate([hfin[0], hfin[1]], axis=1)        # (B, 2H)

    # Tiny (B,2H)x(2H,L) head + log_softmax left to XLA (a dedicated
    # pallas_call here is pure launch overhead with L=5 lanes).
    logits = x_feat @ params["w_labT"] + params["b_lab"]
    return jax.nn.log_softmax(logits, axis=-1), x_feat


# ---------------------------------------------------------------------------
# Parameters: raw PyTorch layout + packed kernel layout ([i,f,o,g] columns)
# ---------------------------------------------------------------------------
def init_params(key, embedding_dim, hidden_dim, label_size, num_layers):
    H = hidden_dim
    layers = []
    for l in range(num_layers):
        d_in = embedding_dim if l == 0 else 2 * H
        dirs = []
        for _d in range(2):                   # 0 = forward, 1 = backward
            key, k1, k2, k3, k4 = jax.random.split(key, 5)
            scale = 1.0 / jnp.sqrt(H)
            w_ih = jax.random.uniform(k1, (4 * H, d_in), jnp.float32, -scale, scale)
            w_hh = jax.random.uniform(k2, (4 * H, H), jnp.float32, -scale, scale)
            b_ih = jax.random.uniform(k3, (4 * H,), jnp.float32, -scale, scale)
            b_hh = jax.random.uniform(k4, (4 * H,), jnp.float32, -scale, scale)
            dirs.append({"w_ih": w_ih, "w_hh": w_hh, "b": b_ih + b_hh})
        layers.append(dirs)
    key, k1, k2 = jax.random.split(key, 3)
    scale = 1.0 / jnp.sqrt(2 * H)
    w_lab = jax.random.uniform(k1, (label_size, 2 * H), jnp.float32, -scale, scale)
    b_lab = jax.random.uniform(k2, (label_size,), jnp.float32, -scale, scale)
    return {"layers": layers, "w_lab": w_lab, "b_lab": b_lab}, key


def _reorder_ifog(w):
    """Reorder the gate (leading, 4H) axis from PyTorch [i,f,g,o] to [i,f,o,g]."""
    H = w.shape[0] // 4
    return jnp.concatenate([w[:2 * H], w[3 * H:], w[2 * H:3 * H]], axis=0)


def pack_params(raw, embedding_dim, hidden_dim):
    H = hidden_dim
    packed = []
    for l, dirs in enumerate(raw["layers"]):
        d_in = embedding_dim if l == 0 else 2 * H
        S = 1 if l == 0 else 2                # split input dim by source direction
        Ds = d_in // S
        wihT_f = _reorder_ifog(dirs[0]["w_ih"]).T.reshape(S, Ds, 4 * H)
        wihT_b = _reorder_ifog(dirs[1]["w_ih"]).T.reshape(S, Ds, 4 * H)
        whhT = jnp.stack([_reorder_ifog(dirs[0]["w_hh"]).T,
                          _reorder_ifog(dirs[1]["w_hh"]).T], axis=0)    # (2,H,4H)
        b = jnp.stack([_reorder_ifog(dirs[0]["b"]),
                       _reorder_ifog(dirs[1]["b"])], axis=0).reshape(2, 1, 4 * H)
        packed.append({"wihT_f": wihT_f, "wihT_b": wihT_b, "whhT": whhT, "b": b})
    return {"layers": packed, "w_labT": raw["w_lab"].T, "b_lab": raw["b_lab"]}


# ---------------------------------------------------------------------------
# Pure-JAX reference (PyTorch gate order, naive loops) for correctness check
# ---------------------------------------------------------------------------
def reference_forward(encoded, lengths, raw, h0, c0):
    B, T, _ = encoded.shape
    H = h0.shape[-1]
    x = jnp.transpose(encoded, (1, 0, 2))         # (T, B, E)
    feats = None
    for l, dirs in enumerate(raw["layers"]):
        outs, hfins = [], []
        for d in range(2):
            w_ih, w_hh, b = dirs[d]["w_ih"], dirs[d]["w_hh"], dirs[d]["b"]
            h, c = h0[2 * l + d], c0[2 * l + d]
            ts = range(T) if d == 0 else range(T - 1, -1, -1)
            out = [None] * T
            for t in ts:
                g = x[t] @ w_ih.T + h @ w_hh.T + b
                i_g = jax.nn.sigmoid(g[:, :H])
                f_g = jax.nn.sigmoid(g[:, H:2 * H])
                g_g = jnp.tanh(g[:, 2 * H:3 * H])
                o_g = jax.nn.sigmoid(g[:, 3 * H:])
                c_new = f_g * c + i_g * g_g
                h_new = o_g * jnp.tanh(c_new)
                live = (t < lengths)[:, None]
                h = jnp.where(live, h_new, h)
                c = jnp.where(live, c_new, c)
                out[t] = jnp.where(live, h_new, 0.0)
            outs.append(jnp.stack(out))
            hfins.append(h)
        x = jnp.concatenate(outs, axis=-1)
        feats = jnp.concatenate(hfins, axis=1)
    logits = feats @ raw["w_lab"].T + raw["b_lab"]
    return jax.nn.log_softmax(logits, axis=-1), feats


if __name__ == "__main__":
    embedding_dim = 16
    hidden_dim = 32
    label_size = 5
    batch_size = 2
    num_layers = 2
    max_len = 8

    key = jax.random.PRNGKey(0)
    raw, key = init_params(key, embedding_dim, hidden_dim, label_size, num_layers)
    params = pack_params(raw, embedding_dim, hidden_dim)

    key, kx, kh, kc = jax.random.split(key, 4)
    encoded_sentence = jax.random.normal(
        kx, (batch_size, max_len, embedding_dim), jnp.float32)
    # sorted descending, first == max_len (pack_padded_sequence contract)
    sentences_length = jnp.array([8, 5], dtype=jnp.int32)

    # init_hidden(): torch.randn(2*num_layers, batch, hidden) -> deterministic
    h0 = jax.random.normal(kh, (2 * num_layers, batch_size, hidden_dim), jnp.float32)
    c0 = jax.random.normal(kc, (2 * num_layers, batch_size, hidden_dim), jnp.float32)

    fwd = jax.jit(functools.partial(bilstm_bert_forward, params=params,
                                    h0=h0, c0=c0))
    log_probs, x_feat = fwd(encoded_sentence, sentences_length)
    jax.block_until_ready((log_probs, x_feat))

    assert log_probs.shape == (batch_size, label_size)
    assert x_feat.shape == (batch_size, 2 * hidden_dim)
    assert bool(jnp.all(jnp.isfinite(log_probs)))

    # correctness check against the pure-JAX reference (f32 everywhere)
    ref_lp, ref_feat = reference_forward(encoded_sentence, sentences_length,
                                         raw, h0, c0)
    assert bool(jnp.allclose(x_feat, ref_feat, atol=1e-3, rtol=1e-3))
    assert bool(jnp.allclose(log_probs, ref_lp, atol=1e-3, rtol=1e-3))

    print("KERNEL_OK")
</pallas_src>

<mosaic_0001>
module attributes {stable_mosaic.version = 11 : i64} {
  func.func @kernel(%arg0: i32, %arg1: memref<16x16xf32, #tpu.memory_space<vmem>>, %arg2: memref<16x16xf32, #tpu.memory_space<vmem>>, %arg3: memref<1x16x128xf32, #tpu.memory_space<vmem>>, %arg4: memref<1x16x128xf32, #tpu.memory_space<vmem>>, %arg5: memref<2x32x128xf32, #tpu.memory_space<vmem>>, %arg6: memref<2x1x128xf32, #tpu.memory_space<vmem>>, %arg7: memref<16x1xf32, #tpu.memory_space<vmem>>, %arg8: memref<16x1xf32, #tpu.memory_space<vmem>>, %arg9: memref<2x2x32xf32, #tpu.memory_space<vmem>>, %arg10: memref<2x2x32xf32, #tpu.memory_space<vmem>>, %arg11: memref<16x32xf32, #tpu.memory_space<vmem>>, %arg12: memref<16x32xf32, #tpu.memory_space<vmem>>, %arg13: memref<2x2x32xf32, #tpu.memory_space<vmem>>, %arg14: memref<2x32xf32, #tpu.memory_space<vmem>>, %arg15: memref<2x32xf32, #tpu.memory_space<vmem>>, %arg16: memref<2x32xf32, #tpu.memory_space<vmem>>, %arg17: memref<2x32xf32, #tpu.memory_space<vmem>>) attributes {dimension_semantics = [#tpu.dimension_semantics<arbitrary>], iteration_bounds = array<i64: 1>, scalar_prefetch = 0 : i64, scratch_operands = 4 : i64, tpu.core_type = #tpu.core_type<tc>, window_params = [{transform_indices = @transform_0, window_bounds = array<i64: 16, 16>}, {transform_indices = @transform_1, window_bounds = array<i64: 16, 16>}, {pipeline_mode = #tpu.pipeline_mode<synchronous>, transform_indices = @transform_2, window_bounds = array<i64: 1, 16, 128>}, {pipeline_mode = #tpu.pipeline_mode<synchronous>, transform_indices = @transform_3, window_bounds = array<i64: 1, 16, 128>}, {pipeline_mode = #tpu.pipeline_mode<synchronous>, transform_indices = @transform_4, window_bounds = array<i64: 2, 32, 128>}, {pipeline_mode = #tpu.pipeline_mode<synchronous>, transform_indices = @transform_5, window_bounds = array<i64: 2, 1, 128>}, {transform_indices = @transform_6, window_bounds = array<i64: 16, 1>}, {transform_indices = @transform_7, window_bounds = array<i64: 16, 1>}, {pipeline_mode = #tpu.pipeline_mode<synchronous>, transform_indices = @transform_8, window_bounds = array<i64: 2, 2, 32>}, {pipeline_mode = #tpu.pipeline_mode<synchronous>, transform_indices = @transform_9, window_bounds = array<i64: 2, 2, 32>}, {transform_indices = @transform_10, window_bounds = array<i64: 16, 32>}, {transform_indices = @transform_11, window_bounds = array<i64: 16, 32>}, {pipeline_mode = #tpu.pipeline_mode<synchronous>, transform_indices = @transform_12, window_bounds = array<i64: 2, 2, 32>}]} {
    %c0_i32 = arith.constant 0 : i32
    %0 = arith.cmpi eq, %arg0, %c0_i32 : i32
    %1 = arith.extui %0 : i1 to i32
    %c0_i32_0 = arith.constant 0 : i32
    %2 = arith.cmpi ne, %1, %c0_i32_0 : i32
    scf.if %2 {
      %c0_105 = arith.constant 0 : index
      %c0_106 = arith.constant 0 : index
      %c0_107 = arith.constant 0 : index
      %535 = vector.load %arg9[%c0_105, %c0_106, %c0_107] : memref<2x2x32xf32, #tpu.memory_space<vmem>>, vector<1x2x32xf32>
      %536 = vector.shape_cast %535 : vector<1x2x32xf32> to vector<2x32xf32>
      %c0_108 = arith.constant 0 : index
      %c0_109 = arith.constant 0 : index
      %537 = vector.load %arg14[%c0_108, %c0_109] : memref<2x32xf32, #tpu.memory_space<vmem>>, vector<2x32xf32>
      tpu.vector_store %arg14[%c0_108, %c0_109], %536 {strides = array<i32>} : memref<2x32xf32, #tpu.memory_space<vmem>>, vector<2x32xf32>,
      %c0_110 = arith.constant 0 : index
      %c0_111 = arith.constant 0 : index
      %c0_112 = arith.constant 0 : index
      %538 = vector.load %arg10[%c0_110, %c0_111, %c0_112] : memref<2x2x32xf32, #tpu.memory_space<vmem>>, vector<1x2x32xf32>
      %539 = vector.shape_cast %538 : vector<1x2x32xf32> to vector<2x32xf32>
      %c0_113 = arith.constant 0 : index
      %c0_114 = arith.constant 0 : index
      %540 = vector.load %arg15[%c0_113, %c0_114] : memref<2x32xf32, #tpu.memory_space<vmem>>, vector<2x32xf32>
      tpu.vector_store %arg15[%c0_113, %c0_114], %539 {strides = array<i32>} : memref<2x32xf32, #tpu.memory_space<vmem>>, vector<2x32xf32>,
      %c1_115 = arith.constant 1 : index
      %c0_116 = arith.constant 0 : index
      %c0_117 = arith.constant 0 : index
      %541 = vector.load %arg9[%c1_115, %c0_116, %c0_117] : memref<2x2x32xf32, #tpu.memory_space<vmem>>, vector<1x2x32xf32>
      %542 = vector.shape_cast %541 : vector<1x2x32xf32> to vector<2x32xf32>
      %c0_118 = arith.constant 0 : index
      %c0_119 = arith.constant 0 : index
      %543 = vector.load %arg16[%c0_118, %c0_119] : memref<2x32xf32, #tpu.memory_space<vmem>>, vector<2x32xf32>
      tpu.vector_store %arg16[%c0_118, %c0_119], %542 {strides = array<i32>} : memref<2x32xf32, #tpu.memory_space<vmem>>, vector<2x32xf32>,
      %c1_120 = arith.constant 1 : index
      %c0_121 = arith.constant 0 : index
      %c0_122 = arith.constant 0 : index
      %544 = vector.load %arg10[%c1_120, %c0_121, %c0_122] : memref<2x2x32xf32, #tpu.memory_space<vmem>>, vector<1x2x32xf32>
      %545 = vector.shape_cast %544 : vector<1x2x32xf32> to vector<2x32xf32>
      %c0_123 = arith.constant 0 : index
      %c0_124 = arith.constant 0 : index
      %546 = vector.load %arg17[%c0_123, %c0_124] : memref<2x32xf32, #tpu.memory_space<vmem>>, vector<2x32xf32>
      tpu.vector_store %arg17[%c0_123, %c0_124], %545 {strides = array<i32>} : memref<2x32xf32, #tpu.memory_space<vmem>>, vector<2x32xf32>,
    } else {
    }
    %c0 = arith.constant 0 : index
    %c0_1 = arith.constant 0 : index
    %3 = vector.load %arg1[%c0, %c0_1] : memref<16x16xf32, #tpu.memory_space<vmem>>, vector<16x16xf32>
    %c0_2 = arith.constant 0 : index
    %c0_3 = arith.constant 0 : index
    %c0_4 = arith.constant 0 : index
    %4 = vector.load %arg3[%c0_2, %c0_3, %c0_4] : memref<1x16x128xf32, #tpu.memory_space<vmem>>, vector<1x16x128xf32>
    %5 = vector.shape_cast %4 : vector<1x16x128xf32> to vector<16x128xf32>
    %cst = arith.constant dense<0.000000e+00> : vector<16x128xf32>
    %6 = tpu.matmul %3, %5, %cst {dimension_numbers = #tpu.dot_dimension_numbers<[1], [0], [0], [1], [0, 0, 1, 1], [], []>} : vector<16x16xf32>, vector<16x128xf32>, vector<16x128xf32> -> vector<16x128xf32>
    %c0_5 = arith.constant 0 : index
    %c0_6 = arith.constant 0 : index
    %7 = vector.load %arg2[%c0_5, %c0_6] : memref<16x16xf32, #tpu.memory_space<vmem>>, vector<16x16xf32>
    %c0_7 = arith.constant 0 : index
    %c0_8 = arith.constant 0 : index
    %c0_9 = arith.constant 0 : index
    %8 = vector.load %arg4[%c0_7, %c0_8, %c0_9] : memref<1x16x128xf32, #tpu.memory_space<vmem>>, vector<1x16x128xf32>
    %9 = vector.shape_cast %8 : vector<1x16x128xf32> to vector<16x128xf32>
    %cst_10 = arith.constant dense<0.000000e+00> : vector<16x128xf32>
    %10 = tpu.matmul %7, %9, %cst_10 {dimension_numbers = #tpu.dot_dimension_numbers<[1], [0], [0], [1], [0, 0, 1, 1], [], []>} : vector<16x16xf32>, vector<16x128xf32>, vector<16x128xf32> -> vector<16x128xf32>
    %c0_11 = arith.constant 0 : index
    %c0_12 = arith.constant 0 : index
    %c0_13 = arith.constant 0 : index
    %11 = vector.load %arg6[%c0_11, %c0_12, %c0_13] : memref<2x1x128xf32, #tpu.memory_space<vmem>>, vector<1x1x128xf32>
    %12 = vector.shape_cast %11 : vector<1x1x128xf32> to vector<1x128xf32>
    %13 = vector.broadcast %12 : vector<1x128xf32> to vector<16x128xf32>
    %14 = arith.addf %6, %13 : vector<16x128xf32>
    %c1 = arith.constant 1 : index
    %c0_14 = arith.constant 0 : index
    %c0_15 = arith.constant 0 : index
    %15 = vector.load %arg6[%c1, %c0_14, %c0_15] : memref<2x1x128xf32, #tpu.memory_space<vmem>>, vector<1x1x128xf32>
    %16 = vector.shape_cast %15 : vector<1x1x128xf32> to vector<1x128xf32>
    %17 = vector.broadcast %16 : vector<1x128xf32> to vector<16x128xf32>
    %18 = arith.addf %10, %17 : vector<16x128xf32>
    %c0_16 = arith.constant 0 : index
    %c0_17 = arith.constant 0 : index
    %c0_18 = arith.constant 0 : index
    %19 = vector.load %arg5[%c0_16, %c0_17, %c0_18] : memref<2x32x128xf32, #tpu.memory_space<vmem>>, vector<1x32x128xf32>
    %20 = vector.shape_cast %19 : vector<1x32x128xf32> to vector<32x128xf32>
    %c1_19 = arith.constant 1 : index
    %c0_20 = arith.constant 0 : index
    %c0_21 = arith.constant 0 : index
    %21 = vector.load %arg5[%c1_19, %c0_20, %c0_21] : memref<2x32x128xf32, #tpu.memory_space<vmem>>, vector<1x32x128xf32>
    %22 = vector.shape_cast %21 : vector<1x32x128xf32> to vector<32x128xf32>
    %c0_22 = arith.constant 0 : index
    %c0_23 = arith.constant 0 : index
    %23 = vector.load %arg7[%c0_22, %c0_23] : memref<16x1xf32, #tpu.memory_space<vmem>>, vector<16x1xf32>
    %c0_24 = arith.constant 0 : index
    %c0_25 = arith.constant 0 : index
    %24 = vector.load %arg8[%c0_24, %c0_25] : memref<16x1xf32, #tpu.memory_space<vmem>>, vector<16x1xf32>
    %c0_26 = arith.constant 0 : index
    %c0_27 = arith.constant 0 : index
    %25 = vector.load %arg14[%c0_26, %c0_27] : memref<2x32xf32, #tpu.memory_space<vmem>>, vector<2x32xf32>
    %c0_28 = arith.constant 0 : index
    %c0_29 = arith.constant 0 : index
    %26 = vector.load %arg15[%c0_28, %c0_29] : memref<2x32xf32, #tpu.memory_space<vmem>>, vector<2x32xf32>
    %c0_30 = arith.constant 0 : index
    %c0_31 = arith.constant 0 : index
    %27 = vector.load %arg16[%c0_30, %c0_31] : memref<2x32xf32, #tpu.memory_space<vmem>>, vector<2x32xf32>
    %c0_32 = arith.constant 0 : index
    %c0_33 = arith.constant 0 : index
    %28 = vector.load %arg17[%c0_32, %c0_33] : memref<2x32xf32, #tpu.memory_space<vmem>>, vector<2x32xf32>
    %29 = vector.extract_strided_slice %14 {offsets = [0, 0], sizes = [2, 128], strides = [1, 1]} : vector<16x128xf32> to vector<2x128xf32>
    %cst_34 = arith.constant dense<0.000000e+00> : vector<2x128xf32>
    %30 = tpu.matmul %25, %20, %cst_34 {dimension_numbers = #tpu.dot_dimension_numbers<[1], [0], [0], [1], [0, 0, 1, 1], [], []>} : vector<2x32xf32>, vector<32x128xf32>, vector<2x128xf32> -> vector<2x128xf32>
    %31 = arith.addf %29, %30 : vector<2x128xf32>
    %32 = vector.extract_strided_slice %31 {offsets = [0, 0], sizes = [2, 96], strides = [1, 1]} : vector<2x128xf32> to vector<2x96xf32>
    %33 = arith.negf %32 : vector<2x96xf32>
    %34 = math.exp %33 : vector<2x96xf32>
    %cst_35 = arith.constant 1.000000e+00 : f32
    %35 = vector.broadcast %cst_35 : f32 to vector<2x96xf32>
    %36 = arith.addf %35, %34 : vector<2x96xf32>
    %37 = arith.divf %35, %36 : vector<2x96xf32>
    %38 = vector.extract_strided_slice %31 {offsets = [0, 96], sizes = [2, 32], strides = [1, 1]} : vector<2x128xf32> to vector<2x32xf32>
    %39 = math.tanh %38 : vector<2x32xf32>
    %40 = vector.extract_strided_slice %37 {offsets = [0, 32], sizes = [2, 32], strides = [1, 1]} : vector<2x96xf32> to vector<2x32xf32>
    %41 = arith.mulf %40, %26 : vector<2x32xf32>
    %42 = vector.extract_strided_slice %37 {offsets = [0, 0], sizes = [2, 32], strides = [1, 1]} : vector<2x96xf32> to vector<2x32xf32>
    %43 = arith.mulf %42, %39 : vector<2x32xf32>
    %44 = arith.addf %41, %43 : vector<2x32xf32>
    %45 = vector.extract_strided_slice %37 {offsets = [0, 64], sizes = [2, 32], strides = [1, 1]} : vector<2x96xf32> to vector<2x32xf32>
    %46 = math.tanh %44 : vector<2x32xf32>
    %47 = arith.mulf %45, %46 : vector<2x32xf32>
    %48 = vector.extract_strided_slice %23 {offsets = [0, 0], sizes = [2, 1], strides = [1, 1]} : vector<16x1xf32> to vector<2x1xf32>
    %49 = arith.subf %47, %25 : vector<2x32xf32>
    %50 = vector.broadcast %48 : vector<2x1xf32> to vector<2x32xf32>
    %51 = arith.mulf %50, %49 : vector<2x32xf32>
    %52 = arith.addf %25, %51 : vector<2x32xf32>
    %53 = arith.subf %44, %26 : vector<2x32xf32>
    %54 = vector.broadcast %48 : vector<2x1xf32> to vector<2x32xf32>
    %55 = arith.mulf %54, %53 : vector<2x32xf32>
    %56 = arith.addf %26, %55 : vector<2x32xf32>
    %57 = vector.broadcast %48 : vector<2x1xf32> to vector<2x32xf32>
    %58 = arith.mulf %57, %47 : vector<2x32xf32>
    %c0_36 = arith.constant 0 : index
    %c0_37 = arith.constant 0 : index
    %59 = vector.load %arg11[%c0_36, %c0_37] : memref<16x32xf32, #tpu.memory_space<vmem>>, vector<2x32xf32>
    tpu.vector_store %arg11[%c0_36, %c0_37], %58 {strides = array<i32>} : memref<16x32xf32, #tpu.memory_space<vmem>>, vector<2x32xf32>,
    %60 = vector.extract_strided_slice %18 {offsets = [14, 0], sizes = [2, 128], strides = [1, 1]} : vector<16x128xf32> to vector<2x128xf32>
    %cst_38 = arith.constant dense<0.000000e+00> : vector<2x128xf32>
    %61 = tpu.matmul %27, %22, %cst_38 {dimension_numbers = #tpu.dot_dimension_numbers<[1], [0], [0], [1], [0, 0, 1, 1], [], []>} : vector<2x32xf32>, vector<32x128xf32>, vector<2x128xf32> -> vector<2x128xf32>
    %62 = arith.addf %60, %61 : vector<2x128xf32>
    %63 = vector.extract_strided_slice %62 {offsets = [0, 0], sizes = [2, 96], strides = [1, 1]} : vector<2x128xf32> to vector<2x96xf32>
    %64 = arith.negf %63 : vector<2x96xf32>
    %65 = math.exp %64 : vector<2x96xf32>
    %cst_39 = arith.constant 1.000000e+00 : f32
    %66 = vector.broadcast %cst_39 : f32 to vector<2x96xf32>
    %67 = arith.addf %66, %65 : vector<2x96xf32>
    %68 = arith.divf %66, %67 : vector<2x96xf32>
    %69 = vector.extract_strided_slice %62 {offsets = [0, 96], sizes = [2, 32], strides = [1, 1]} : vector<2x128xf32> to vector<2x32xf32>
    %70 = math.tanh %69 : vector<2x32xf32>
    %71 = vector.extract_strided_slice %68 {offsets = [0, 32], sizes = [2, 32], strides = [1, 1]} : vector<2x96xf32> to vector<2x32xf32>
    %72 = arith.mulf %71, %28 : vector<2x32xf32>
    %73 = vector.extract_strided_slice %68 {offsets = [0, 0], sizes = [2, 32], strides = [1, 1]} : vector<2x96xf32> to vector<2x32xf32>
    %74 = arith.mulf %73, %70 : vector<2x32xf32>
    %75 = arith.addf %72, %74 : vector<2x32xf32>
    %76 = vector.extract_strided_slice %68 {offsets = [0, 64], sizes = [2, 32], strides = [1, 1]} : vector<2x96xf32> to vector<2x32xf32>
    %77 = math.tanh %75 : vector<2x32xf32>
    %78 = arith.mulf %76, %77 : vector<2x32xf32>
    %79 = vector.extract_strided_slice %24 {offsets = [14, 0], sizes = [2, 1], strides = [1, 1]} : vector<16x1xf32> to vector<2x1xf32>
    %80 = arith.subf %78, %27 : vector<2x32xf32>
    %81 = vector.broadcast %79 : vector<2x1xf32> to vector<2x32xf32>
    %82 = arith.mulf %81, %80 : vector<2x32xf32>
    %83 = arith.addf %27, %82 : vector<2x32xf32>
    %84 = arith.subf %75, %28 : vector<2x32xf32>
    %85 = vector.broadcast %79 : vector<2x1xf32> to vector<2x32xf32>
    %86 = arith.mulf %85, %84 : vector<2x32xf32>
    %87 = arith.addf %28, %86 : vector<2x32xf32>
    %88 = vector.broadcast %79 : vector<2x1xf32> to vector<2x32xf32>
    %89 = arith.mulf %88, %78 : vector<2x32xf32>
    %c14 = arith.constant 14 : index
    %c0_40 = arith.constant 0 : index
    %90 = vector.load %arg12[%c14, %c0_40] : memref<16x32xf32, #tpu.memory_space<vmem>>, vector<2x32xf32>
    tpu.vector_store %arg12[%c14, %c0_40], %89 {strides = array<i32>} : memref<16x32xf32, #tpu.memory_space<vmem>>, vector<2x32xf32>,
    %91 = vector.extract_strided_slice %14 {offsets = [2, 0], sizes = [2, 128], strides = [1, 1]} : vector<16x128xf32> to vector<2x128xf32>
    %cst_41 = arith.constant dense<0.000000e+00> : vector<2x128xf32>
    %92 = tpu.matmul %52, %20, %cst_41 {dimension_numbers = #tpu.dot_dimension_numbers<[1], [0], [0], [1], [0, 0, 1, 1], [], []>} : vector<2x32xf32>, vector<32x128xf32>, vector<2x128xf32> -> vector<2x128xf32>
    %93 = arith.addf %91, %92 : vector<2x128xf32>
    %94 = vector.extract_strided_slice %93 {offsets = [0, 0], sizes = [2, 96], strides = [1, 1]} : vector<2x128xf32> to vector<2x96xf32>
    %95 = arith.negf %94 : vector<2x96xf32>
    %96 = math.exp %95 : vector<2x96xf32>
    %cst_42 = arith.constant 1.000000e+00 : f32
    %97 = vector.broadcast %cst_42 : f32 to vector<2x96xf32>
    %98 = arith.addf %97, %96 : vector<2x96xf32>
    %99 = arith.divf %97, %98 : vector<2x96xf32>
    %100 = vector.extract_strided_slice %93 {offsets = [0, 96], sizes = [2, 32], strides = [1, 1]} : vector<2x128xf32> to vector<2x32xf32>
    %101 = math.tanh %100 : vector<2x32xf32>
    %102 = vector.extract_strided_slice %99 {offsets = [0, 32], sizes = [2, 32], strides = [1, 1]} : vector<2x96xf32> to vector<2x32xf32>
    %103 = arith.mulf %102, %56 : vector<2x32xf32>
    %104 = vector.extract_strided_slice %99 {offsets = [0, 0], sizes = [2, 32], strides = [1, 1]} : vector<2x96xf32> to vector<2x32xf32>
    %105 = arith.mulf %104, %101 : vector<2x32xf32>
    %106 = arith.addf %103, %105 : vector<2x32xf32>
    %107 = vector.extract_strided_slice %99 {offsets = [0, 64], sizes = [2, 32], strides = [1, 1]} : vector<2x96xf32> to vector<2x32xf32>
    %108 = math.tanh %106 : vector<2x32xf32>
    %109 = arith.mulf %107, %108 : vector<2x32xf32>
    %110 = vector.extract_strided_slice %23 {offsets = [2, 0], sizes = [2, 1], strides = [1, 1]} : vector<16x1xf32> to vector<2x1xf32>
    %111 = arith.subf %109, %52 : vector<2x32xf32>
    %112 = vector.broadcast %110 : vector<2x1xf32> to vector<2x32xf32>
    %113 = arith.mulf %112, %111 : vector<2x32xf32>
    %114 = arith.addf %52, %113 : vector<2x32xf32>
    %115 = arith.subf %106, %56 : vector<2x32xf32>
    %116 = vector.broadcast %110 : vector<2x1xf32> to vector<2x32xf32>
    %117 = arith.mulf %116, %115 : vector<2x32xf32>
    %118 = arith.addf %56, %117 : vector<2x32xf32>
    %119 = vector.broadcast %110 : vector<2x1xf32> to vector<2x32xf32>
    %120 = arith.mulf %119, %109 : vector<2x32xf32>
    %c2 = arith.constant 2 : index
    %c0_43 = arith.constant 0 : index
    %121 = vector.load %arg11[%c2, %c0_43] : memref<16x32xf32, #tpu.memory_space<vmem>>, vector<2x32xf32>
    tpu.vector_store %arg11[%c2, %c0_43], %120 {strides = array<i32>} : memref<16x32xf32, #tpu.memory_space<vmem>>, vector<2x32xf32>,
    %122 = vector.extract_strided_slice %18 {offsets = [12, 0], sizes = [2, 128], strides = [1, 1]} : vector<16x128xf32> to vector<2x128xf32>
    %cst_44 = arith.constant dense<0.000000e+00> : vector<2x128xf32>
    %123 = tpu.matmul %83, %22, %cst_44 {dimension_numbers = #tpu.dot_dimension_numbers<[1], [0], [0], [1], [0, 0, 1, 1], [], []>} : vector<2x32xf32>, vector<32x128xf32>, vector<2x128xf32> -> vector<2x128xf32>
    %124 = arith.addf %122, %123 : vector<2x128xf32>
    %125 = vector.extract_strided_slice %124 {offsets = [0, 0], sizes = [2, 96], strides = [1, 1]} : vector<2x128xf32> to vector<2x96xf32>
    %126 = arith.negf %125 : vector<2x96xf32>
    %127 = math.exp %126 : vector<2x96xf32>
    %cst_45 = arith.constant 1.000000e+00 : f32
    %128 = vector.broadcast %cst_45 : f32 to vector<2x96xf32>
    %129 = arith.addf %128, %127 : vector<2x96xf32>
    %130 = arith.divf %128, %129 : vector<2x96xf32>
    %131 = vector.extract_strided_slice %124 {offsets = [0, 96], sizes = [2, 32], strides = [1, 1]} : vector<2x128xf32> to vector<2x32xf32>
    %132 = math.tanh %131 : vector<2x32xf32>
    %133 = vector.extract_strided_slice %130 {offsets = [0, 32], sizes = [2, 32], strides = [1, 1]} : vector<2x96xf32> to vector<2x32xf32>
    %134 = arith.mulf %133, %87 : vector<2x32xf32>
    %135 = vector.extract_strided_slice %130 {offsets = [0, 0], sizes = [2, 32], strides = [1, 1]} : vector<2x96xf32> to vector<2x32xf32>
    %136 = arith.mulf %135, %132 : vector<2x32xf32>
    %137 = arith.addf %134, %136 : vector<2x32xf32>
    %138 = vector.extract_strided_slice %130 {offsets = [0, 64], sizes = [2, 32], strides = [1, 1]} : vector<2x96xf32> to vector<2x32xf32>
    %139 = math.tanh %137 : vector<2x32xf32>
    %140 = arith.mulf %138, %139 : vector<2x32xf32>
    %141 = vector.extract_strided_slice %24 {offsets = [12, 0], sizes = [2, 1], strides = [1, 1]} : vector<16x1xf32> to vector<2x1xf32>
    %142 = arith.subf %140, %83 : vector<2x32xf32>
    %143 = vector.broadcast %141 : vector<2x1xf32> to vector<2x32xf32>
    %144 = arith.mulf %143, %142 : vector<2x32xf32>
    %145 = arith.addf %83, %144 : vector<2x32xf32>
    %146 = arith.subf %137, %87 : vector<2x32xf32>
    %147 = vector.broadcast %141 : vector<2x1xf32> to vector<2x32xf32>
    %148 = arith.mulf %147, %146 : vector<2x32xf32>
    %149 = arith.addf %87, %148 : vector<2x32xf32>
    %150 = vector.broadcast %141 : vector<2x1xf32> to vector<2x32xf32>
    %151 = arith.mulf %150, %140 : vector<2x32xf32>
    %c12 = arith.constant 12 : index
    %c0_46 = arith.constant 0 : index
    %152 = vector.load %arg12[%c12, %c0_46] : memref<16x32xf32, #tpu.memory_space<vmem>>, vector<2x32xf32>
    tpu.vector_store %arg12[%c12, %c0_46], %151 {strides = array<i32>} : memref<16x32xf32, #tpu.memory_space<vmem>>, vector<2x32xf32>,
    %153 = vector.extract_strided_slice %14 {offsets = [4, 0], sizes = [2, 128], strides = [1, 1]} : vector<16x128xf32> to vector<2x128xf32>
    %cst_47 = arith.constant dense<0.000000e+00> : vector<2x128xf32>
    %154 = tpu.matmul %114, %20, %cst_47 {dimension_numbers = #tpu.dot_dimension_numbers<[1], [0], [0], [1], [0, 0, 1, 1], [], []>} : vector<2x32xf32>, vector<32x128xf32>, vector<2x128xf32> -> vector<2x128xf32>
    %155 = arith.addf %153, %154 : vector<2x128xf32>
    %156 = vector.extract_strided_slice %155 {offsets = [0, 0], sizes = [2, 96], strides = [1, 1]} : vector<2x128xf32> to vector<2x96xf32>
    %157 = arith.negf %156 : vector<2x96xf32>
    %158 = math.exp %157 : vector<2x96xf32>
    %cst_48 = arith.constant 1.000000e+00 : f32
    %159 = vector.broadcast %cst_48 : f32 to vector<2x96xf32>
    %160 = arith.addf %159, %158 : vector<2x96xf32>
    %161 = arith.divf %159, %160 : vector<2x96xf32>
    %162 = vector.extract_strided_slice %155 {offsets = [0, 96], sizes = [2, 32], strides = [1, 1]} : vector<2x128xf32> to vector<2x32xf32>
    %163 = math.tanh %162 : vector<2x32xf32>
    %164 = vector.extract_strided_slice %161 {offsets = [0, 32], sizes = [2, 32], strides = [1, 1]} : vector<2x96xf32> to vector<2x32xf32>
    %165 = arith.mulf %164, %118 : vector<2x32xf32>
    %166 = vector.extract_strided_slice %161 {offsets = [0, 0], sizes = [2, 32], strides = [1, 1]} : vector<2x96xf32> to vector<2x32xf32>
    %167 = arith.mulf %166, %163 : vector<2x32xf32>
    %168 = arith.addf %165, %167 : vector<2x32xf32>
    %169 = vector.extract_strided_slice %161 {offsets = [0, 64], sizes = [2, 32], strides = [1, 1]} : vector<2x96xf32> to vector<2x32xf32>
    %170 = math.tanh %168 : vector<2x32xf32>
    %171 = arith.mulf %169, %170 : vector<2x32xf32>
    %172 = vector.extract_strided_slice %23 {offsets = [4, 0], sizes = [2, 1], strides = [1, 1]} : vector<16x1xf32> to vector<2x1xf32>
    %173 = arith.subf %171, %114 : vector<2x32xf32>
    %174 = vector.broadcast %172 : vector<2x1xf32> to vector<2x32xf32>
    %175 = arith.mulf %174, %173 : vector<2x32xf32>
    %176 = arith.addf %114, %175 : vector<2x32xf32>
    %177 = arith.subf %168, %118 : vector<2x32xf32>
    %178 = vector.broadcast %172 : vector<2x1xf32> to vector<2x32xf32>
    %179 = arith.mulf %178, %177 : vector<2x32xf32>
    %180 = arith.addf %118, %179 : vector<2x32xf32>
    %181 = vector.broadcast %172 : vector<2x1xf32> to vector<2x32xf32>
    %182 = arith.mulf %181, %171 : vector<2x32xf32>
    %c4 = arith.constant 4 : index
    %c0_49 = arith.constant 0 : index
    %183 = vector.load %arg11[%c4, %c0_49] : memref<16x32xf32, #tpu.memory_space<vmem>>, vector<2x32xf32>
    tpu.vector_store %arg11[%c4, %c0_49], %182 {strides = array<i32>} : memref<16x32xf32, #tpu.memory_space<vmem>>, vector<2x32xf32>,
    %184 = vector.extract_strided_slice %18 {offsets = [10, 0], sizes = [2, 128], strides = [1, 1]} : vector<16x128xf32> to vector<2x128xf32>
    %cst_50 = arith.constant dense<0.000000e+00> : vector<2x128xf32>
    %185 = tpu.matmul %145, %22, %cst_50 {dimension_numbers = #tpu.dot_dimension_numbers<[1], [0], [0], [1], [0, 0, 1, 1], [], []>} : vector<2x32xf32>, vector<32x128xf32>, vector<2x128xf32> -> vector<2x128xf32>
    %186 = arith.addf %184, %185 : vector<2x128xf32>
    %187 = vector.extract_strided_slice %186 {offsets = [0, 0], sizes = [2, 96], strides = [1, 1]} : vector<2x128xf32> to vector<2x96xf32>
    %188 = arith.negf %187 : vector<2x96xf32>
    %189 = math.exp %188 : vector<2x96xf32>
    %cst_51 = arith.constant 1.000000e+00 : f32
    %190 = vector.broadcast %cst_51 : f32 to vector<2x96xf32>
    %191 = arith.addf %190, %189 : vector<2x96xf32>
    %192 = arith.divf %190, %191 : vector<2x96xf32>
    %193 = vector.extract_strided_slice %186 {offsets = [0, 96], sizes = [2, 32], strides = [1, 1]} : vector<2x128xf32> to vector<2x32xf32>
    %194 = math.tanh %193 : vector<2x32xf32>
    %195 = vector.extract_strided_slice %192 {offsets = [0, 32], sizes = [2, 32], strides = [1, 1]} : vector<2x96xf32> to vector<2x32xf32>
    %196 = arith.mulf %195, %149 : vector<2x32xf32>
    %197 = vector.extract_strided_slice %192 {offsets = [0, 0], sizes = [2, 32], strides = [1, 1]} : vector<2x96xf32> to vector<2x32xf32>
    %198 = arith.mulf %197, %194 : vector<2x32xf32>
    %199 = arith.addf %196, %198 : vector<2x32xf32>
    %200 = vector.extract_strided_slice %192 {offsets = [0, 64], sizes = [2, 32], strides = [1, 1]} : vector<2x96xf32> to vector<2x32xf32>
    %201 = math.tanh %199 : vector<2x32xf32>
    %202 = arith.mulf %200, %201 : vector<2x32xf32>
    %203 = vector.extract_strided_slice %24 {offsets = [10, 0], sizes = [2, 1], strides = [1, 1]} : vector<16x1xf32> to vector<2x1xf32>
    %204 = arith.subf %202, %145 : vector<2x32xf32>
    %205 = vector.broadcast %203 : vector<2x1xf32> to vector<2x32xf32>
    %206 = arith.mulf %205, %204 : vector<2x32xf32>
    %207 = arith.addf %145, %206 : vector<2x32xf32>
    %208 = arith.subf %199, %149 : vector<2x32xf32>
    %209 = vector.broadcast %203 : vector<2x1xf32> to vector<2x32xf32>
    %210 = arith.mulf %209, %208 : vector<2x32xf32>
    %211 = arith.addf %149, %210 : vector<2x32xf32>
    %212 = vector.broadcast %203 : vector<2x1xf32> to vector<2x32xf32>
    %213 = arith.mulf %212, %202 : vector<2x32xf32>
    %c10 = arith.constant 10 : index
    %c0_52 = arith.constant 0 : index
    %214 = vector.load %arg12[%c10, %c0_52] : memref<16x32xf32, #tpu.memory_space<vmem>>, vector<2x32xf32>
    tpu.vector_store %arg12[%c10, %c0_52], %213 {strides = array<i32>} : memref<16x32xf32, #tpu.memory_space<vmem>>, vector<2x32xf32>,
    %215 = vector.extract_strided_slice %14 {offsets = [6, 0], sizes = [2, 128], strides = [1, 1]} : vector<16x128xf32> to vector<2x128xf32>
    %cst_53 = arith.constant dense<0.000000e+00> : vector<2x128xf32>
    %216 = tpu.matmul %176, %20, %cst_53 {dimension_numbers = #tpu.dot_dimension_numbers<[1], [0], [0], [1], [0, 0, 1, 1], [], []>} : vector<2x32xf32>, vector<32x128xf32>, vector<2x128xf32> -> vector<2x128xf32>
    %217 = arith.addf %215, %216 : vector<2x128xf32>
    %218 = vector.extract_strided_slice %217 {offsets = [0, 0], sizes = [2, 96], strides = [1, 1]} : vector<2x128xf32> to vector<2x96xf32>
    %219 = arith.negf %218 : vector<2x96xf32>
    %220 = math.exp %219 : vector<2x96xf32>
    %cst_54 = arith.constant 1.000000e+00 : f32
    %221 = vector.broadcast %cst_54 : f32 to vector<2x96xf32>
    %222 = arith.addf %221, %220 : vector<2x96xf32>
    %223 = arith.divf %221, %222 : vector<2x96xf32>
    %224 = vector.extract_strided_slice %217 {offsets = [0, 96], sizes = [2, 32], strides = [1, 1]} : vector<2x128xf32> to vector<2x32xf32>
    %225 = math.tanh %224 : vector<2x32xf32>
    %226 = vector.extract_strided_slice %223 {offsets = [0, 32], sizes = [2, 32], strides = [1, 1]} : vector<2x96xf32> to vector<2x32xf32>
    %227 = arith.mulf %226, %180 : vector<2x32xf32>
    %228 = vector.extract_strided_slice %223 {offsets = [0, 0], sizes = [2, 32], strides = [1, 1]} : vector<2x96xf32> to vector<2x32xf32>
    %229 = arith.mulf %228, %225 : vector<2x32xf32>
    %230 = arith.addf %227, %229 : vector<2x32xf32>
    %231 = vector.extract_strided_slice %223 {offsets = [0, 64], sizes = [2, 32], strides = [1, 1]} : vector<2x96xf32> to vector<2x32xf32>
    %232 = math.tanh %230 : vector<2x32xf32>
    %233 = arith.mulf %231, %232 : vector<2x32xf32>
    %234 = vector.extract_strided_slice %23 {offsets = [6, 0], sizes = [2, 1], strides = [1, 1]} : vector<16x1xf32> to vector<2x1xf32>
    %235 = arith.subf %233, %176 : vector<2x32xf32>
    %236 = vector.broadcast %234 : vector<2x1xf32> to vector<2x32xf32>
    %237 = arith.mulf %236, %235 : vector<2x32xf32>
    %238 = arith.addf %176, %237 : vector<2x32xf32>
    %239 = arith.subf %230, %180 : vector<2x32xf32>
    %240 = vector.broadcast %234 : vector<2x1xf32> to vector<2x32xf32>
    %241 = arith.mulf %240, %239 : vector<2x32xf32>
    %242 = arith.addf %180, %241 : vector<2x32xf32>
    %243 = vector.broadcast %234 : vector<2x1xf32> to vector<2x32xf32>
    %244 = arith.mulf %243, %233 : vector<2x32xf32>
    %c6 = arith.constant 6 : index
    %c0_55 = arith.constant 0 : index
    %245 = vector.load %arg11[%c6, %c0_55] : memref<16x32xf32, #tpu.memory_space<vmem>>, vector<2x32xf32>
    tpu.vector_store %arg11[%c6, %c0_55], %244 {strides = array<i32>} : memref<16x32xf32, #tpu.memory_space<vmem>>, vector<2x32xf32>,
    %246 = vector.extract_strided_slice %18 {offsets = [8, 0], sizes = [2, 128], strides = [1, 1]} : vector<16x128xf32> to vector<2x128xf32>
    %cst_56 = arith.constant dense<0.000000e+00> : vector<2x128xf32>
    %247 = tpu.matmul %207, %22, %cst_56 {dimension_numbers = #tpu.dot_dimension_numbers<[1], [0], [0], [1], [0, 0, 1, 1], [], []>} : vector<2x32xf32>, vector<32x128xf32>, vector<2x128xf32> -> vector<2x128xf32>
    %248 = arith.addf %246, %247 : vector<2x128xf32>
    %249 = vector.extract_strided_slice %248 {offsets = [0, 0], sizes = [2, 96], strides = [1, 1]} : vector<2x128xf32> to vector<2x96xf32>
    %250 = arith.negf %249 : vector<2x96xf32>
    %251 = math.exp %250 : vector<2x96xf32>
    %cst_57 = arith.constant 1.000000e+00 : f32
    %252 = vector.broadcast %cst_57 : f32 to vector<2x96xf32>
    %253 = arith.addf %252, %251 : vector<2x96xf32>
    %254 = arith.divf %252, %253 : vector<2x96xf32>
    %255 = vector.extract_strided_slice %248 {offsets = [0, 96], sizes = [2, 32], strides = [1, 1]} : vector<2x128xf32> to vector<2x32xf32>
    %256 = math.tanh %255 : vector<2x32xf32>
    %257 = vector.extract_strided_slice %254 {offsets = [0, 32], sizes = [2, 32], strides = [1, 1]} : vector<2x96xf32> to vector<2x32xf32>
    %258 = arith.mulf %257, %211 : vector<2x32xf32>
    %259 = vector.extract_strided_slice %254 {offsets = [0, 0], sizes = [2, 32], strides = [1, 1]} : vector<2x96xf32> to vector<2x32xf32>
    %260 = arith.mulf %259, %256 : vector<2x32xf32>
    %261 = arith.addf %258, %260 : vector<2x32xf32>
    %262 = vector.extract_strided_slice %254 {offsets = [0, 64], sizes = [2, 32], strides = [1, 1]} : vector<2x96xf32> to vector<2x32xf32>
    %263 = math.tanh %261 : vector<2x32xf32>
    %264 = arith.mulf %262, %263 : vector<2x32xf32>
    %265 = vector.extract_strided_slice %24 {offsets = [8, 0], sizes = [2, 1], strides = [1, 1]} : vector<16x1xf32> to vector<2x1xf32>
    %266 = arith.subf %264, %207 : vector<2x32xf32>
    %267 = vector.broadcast %265 : vector<2x1xf32> to vector<2x32xf32>
    %268 = arith.mulf %267, %266 : vector<2x32xf32>
    %269 = arith.addf %207, %268 : vector<2x32xf32>
    %270 = arith.subf %261, %211 : vector<2x32xf32>
    %271 = vector.broadcast %265 : vector<2x1xf32> to vector<2x32xf32>
    %272 = arith.mulf %271, %270 : vector<2x32xf32>
    %273 = arith.addf %211, %272 : vector<2x32xf32>
    %274 = vector.broadcast %265 : vector<2x1xf32> to vector<2x32xf32>
    %275 = arith.mulf %274, %264 : vector<2x32xf32>
    %c8 = arith.constant 8 : index
    %c0_58 = arith.constant 0 : index
    %276 = vector.load %arg12[%c8, %c0_58] : memref<16x32xf32, #tpu.memory_space<vmem>>, vector<2x32xf32>
    tpu.vector_store %arg12[%c8, %c0_58], %275 {strides = array<i32>} : memref<16x32xf32, #tpu.memory_space<vmem>>, vector<2x32xf32>,
    %277 = vector.extract_strided_slice %14 {offsets = [8, 0], sizes = [2, 128], strides = [1, 1]} : vector<16x128xf32> to vector<2x128xf32>
    %cst_59 = arith.constant dense<0.000000e+00> : vector<2x128xf32>
    %278 = tpu.matmul %238, %20, %cst_59 {dimension_numbers = #tpu.dot_dimension_numbers<[1], [0], [0], [1], [0, 0, 1, 1], [], []>} : vector<2x32xf32>, vector<32x128xf32>, vector<2x128xf32> -> vector<2x128xf32>
    %279 = arith.addf %277, %278 : vector<2x128xf32>
    %280 = vector.extract_strided_slice %279 {offsets = [0, 0], sizes = [2, 96], strides = [1, 1]} : vector<2x128xf32> to vector<2x96xf32>
    %281 = arith.negf %280 : vector<2x96xf32>
    %282 = math.exp %281 : vector<2x96xf32>
    %cst_60 = arith.constant 1.000000e+00 : f32
    %283 = vector.broadcast %cst_60 : f32 to vector<2x96xf32>
    %284 = arith.addf %283, %282 : vector<2x96xf32>
    %285 = arith.divf %283, %284 : vector<2x96xf32>
    %286 = vector.extract_strided_slice %279 {offsets = [0, 96], sizes = [2, 32], strides = [1, 1]} : vector<2x128xf32> to vector<2x32xf32>
    %287 = math.tanh %286 : vector<2x32xf32>
    %288 = vector.extract_strided_slice %285 {offsets = [0, 32], sizes = [2, 32], strides = [1, 1]} : vector<2x96xf32> to vector<2x32xf32>
    %289 = arith.mulf %288, %242 : vector<2x32xf32>
    %290 = vector.extract_strided_slice %285 {offsets = [0, 0], sizes = [2, 32], strides = [1, 1]} : vector<2x96xf32> to vector<2x32xf32>
    %291 = arith.mulf %290, %287 : vector<2x32xf32>
    %292 = arith.addf %289, %291 : vector<2x32xf32>
    %293 = vector.extract_strided_slice %285 {offsets = [0, 64], sizes = [2, 32], strides = [1, 1]} : vector<2x96xf32> to vector<2x32xf32>
    %294 = math.tanh %292 : vector<2x32xf32>
    %295 = arith.mulf %293, %294 : vector<2x32xf32>
    %296 = vector.extract_strided_slice %23 {offsets = [8, 0], sizes = [2, 1], strides = [1, 1]} : vector<16x1xf32> to vector<2x1xf32>
    %297 = arith.subf %295, %238 : vector<2x32xf32>
    %298 = vector.broadcast %296 : vector<2x1xf32> to vector<2x32xf32>
    %299 = arith.mulf %298, %297 : vector<2x32xf32>
    %300 = arith.addf %238, %299 : vector<2x32xf32>
    %301 = arith.subf %292, %242 : vector<2x32xf32>
    %302 = vector.broadcast %296 : vector<2x1xf32> to vector<2x32xf32>
    %303 = arith.mulf %302, %301 : vector<2x32xf32>
    %304 = arith.addf %242, %303 : vector<2x32xf32>
    %305 = vector.broadcast %296 : vector<2x1xf32> to vector<2x32xf32>
    %306 = arith.mulf %305, %295 : vector<2x32xf32>
    %c8_61 = arith.constant 8 : index
    %c0_62 = arith.constant 0 : index
    %307 = vector.load %arg11[%c8_61, %c0_62] : memref<16x32xf32, #tpu.memory_space<vmem>>, vector<2x32xf32>
    tpu.vector_store %arg11[%c8_61, %c0_62], %306 {strides = array<i32>} : memref<16x32xf32, #tpu.memory_space<vmem>>, vector<2x32xf32>,
    %308 = vector.extract_strided_slice %18 {offsets = [6, 0], sizes = [2, 128], strides = [1, 1]} : vector<16x128xf32> to vector<2x128xf32>
    %cst_63 = arith.constant dense<0.000000e+00> : vector<2x128xf32>
    %309 = tpu.matmul %269, %22, %cst_63 {dimension_numbers = #tpu.dot_dimension_numbers<[1], [0], [0], [1], [0, 0, 1, 1], [], []>} : vector<2x32xf32>, vector<32x128xf32>, vector<2x128xf32> -> vector<2x128xf32>
    %310 = arith.addf %308, %309 : vector<2x128xf32>
    %311 = vector.extract_strided_slice %310 {offsets = [0, 0], sizes = [2, 96], strides = [1, 1]} : vector<2x128xf32> to vector<2x96xf32>
    %312 = arith.negf %311 : vector<2x96xf32>
    %313 = math.exp %312 : vector<2x96xf32>
    %cst_64 = arith.constant 1.000000e+00 : f32
    %314 = vector.broadcast %cst_64 : f32 to vector<2x96xf32>
    %315 = arith.addf %314, %313 : vector<2x96xf32>
    %316 = arith.divf %314, %315 : vector<2x96xf32>
    %317 = vector.extract_strided_slice %310 {offsets = [0, 96], sizes = [2, 32], strides = [1, 1]} : vector<2x128xf32> to vector<2x32xf32>
    %318 = math.tanh %317 : vector<2x32xf32>
    %319 = vector.extract_strided_slice %316 {offsets = [0, 32], sizes = [2, 32], strides = [1, 1]} : vector<2x96xf32> to vector<2x32xf32>
    %320 = arith.mulf %319, %273 : vector<2x32xf32>
    %321 = vector.extract_strided_slice %316 {offsets = [0, 0], sizes = [2, 32], strides = [1, 1]} : vector<2x96xf32> to vector<2x32xf32>
    %322 = arith.mulf %321, %318 : vector<2x32xf32>
    %323 = arith.addf %320, %322 : vector<2x32xf32>
    %324 = vector.extract_strided_slice %316 {offsets = [0, 64], sizes = [2, 32], strides = [1, 1]} : vector<2x96xf32> to vector<2x32xf32>
    %325 = math.tanh %323 : vector<2x32xf32>
    %326 = arith.mulf %324, %325 : vector<2x32xf32>
    %327 = vector.extract_strided_slice %24 {offsets = [6, 0], sizes = [2, 1], strides = [1, 1]} : vector<16x1xf32> to vector<2x1xf32>
    %328 = arith.subf %326, %269 : vector<2x32xf32>
    %329 = vector.broadcast %327 : vector<2x1xf32> to vector<2x32xf32>
    %330 = arith.mulf %329, %328 : vector<2x32xf32>
    %331 = arith.addf %269, %330 : vector<2x32xf32>
    %332 = arith.subf %323, %273 : vector<2x32xf32>
    %333 = vector.broadcast %327 : vector<2x1xf32> to vector<2x32xf32>
    %334 = arith.mulf %333, %332 : vector<2x32xf32>
    %335 = arith.addf %273, %334 : vector<2x32xf32>
    %336 = vector.broadcast %327 : vector<2x1xf32> to vector<2x32xf32>
    %337 = arith.mulf %336, %326 : vector<2x32xf32>
    %c6_65 = arith.constant 6 : index
    %c0_66 = arith.constant 0 : index
    %338 = vector.load %arg12[%c6_65, %c0_66] : memref<16x32xf32, #tpu.memory_space<vmem>>, vector<2x32xf32>
    tpu.vector_store %arg12[%c6_65, %c0_66], %337 {strides = array<i32>} : memref<16x32xf32, #tpu.memory_space<vmem>>, vector<2x32xf32>,
    %339 = vector.extract_strided_slice %14 {offsets = [10, 0], sizes = [2, 128], strides = [1, 1]} : vector<16x128xf32> to vector<2x128xf32>
    %cst_67 = arith.constant dense<0.000000e+00> : vector<2x128xf32>
    %340 = tpu.matmul %300, %20, %cst_67 {dimension_numbers = #tpu.dot_dimension_numbers<[1], [0], [0], [1], [0, 0, 1, 1], [], []>} : vector<2x32xf32>, vector<32x128xf32>, vector<2x128xf32> -> vector<2x128xf32>
    %341 = arith.addf %339, %340 : vector<2x128xf32>
    %342 = vector.extract_strided_slice %341 {offsets = [0, 0], sizes = [2, 96], strides = [1, 1]} : vector<2x128xf32> to vector<2x96xf32>
    %343 = arith.negf %342 : vector<2x96xf32>
    %344 = math.exp %343 : vector<2x96xf32>
    %cst_68 = arith.constant 1.000000e+00 : f32
    %345 = vector.broadcast %cst_68 : f32 to vector<2x96xf32>
    %346 = arith.addf %345, %344 : vector<2x96xf32>
    %347 = arith.divf %345, %346 : vector<2x96xf32>
    %348 = vector.extract_strided_slice %341 {offsets = [0, 96], sizes = [2, 32], strides = [1, 1]} : vector<2x128xf32> to vector<2x32xf32>
    %349 = math.tanh %348 : vector<2x32xf32>
    %350 = vector.extract_strided_slice %347 {offsets = [0, 32], sizes = [2, 32], strides = [1, 1]} : vector<2x96xf32> to vector<2x32xf32>
    %351 = arith.mulf %350, %304 : vector<2x32xf32>
    %352 = vector.extract_strided_slice %347 {offsets = [0, 0], sizes = [2, 32], strides = [1, 1]} : vector<2x96xf32> to vector<2x32xf32>
    %353 = arith.mulf %352, %349 : vector<2x32xf32>
    %354 = arith.addf %351, %353 : vector<2x32xf32>
    %355 = vector.extract_strided_slice %347 {offsets = [0, 64], sizes = [2, 32], strides = [1, 1]} : vector<2x96xf32> to vector<2x32xf32>
    %356 = math.tanh %354 : vector<2x32xf32>
    %357 = arith.mulf %355, %356 : vector<2x32xf32>
    %358 = vector.extract_strided_slice %23 {offsets = [10, 0], sizes = [2, 1], strides = [1, 1]} : vector<16x1xf32> to vector<2x1xf32>
    %359 = arith.subf %357, %300 : vector<2x32xf32>
    %360 = vector.broadcast %358 : vector<2x1xf32> to vector<2x32xf32>
    %361 = arith.mulf %360, %359 : vector<2x32xf32>
    %362 = arith.addf %300, %361 : vector<2x32xf32>
    %363 = arith.subf %354, %304 : vector<2x32xf32>
    %364 = vector.broadcast %358 : vector<2x1xf32> to vector<2x32xf32>
    %365 = arith.mulf %364, %363 : vector<2x32xf32>
    %366 = arith.addf %304, %365 : vector<2x32xf32>
    %367 = vector.broadcast %358 : vector<2x1xf32> to vector<2x32xf32>
    %368 = arith.mulf %367, %357 : vector<2x32xf32>
    %c10_69 = arith.constant 10 : index
    %c0_70 = arith.constant 0 : index
    %369 = vector.load %arg11[%c10_69, %c0_70] : memref<16x32xf32, #tpu.memory_space<vmem>>, vector<2x32xf32>
    tpu.vector_store %arg11[%c10_69, %c0_70], %368 {strides = array<i32>} : memref<16x32xf32, #tpu.memory_space<vmem>>, vector<2x32xf32>,
    %370 = vector.extract_strided_slice %18 {offsets = [4, 0], sizes = [2, 128], strides = [1, 1]} : vector<16x128xf32> to vector<2x128xf32>
    %cst_71 = arith.constant dense<0.000000e+00> : vector<2x128xf32>
    %371 = tpu.matmul %331, %22, %cst_71 {dimension_numbers = #tpu.dot_dimension_numbers<[1], [0], [0], [1], [0, 0, 1, 1], [], []>} : vector<2x32xf32>, vector<32x128xf32>, vector<2x128xf32> -> vector<2x128xf32>
    %372 = arith.addf %370, %371 : vector<2x128xf32>
    %373 = vector.extract_strided_slice %372 {offsets = [0, 0], sizes = [2, 96], strides = [1, 1]} : vector<2x128xf32> to vector<2x96xf32>
    %374 = arith.negf %373 : vector<2x96xf32>
    %375 = math.exp %374 : vector<2x96xf32>
    %cst_72 = arith.constant 1.000000e+00 : f32
    %376 = vector.broadcast %cst_72 : f32 to vector<2x96xf32>
    %377 = arith.addf %376, %375 : vector<2x96xf32>
    %378 = arith.divf %376, %377 : vector<2x96xf32>
    %379 = vector.extract_strided_slice %372 {offsets = [0, 96], sizes = [2, 32], strides = [1, 1]} : vector<2x128xf32> to vector<2x32xf32>
    %380 = math.tanh %379 : vector<2x32xf32>
    %381 = vector.extract_strided_slice %378 {offsets = [0, 32], sizes = [2, 32], strides = [1, 1]} : vector<2x96xf32> to vector<2x32xf32>
    %382 = arith.mulf %381, %335 : vector<2x32xf32>
    %383 = vector.extract_strided_slice %378 {offsets = [0, 0], sizes = [2, 32], strides = [1, 1]} : vector<2x96xf32> to vector<2x32xf32>
    %384 = arith.mulf %383, %380 : vector<2x32xf32>
    %385 = arith.addf %382, %384 : vector<2x32xf32>
    %386 = vector.extract_strided_slice %378 {offsets = [0, 64], sizes = [2, 32], strides = [1, 1]} : vector<2x96xf32> to vector<2x32xf32>
    %387 = math.tanh %385 : vector<2x32xf32>
    %388 = arith.mulf %386, %387 : vector<2x32xf32>
    %389 = vector.extract_strided_slice %24 {offsets = [4, 0], sizes = [2, 1], strides = [1, 1]} : vector<16x1xf32> to vector<2x1xf32>
    %390 = arith.subf %388, %331 : vector<2x32xf32>
    %391 = vector.broadcast %389 : vector<2x1xf32> to vector<2x32xf32>
    %392 = arith.mulf %391, %390 : vector<2x32xf32>
    %393 = arith.addf %331, %392 : vector<2x32xf32>
    %394 = arith.subf %385, %335 : vector<2x32xf32>
    %395 = vector.broadcast %389 : vector<2x1xf32> to vector<2x32xf32>
    %396 = arith.mulf %395, %394 : vector<2x32xf32>
    %397 = arith.addf %335, %396 : vector<2x32xf32>
    %398 = vector.broadcast %389 : vector<2x1xf32> to vector<2x32xf32>
    %399 = arith.mulf %398, %388 : vector<2x32xf32>
    %c4_73 = arith.constant 4 : index
    %c0_74 = arith.constant 0 : index
    %400 = vector.load %arg12[%c4_73, %c0_74] : memref<16x32xf32, #tpu.memory_space<vmem>>, vector<2x32xf32>
    tpu.vector_store %arg12[%c4_73, %c0_74], %399 {strides = array<i32>} : memref<16x32xf32, #tpu.memory_space<vmem>>, vector<2x32xf32>,
    %401 = vector.extract_strided_slice %14 {offsets = [12, 0], sizes = [2, 128], strides = [1, 1]} : vector<16x128xf32> to vector<2x128xf32>
    %cst_75 = arith.constant dense<0.000000e+00> : vector<2x128xf32>
    %402 = tpu.matmul %362, %20, %cst_75 {dimension_numbers = #tpu.dot_dimension_numbers<[1], [0], [0], [1], [0, 0, 1, 1], [], []>} : vector<2x32xf32>, vector<32x128xf32>, vector<2x128xf32> -> vector<2x128xf32>
    %403 = arith.addf %401, %402 : vector<2x128xf32>
    %404 = vector.extract_strided_slice %403 {offsets = [0, 0], sizes = [2, 96], strides = [1, 1]} : vector<2x128xf32> to vector<2x96xf32>
    %405 = arith.negf %404 : vector<2x96xf32>
    %406 = math.exp %405 : vector<2x96xf32>
    %cst_76 = arith.constant 1.000000e+00 : f32
    %407 = vector.broadcast %cst_76 : f32 to vector<2x96xf32>
    %408 = arith.addf %407, %406 : vector<2x96xf32>
    %409 = arith.divf %407, %408 : vector<2x96xf32>
    %410 = vector.extract_strided_slice %403 {offsets = [0, 96], sizes = [2, 32], strides = [1, 1]} : vector<2x128xf32> to vector<2x32xf32>
    %411 = math.tanh %410 : vector<2x32xf32>
    %412 = vector.extract_strided_slice %409 {offsets = [0, 32], sizes = [2, 32], strides = [1, 1]} : vector<2x96xf32> to vector<2x32xf32>
    %413 = arith.mulf %412, %366 : vector<2x32xf32>
    %414 = vector.extract_strided_slice %409 {offsets = [0, 0], sizes = [2, 32], strides = [1, 1]} : vector<2x96xf32> to vector<2x32xf32>
    %415 = arith.mulf %414, %411 : vector<2x32xf32>
    %416 = arith.addf %413, %415 : vector<2x32xf32>
    %417 = vector.extract_strided_slice %409 {offsets = [0, 64], sizes = [2, 32], strides = [1, 1]} : vector<2x96xf32> to vector<2x32xf32>
    %418 = math.tanh %416 : vector<2x32xf32>
    %419 = arith.mulf %417, %418 : vector<2x32xf32>
    %420 = vector.extract_strided_slice %23 {offsets = [12, 0], sizes = [2, 1], strides = [1, 1]} : vector<16x1xf32> to vector<2x1xf32>
    %421 = arith.subf %419, %362 : vector<2x32xf32>
    %422 = vector.broadcast %420 : vector<2x1xf32> to vector<2x32xf32>
    %423 = arith.mulf %422, %421 : vector<2x32xf32>
    %424 = arith.addf %362, %423 : vector<2x32xf32>
    %425 = arith.subf %416, %366 : vector<2x32xf32>
    %426 = vector.broadcast %420 : vector<2x1xf32> to vector<2x32xf32>
    %427 = arith.mulf %426, %425 : vector<2x32xf32>
    %428 = arith.addf %366, %427 : vector<2x32xf32>
    %429 = vector.broadcast %420 : vector<2x1xf32> to vector<2x32xf32>
    %430 = arith.mulf %429, %419 : vector<2x32xf32>
    %c12_77 = arith.constant 12 : index
    %c0_78 = arith.constant 0 : index
    %431 = vector.load %arg11[%c12_77, %c0_78] : memref<16x32xf32, #tpu.memory_space<vmem>>, vector<2x32xf32>
    tpu.vector_store %arg11[%c12_77, %c0_78], %430 {strides = array<i32>} : memref<16x32xf32, #tpu.memory_space<vmem>>, vector<2x32xf32>,
    %432 = vector.extract_strided_slice %18 {offsets = [2, 0], sizes = [2, 128], strides = [1, 1]} : vector<16x128xf32> to vector<2x128xf32>
    %cst_79 = arith.constant dense<0.000000e+00> : vector<2x128xf32>
    %433 = tpu.matmul %393, %22, %cst_79 {dimension_numbers = #tpu.dot_dimension_numbers<[1], [0], [0], [1], [0, 0, 1, 1], [], []>} : vector<2x32xf32>, vector<32x128xf32>, vector<2x128xf32> -> vector<2x128xf32>
    %434 = arith.addf %432, %433 : vector<2x128xf32>
    %435 = vector.extract_strided_slice %434 {offsets = [0, 0], sizes = [2, 96], strides = [1, 1]} : vector<2x128xf32> to vector<2x96xf32>
    %436 = arith.negf %435 : vector<2x96xf32>
    %437 = math.exp %436 : vector<2x96xf32>
    %cst_80 = arith.constant 1.000000e+00 : f32
    %438 = vector.broadcast %cst_80 : f32 to vector<2x96xf32>
    %439 = arith.addf %438, %437 : vector<2x96xf32>
    %440 = arith.divf %438, %439 : vector<2x96xf32>
    %441 = vector.extract_strided_slice %434 {offsets = [0, 96], sizes = [2, 32], strides = [1, 1]} : vector<2x128xf32> to vector<2x32xf32>
    %442 = math.tanh %441 : vector<2x32xf32>
    %443 = vector.extract_strided_slice %440 {offsets = [0, 32], sizes = [2, 32], strides = [1, 1]} : vector<2x96xf32> to vector<2x32xf32>
    %444 = arith.mulf %443, %397 : vector<2x32xf32>
    %445 = vector.extract_strided_slice %440 {offsets = [0, 0], sizes = [2, 32], strides = [1, 1]} : vector<2x96xf32> to vector<2x32xf32>
    %446 = arith.mulf %445, %442 : vector<2x32xf32>
    %447 = arith.addf %444, %446 : vector<2x32xf32>
    %448 = vector.extract_strided_slice %440 {offsets = [0, 64], sizes = [2, 32], strides = [1, 1]} : vector<2x96xf32> to vector<2x32xf32>
    %449 = math.tanh %447 : vector<2x32xf32>
    %450 = arith.mulf %448, %449 : vector<2x32xf32>
    %451 = vector.extract_strided_slice %24 {offsets = [2, 0], sizes = [2, 1], strides = [1, 1]} : vector<16x1xf32> to vector<2x1xf32>
    %452 = arith.subf %450, %393 : vector<2x32xf32>
    %453 = vector.broadcast %451 : vector<2x1xf32> to vector<2x32xf32>
    %454 = arith.mulf %453, %452 : vector<2x32xf32>
    %455 = arith.addf %393, %454 : vector<2x32xf32>
    %456 = arith.subf %447, %397 : vector<2x32xf32>
    %457 = vector.broadcast %451 : vector<2x1xf32> to vector<2x32xf32>
    %458 = arith.mulf %457, %456 : vector<2x32xf32>
    %459 = arith.addf %397, %458 : vector<2x32xf32>
    %460 = vector.broadcast %451 : vector<2x1xf32> to vector<2x32xf32>
    %461 = arith.mulf %460, %450 : vector<2x32xf32>
    %c2_81 = arith.constant 2 : index
    %c0_82 = arith.constant 0 : index
    %462 = vector.load %arg12[%c2_81, %c0_82] : memref<16x32xf32, #tpu.memory_space<vmem>>, vector<2x32xf32>
    tpu.vector_store %arg12[%c2_81, %c0_82], %461 {strides = array<i32>} : memref<16x32xf32, #tpu.memory_space<vmem>>, vector<2x32xf32>,
    %463 = vector.extract_strided_slice %14 {offsets = [14, 0], sizes = [2, 128], strides = [1, 1]} : vector<16x128xf32> to vector<2x128xf32>
    %cst_83 = arith.constant dense<0.000000e+00> : vector<2x128xf32>
    %464 = tpu.matmul %424, %20, %cst_83 {dimension_numbers = #tpu.dot_dimension_numbers<[1], [0], [0], [1], [0, 0, 1, 1], [], []>} : vector<2x32xf32>, vector<32x128xf32>, vector<2x128xf32> -> vector<2x128xf32>
    %465 = arith.addf %463, %464 : vector<2x128xf32>
    %466 = vector.extract_strided_slice %465 {offsets = [0, 0], sizes = [2, 96], strides = [1, 1]} : vector<2x128xf32> to vector<2x96xf32>
    %467 = arith.negf %466 : vector<2x96xf32>
    %468 = math.exp %467 : vector<2x96xf32>
    %cst_84 = arith.constant 1.000000e+00 : f32
    %469 = vector.broadcast %cst_84 : f32 to vector<2x96xf32>
    %470 = arith.addf %469, %468 : vector<2x96xf32>
    %471 = arith.divf %469, %470 : vector<2x96xf32>
    %472 = vector.extract_strided_slice %465 {offsets = [0, 96], sizes = [2, 32], strides = [1, 1]} : vector<2x128xf32> to vector<2x32xf32>
    %473 = math.tanh %472 : vector<2x32xf32>
    %474 = vector.extract_strided_slice %471 {offsets = [0, 32], sizes = [2, 32], strides = [1, 1]} : vector<2x96xf32> to vector<2x32xf32>
    %475 = arith.mulf %474, %428 : vector<2x32xf32>
    %476 = vector.extract_strided_slice %471 {offsets = [0, 0], sizes = [2, 32], strides = [1, 1]} : vector<2x96xf32> to vector<2x32xf32>
    %477 = arith.mulf %476, %473 : vector<2x32xf32>
    %478 = arith.addf %475, %477 : vector<2x32xf32>
    %479 = vector.extract_strided_slice %471 {offsets = [0, 64], sizes = [2, 32], strides = [1, 1]} : vector<2x96xf32> to vector<2x32xf32>
    %480 = math.tanh %478 : vector<2x32xf32>
    %481 = arith.mulf %479, %480 : vector<2x32xf32>
    %482 = vector.extract_strided_slice %23 {offsets = [14, 0], sizes = [2, 1], strides = [1, 1]} : vector<16x1xf32> to vector<2x1xf32>
    %483 = arith.subf %481, %424 : vector<2x32xf32>
    %484 = vector.broadcast %482 : vector<2x1xf32> to vector<2x32xf32>
    %485 = arith.mulf %484, %483 : vector<2x32xf32>
    %486 = arith.addf %424, %485 : vector<2x32xf32>
    %487 = arith.subf %478, %428 : vector<2x32xf32>
    %488 = vector.broadcast %482 : vector<2x1xf32> to vector<2x32xf32>
    %489 = arith.mulf %488, %487 : vector<2x32xf32>
    %490 = arith.addf %428, %489 : vector<2x32xf32>
    %491 = vector.broadcast %482 : vector<2x1xf32> to vector<2x32xf32>
    %492 = arith.mulf %491, %481 : vector<2x32xf32>
    %c14_85 = arith.constant 14 : index
    %c0_86 = arith.constant 0 : index
    %493 = vector.load %arg11[%c14_85, %c0_86] : memref<16x32xf32, #tpu.memory_space<vmem>>, vector<2x32xf32>
    tpu.vector_store %arg11[%c14_85, %c0_86], %492 {strides = array<i32>} : memref<16x32xf32, #tpu.memory_space<vmem>>, vector<2x32xf32>,
    %494 = vector.extract_strided_slice %18 {offsets = [0, 0], sizes = [2, 128], strides = [1, 1]} : vector<16x128xf32> to vector<2x128xf32>
    %cst_87 = arith.constant dense<0.000000e+00> : vector<2x128xf32>
    %495 = tpu.matmul %455, %22, %cst_87 {dimension_numbers = #tpu.dot_dimension_numbers<[1], [0], [0], [1], [0, 0, 1, 1], [], []>} : vector<2x32xf32>, vector<32x128xf32>, vector<2x128xf32> -> vector<2x128xf32>
    %496 = arith.addf %494, %495 : vector<2x128xf32>
    %497 = vector.extract_strided_slice %496 {offsets = [0, 0], sizes = [2, 96], strides = [1, 1]} : vector<2x128xf32> to vector<2x96xf32>
    %498 = arith.negf %497 : vector<2x96xf32>
    %499 = math.exp %498 : vector<2x96xf32>
    %cst_88 = arith.constant 1.000000e+00 : f32
    %500 = vector.broadcast %cst_88 : f32 to vector<2x96xf32>
    %501 = arith.addf %500, %499 : vector<2x96xf32>
    %502 = arith.divf %500, %501 : vector<2x96xf32>
    %503 = vector.extract_strided_slice %496 {offsets = [0, 96], sizes = [2, 32], strides = [1, 1]} : vector<2x128xf32> to vector<2x32xf32>
    %504 = math.tanh %503 : vector<2x32xf32>
    %505 = vector.extract_strided_slice %502 {offsets = [0, 32], sizes = [2, 32], strides = [1, 1]} : vector<2x96xf32> to vector<2x32xf32>
    %506 = arith.mulf %505, %459 : vector<2x32xf32>
    %507 = vector.extract_strided_slice %502 {offsets = [0, 0], sizes = [2, 32], strides = [1, 1]} : vector<2x96xf32> to vector<2x32xf32>
    %508 = arith.mulf %507, %504 : vector<2x32xf32>
    %509 = arith.addf %506, %508 : vector<2x32xf32>
    %510 = vector.extract_strided_slice %502 {offsets = [0, 64], sizes = [2, 32], strides = [1, 1]} : vector<2x96xf32> to vector<2x32xf32>
    %511 = math.tanh %509 : vector<2x32xf32>
    %512 = arith.mulf %510, %511 : vector<2x32xf32>
    %513 = vector.extract_strided_slice %24 {offsets = [0, 0], sizes = [2, 1], strides = [1, 1]} : vector<16x1xf32> to vector<2x1xf32>
    %514 = arith.subf %512, %455 : vector<2x32xf32>
    %515 = vector.broadcast %513 : vector<2x1xf32> to vector<2x32xf32>
    %516 = arith.mulf %515, %514 : vector<2x32xf32>
    %517 = arith.addf %455, %516 : vector<2x32xf32>
    %518 = arith.subf %509, %459 : vector<2x32xf32>
    %519 = vector.broadcast %513 : vector<2x1xf32> to vector<2x32xf32>
    %520 = arith.mulf %519, %518 : vector<2x32xf32>
    %521 = arith.addf %459, %520 : vector<2x32xf32>
    %522 = vector.broadcast %513 : vector<2x1xf32> to vector<2x32xf32>
    %523 = arith.mulf %522, %512 : vector<2x32xf32>
    %c0_89 = arith.constant 0 : index
    %c0_90 = arith.constant 0 : index
    %524 = vector.load %arg12[%c0_89, %c0_90] : memref<16x32xf32, #tpu.memory_space<vmem>>, vector<2x32xf32>
    tpu.vector_store %arg12[%c0_89, %c0_90], %523 {strides = array<i32>} : memref<16x32xf32, #tpu.memory_space<vmem>>, vector<2x32xf32>,
    %c0_91 = arith.constant 0 : index
    %c0_92 = arith.constant 0 : index
    %525 = vector.load %arg14[%c0_91, %c0_92] : memref<2x32xf32, #tpu.memory_space<vmem>>, vector<2x32xf32>
    tpu.vector_store %arg14[%c0_91, %c0_92], %486 {strides = array<i32>} : memref<2x32xf32, #tpu.memory_space<vmem>>, vector<2x32xf32>,
    %c0_93 = arith.constant 0 : index
    %c0_94 = arith.constant 0 : index
    %526 = vector.load %arg15[%c0_93, %c0_94] : memref<2x32xf32, #tpu.memory_space<vmem>>, vector<2x32xf32>
    tpu.vector_store %arg15[%c0_93, %c0_94], %490 {strides = array<i32>} : memref<2x32xf32, #tpu.memory_space<vmem>>, vector<2x32xf32>,
    %c0_95 = arith.constant 0 : index
    %c0_96 = arith.constant 0 : index
    %527 = vector.load %arg16[%c0_95, %c0_96] : memref<2x32xf32, #tpu.memory_space<vmem>>, vector<2x32xf32>
    tpu.vector_store %arg16[%c0_95, %c0_96], %517 {strides = array<i32>} : memref<2x32xf32, #tpu.memory_space<vmem>>, vector<2x32xf32>,
    %c0_97 = arith.constant 0 : index
    %c0_98 = arith.constant 0 : index
    %528 = vector.load %arg17[%c0_97, %c0_98] : memref<2x32xf32, #tpu.memory_space<vmem>>, vector<2x32xf32>
    tpu.vector_store %arg17[%c0_97, %c0_98], %521 {strides = array<i32>} : memref<2x32xf32, #tpu.memory_space<vmem>>, vector<2x32xf32>,
    %c0_99 = arith.constant 0 : index
    %c0_100 = arith.constant 0 : index
    %c0_101 = arith.constant 0 : index
    %529 = vector.load %arg13[%c0_99, %c0_100, %c0_101] : memref<2x2x32xf32, #tpu.memory_space<vmem>>, vector<1x2x32xf32>
    %530 = vector.shape_cast %529 : vector<1x2x32xf32> to vector<2x32xf32>
    %531 = vector.shape_cast %486 : vector<2x32xf32> to vector<1x2x32xf32>
    tpu.vector_store %arg13[%c0_99, %c0_100, %c0_101], %531 {strides = array<i32>} : memref<2x2x32xf32, #tpu.memory_space<vmem>>, vector<1x2x32xf32>,
    %c1_102 = arith.constant 1 : index
    %c0_103 = arith.constant 0 : index
    %c0_104 = arith.constant 0 : index
    %532 = vector.load %arg13[%c1_102, %c0_103, %c0_104] : memref<2x2x32xf32, #tpu.memory_space<vmem>>, vector<1x2x32xf32>
    %533 = vector.shape_cast %532 : vector<1x2x32xf32> to vector<2x32xf32>
    %534 = vector.shape_cast %517 : vector<2x32xf32> to vector<1x2x32xf32>
    tpu.vector_store %arg13[%c1_102, %c0_103, %c0_104], %534 {strides = array<i32>} : memref<2x2x32xf32, #tpu.memory_space<vmem>>, vector<1x2x32xf32>,
    return
  }
  func.func @transform_0(%arg0: i32) -> (i32, i32) {
    %c0_i32 = arith.constant 0 : i32
    %c0_i32_0 = arith.constant 0 : i32
    return %arg0, %c0_i32 : i32, i32
  }
  func.func @transform_1(%arg0: i32) -> (i32, i32) {
    %c0_i32 = arith.constant 0 : i32
    %0 = arith.subi %c0_i32, %arg0 : i32
    %c0_i32_0 = arith.constant 0 : i32
    %c0_i32_1 = arith.constant 0 : i32
    return %0, %c0_i32_0 : i32, i32
  }
  func.func @transform_2(%arg0: i32) -> (i32, i32, i32) {
    %c0_i32 = arith.constant 0 : i32
    %c0_i32_0 = arith.constant 0 : i32
    %c0_i32_1 = arith.constant 0 : i32
    %c0_i32_2 = arith.constant 0 : i32
    return %c0_i32, %c0_i32_0, %c0_i32_1 : i32, i32, i32
  }
  func.func @transform_3(%arg0: i32) -> (i32, i32, i32) {
    %c0_i32 = arith.constant 0 : i32
    %c0_i32_0 = arith.constant 0 : i32
    %c0_i32_1 = arith.constant 0 : i32
    %c0_i32_2 = arith.constant 0 : i32
    return %c0_i32, %c0_i32_0, %c0_i32_1 : i32, i32, i32
  }
  func.func @transform_4(%arg0: i32) -> (i32, i32, i32) {
    %c0_i32 = arith.constant 0 : i32
    %c0_i32_0 = arith.constant 0 : i32
    %c0_i32_1 = arith.constant 0 : i32
    %c0_i32_2 = arith.constant 0 : i32
    return %c0_i32, %c0_i32_0, %c0_i32_1 : i32, i32, i32
  }
  func.func @transform_5(%arg0: i32) -> (i32, i32, i32) {
    %c0_i32 = arith.constant 0 : i32
    %c0_i32_0 = arith.constant 0 : i32
    %c0_i32_1 = arith.constant 0 : i32
    %c0_i32_2 = arith.constant 0 : i32
    return %c0_i32, %c0_i32_0, %c0_i32_1 : i32, i32, i32
  }
  func.func @transform_6(%arg0: i32) -> (i32, i32) {
    %c0_i32 = arith.constant 0 : i32
    %c0_i32_0 = arith.constant 0 : i32
    return %arg0, %c0_i32 : i32, i32
  }
  func.func @transform_7(%arg0: i32) -> (i32, i32) {
    %c0_i32 = arith.constant 0 : i32
    %0 = arith.subi %c0_i32, %arg0 : i32
    %c0_i32_0 = arith.constant 0 : i32
    %c0_i32_1 = arith.constant 0 : i32
    return %0, %c0_i32_0 : i32, i32
  }
  func.func @transform_8(%arg0: i32) -> (i32, i32, i32) {
    %c0_i32 = arith.constant 0 : i32
    %c0_i32_0 = arith.constant 0 : i32
    %c0_i32_1 = arith.constant 0 : i32
    %c0_i32_2 = arith.constant 0 : i32
    return %c0_i32, %c0_i32_0, %c0_i32_1 : i32, i32, i32
  }
  func.func @transform_9(%arg0: i32) -> (i32, i32, i32) {
    %c0_i32 = arith.constant 0 : i32
    %c0_i32_0 = arith.constant 0 : i32
    %c0_i32_1 = arith.constant 0 : i32
    %c0_i32_2 = arith.constant 0 : i32
    return %c0_i32, %c0_i32_0, %c0_i32_1 : i32, i32, i32
  }
  func.func @transform_10(%arg0: i32) -> (i32, i32) {
    %c0_i32 = arith.constant 0 : i32
    %c0_i32_0 = arith.constant 0 : i32
    return %arg0, %c0_i32 : i32, i32
  }
  func.func @transform_11(%arg0: i32) -> (i32, i32) {
    %c0_i32 = arith.constant 0 : i32
    %0 = arith.subi %c0_i32, %arg0 : i32
    %c0_i32_0 = arith.constant 0 : i32
    %c0_i32_1 = arith.constant 0 : i32
    return %0, %c0_i32_0 : i32, i32
  }
  func.func @transform_12(%arg0: i32) -> (i32, i32, i32) {
    %c0_i32 = arith.constant 0 : i32
    %c0_i32_0 = arith.constant 0 : i32
    %c0_i32_1 = arith.constant 0 : i32
    %c0_i32_2 = arith.constant 0 : i32
    return %c0_i32, %c0_i32_0, %c0_i32_1 : i32, i32, i32
  }
}

module attributes {stable_mosaic.version = 11 : i64} {
  func.func @kernel(%arg0: i32, %arg1: memref<16x32xf32, #tpu.memory_space<vmem>>, %arg2: memref<16x32xf32, #tpu.memory_space<vmem>>, %arg3: memref<16x32xf32, #tpu.memory_space<vmem>>, %arg4: memref<16x32xf32, #tpu.memory_space<vmem>>, %arg5: memref<2x32x128xf32, #tpu.memory_space<vmem>>, %arg6: memref<2x32x128xf32, #tpu.memory_space<vmem>>, %arg7: memref<2x32x128xf32, #tpu.memory_space<vmem>>, %arg8: memref<2x1x128xf32, #tpu.memory_space<vmem>>, %arg9: memref<16x1xf32, #tpu.memory_space<vmem>>, %arg10: memref<16x1xf32, #tpu.memory_space<vmem>>, %arg11: memref<2x2x32xf32, #tpu.memory_space<vmem>>, %arg12: memref<2x2x32xf32, #tpu.memory_space<vmem>>, %arg13: memref<16x32xf32, #tpu.memory_space<vmem>>, %arg14: memref<16x32xf32, #tpu.memory_space<vmem>>, %arg15: memref<2x2x32xf32, #tpu.memory_space<vmem>>, %arg16: memref<2x32xf32, #tpu.memory_space<vmem>>, %arg17: memref<2x32xf32, #tpu.memory_space<vmem>>, %arg18: memref<2x32xf32, #tpu.memory_space<vmem>>, %arg19: memref<2x32xf32, #tpu.memory_space<vmem>>) attributes {dimension_semantics = [#tpu.dimension_semantics<arbitrary>], iteration_bounds = array<i64: 1>, scalar_prefetch = 0 : i64, scratch_operands = 4 : i64, tpu.core_type = #tpu.core_type<tc>, window_params = [{transform_indices = @transform_0, window_bounds = array<i64: 16, 32>}, {transform_indices = @transform_1, window_bounds = array<i64: 16, 32>}, {transform_indices = @transform_2, window_bounds = array<i64: 16, 32>}, {transform_indices = @transform_3, window_bounds = array<i64: 16, 32>}, {pipeline_mode = #tpu.pipeline_mode<synchronous>, transform_indices = @transform_4, window_bounds = array<i64: 2, 32, 128>}, {pipeline_mode = #tpu.pipeline_mode<synchronous>, transform_indices = @transform_5, window_bounds = array<i64: 2, 32, 128>}, {pipeline_mode = #tpu.pipeline_mode<synchronous>, transform_indices = @transform_6, window_bounds = array<i64: 2, 32, 128>}, {pipeline_mode = #tpu.pipeline_mode<synchronous>, transform_indices = @transform_7, window_bounds = array<i64: 2, 1, 128>}, {transform_indices = @transform_8, window_bounds = array<i64: 16, 1>}, {transform_indices = @transform_9, window_bounds = array<i64: 16, 1>}, {pipeline_mode = #tpu.pipeline_mode<synchronous>, transform_indices = @transform_10, window_bounds = array<i64: 2, 2, 32>}, {pipeline_mode = #tpu.pipeline_mode<synchronous>, transform_indices = @transform_11, window_bounds = array<i64: 2, 2, 32>}, {transform_indices = @transform_12, window_bounds = array<i64: 16, 32>}, {transform_indices = @transform_13, window_bounds = array<i64: 16, 32>}, {pipeline_mode = #tpu.pipeline_mode<synchronous>, transform_indices = @transform_14, window_bounds = array<i64: 2, 2, 32>}]} {
    %c0_i32 = arith.constant 0 : i32
    %0 = arith.cmpi eq, %arg0, %c0_i32 : i32
    %1 = arith.extui %0 : i1 to i32
    %c0_i32_0 = arith.constant 0 : i32
    %2 = arith.cmpi ne, %1, %c0_i32_0 : i32
    scf.if %2 {
      %c0_117 = arith.constant 0 : index
      %c0_118 = arith.constant 0 : index
      %c0_119 = arith.constant 0 : index
      %545 = vector.load %arg11[%c0_117, %c0_118, %c0_119] : memref<2x2x32xf32, #tpu.memory_space<vmem>>, vector<1x2x32xf32>
      %546 = vector.shape_cast %545 : vector<1x2x32xf32> to vector<2x32xf32>
      %c0_120 = arith.constant 0 : index
      %c0_121 = arith.constant 0 : index
      %547 = vector.load %arg16[%c0_120, %c0_121] : memref<2x32xf32, #tpu.memory_space<vmem>>, vector<2x32xf32>
      tpu.vector_store %arg16[%c0_120, %c0_121], %546 {strides = array<i32>} : memref<2x32xf32, #tpu.memory_space<vmem>>, vector<2x32xf32>,
      %c0_122 = arith.constant 0 : index
      %c0_123 = arith.constant 0 : index
      %c0_124 = arith.constant 0 : index
      %548 = vector.load %arg12[%c0_122, %c0_123, %c0_124] : memref<2x2x32xf32, #tpu.memory_space<vmem>>, vector<1x2x32xf32>
      %549 = vector.shape_cast %548 : vector<1x2x32xf32> to vector<2x32xf32>
      %c0_125 = arith.constant 0 : index
      %c0_126 = arith.constant 0 : index
      %550 = vector.load %arg17[%c0_125, %c0_126] : memref<2x32xf32, #tpu.memory_space<vmem>>, vector<2x32xf32>
      tpu.vector_store %arg17[%c0_125, %c0_126], %549 {strides = array<i32>} : memref<2x32xf32, #tpu.memory_space<vmem>>, vector<2x32xf32>,
      %c1_127 = arith.constant 1 : index
      %c0_128 = arith.constant 0 : index
      %c0_129 = arith.constant 0 : index
      %551 = vector.load %arg11[%c1_127, %c0_128, %c0_129] : memref<2x2x32xf32, #tpu.memory_space<vmem>>, vector<1x2x32xf32>
      %552 = vector.shape_cast %551 : vector<1x2x32xf32> to vector<2x32xf32>
      %c0_130 = arith.constant 0 : index
      %c0_131 = arith.constant 0 : index
      %553 = vector.load %arg18[%c0_130, %c0_131] : memref<2x32xf32, #tpu.memory_space<vmem>>, vector<2x32xf32>
      tpu.vector_store %arg18[%c0_130, %c0_131], %552 {strides = array<i32>} : memref<2x32xf32, #tpu.memory_space<vmem>>, vector<2x32xf32>,
      %c1_132 = arith.constant 1 : index
      %c0_133 = arith.constant 0 : index
      %c0_134 = arith.constant 0 : index
      %554 = vector.load %arg12[%c1_132, %c0_133, %c0_134] : memref<2x2x32xf32, #tpu.memory_space<vmem>>, vector<1x2x32xf32>
      %555 = vector.shape_cast %554 : vector<1x2x32xf32> to vector<2x32xf32>
      %c0_135 = arith.constant 0 : index
      %c0_136 = arith.constant 0 : index
      %556 = vector.load %arg19[%c0_135, %c0_136] : memref<2x32xf32, #tpu.memory_space<vmem>>, vector<2x32xf32>
      tpu.vector_store %arg19[%c0_135, %c0_136], %555 {strides = array<i32>} : memref<2x32xf32, #tpu.memory_space<vmem>>, vector<2x32xf32>,
    } else {
    }
    %c0 = arith.constant 0 : index
    %c0_1 = arith.constant 0 : index
    %3 = vector.load %arg1[%c0, %c0_1] : memref<16x32xf32, #tpu.memory_space<vmem>>, vector<16x32xf32>
    %c0_2 = arith.constant 0 : index
    %c0_3 = arith.constant 0 : index
    %c0_4 = arith.constant 0 : index
    %4 = vector.load %arg5[%c0_2, %c0_3, %c0_4] : memref<2x32x128xf32, #tpu.memory_space<vmem>>, vector<1x32x128xf32>
    %5 = vector.shape_cast %4 : vector<1x32x128xf32> to vector<32x128xf32>
    %cst = arith.constant dense<0.000000e+00> : vector<16x128xf32>
    %6 = tpu.matmul %3, %5, %cst {dimension_numbers = #tpu.dot_dimension_numbers<[1], [0], [0], [1], [0, 0, 1, 1], [], []>} : vector<16x32xf32>, vector<32x128xf32>, vector<16x128xf32> -> vector<16x128xf32>
    %c0_5 = arith.constant 0 : index
    %c0_6 = arith.constant 0 : index
    %7 = vector.load %arg3[%c0_5, %c0_6] : memref<16x32xf32, #tpu.memory_space<vmem>>, vector<16x32xf32>
    %c0_7 = arith.constant 0 : index
    %c0_8 = arith.constant 0 : index
    %c0_9 = arith.constant 0 : index
    %8 = vector.load %arg6[%c0_7, %c0_8, %c0_9] : memref<2x32x128xf32, #tpu.memory_space<vmem>>, vector<1x32x128xf32>
    %9 = vector.shape_cast %8 : vector<1x32x128xf32> to vector<32x128xf32>
    %cst_10 = arith.constant dense<0.000000e+00> : vector<16x128xf32>
    %10 = tpu.matmul %7, %9, %cst_10 {dimension_numbers = #tpu.dot_dimension_numbers<[1], [0], [0], [1], [0, 0, 1, 1], [], []>} : vector<16x32xf32>, vector<32x128xf32>, vector<16x128xf32> -> vector<16x128xf32>
    %c0_11 = arith.constant 0 : index
    %c0_12 = arith.constant 0 : index
    %11 = vector.load %arg2[%c0_11, %c0_12] : memref<16x32xf32, #tpu.memory_space<vmem>>, vector<16x32xf32>
    %c1 = arith.constant 1 : index
    %c0_13 = arith.constant 0 : index
    %c0_14 = arith.constant 0 : index
    %12 = vector.load %arg5[%c1, %c0_13, %c0_14] : memref<2x32x128xf32, #tpu.memory_space<vmem>>, vector<1x32x128xf32>
    %13 = vector.shape_cast %12 : vector<1x32x128xf32> to vector<32x128xf32>
    %cst_15 = arith.constant dense<0.000000e+00> : vector<16x128xf32>
    %14 = tpu.matmul %11, %13, %cst_15 {dimension_numbers = #tpu.dot_dimension_numbers<[1], [0], [0], [1], [0, 0, 1, 1], [], []>} : vector<16x32xf32>, vector<32x128xf32>, vector<16x128xf32> -> vector<16x128xf32>
    %15 = arith.addf %6, %14 : vector<16x128xf32>
    %c0_16 = arith.constant 0 : index
    %c0_17 = arith.constant 0 : index
    %16 = vector.load %arg4[%c0_16, %c0_17] : memref<16x32xf32, #tpu.memory_space<vmem>>, vector<16x32xf32>
    %c1_18 = arith.constant 1 : index
    %c0_19 = arith.constant 0 : index
    %c0_20 = arith.constant 0 : index
    %17 = vector.load %arg6[%c1_18, %c0_19, %c0_20] : memref<2x32x128xf32, #tpu.memory_space<vmem>>, vector<1x32x128xf32>
    %18 = vector.shape_cast %17 : vector<1x32x128xf32> to vector<32x128xf32>
    %cst_21 = arith.constant dense<0.000000e+00> : vector<16x128xf32>
    %19 = tpu.matmul %16, %18, %cst_21 {dimension_numbers = #tpu.dot_dimension_numbers<[1], [0], [0], [1], [0, 0, 1, 1], [], []>} : vector<16x32xf32>, vector<32x128xf32>, vector<16x128xf32> -> vector<16x128xf32>
    %20 = arith.addf %10, %19 : vector<16x128xf32>
    %c0_22 = arith.constant 0 : index
    %c0_23 = arith.constant 0 : index
    %c0_24 = arith.constant 0 : index
    %21 = vector.load %arg8[%c0_22, %c0_23, %c0_24] : memref<2x1x128xf32, #tpu.memory_space<vmem>>, vector<1x1x128xf32>
    %22 = vector.shape_cast %21 : vector<1x1x128xf32> to vector<1x128xf32>
    %23 = vector.broadcast %22 : vector<1x128xf32> to vector<16x128xf32>
    %24 = arith.addf %15, %23 : vector<16x128xf32>
    %c1_25 = arith.constant 1 : index
    %c0_26 = arith.constant 0 : index
    %c0_27 = arith.constant 0 : index
    %25 = vector.load %arg8[%c1_25, %c0_26, %c0_27] : memref<2x1x128xf32, #tpu.memory_space<vmem>>, vector<1x1x128xf32>
    %26 = vector.shape_cast %25 : vector<1x1x128xf32> to vector<1x128xf32>
    %27 = vector.broadcast %26 : vector<1x128xf32> to vector<16x128xf32>
    %28 = arith.addf %20, %27 : vector<16x128xf32>
    %c0_28 = arith.constant 0 : index
    %c0_29 = arith.constant 0 : index
    %c0_30 = arith.constant 0 : index
    %29 = vector.load %arg7[%c0_28, %c0_29, %c0_30] : memref<2x32x128xf32, #tpu.memory_space<vmem>>, vector<1x32x128xf32>
    %30 = vector.shape_cast %29 : vector<1x32x128xf32> to vector<32x128xf32>
    %c1_31 = arith.constant 1 : index
    %c0_32 = arith.constant 0 : index
    %c0_33 = arith.constant 0 : index
    %31 = vector.load %arg7[%c1_31, %c0_32, %c0_33] : memref<2x32x128xf32, #tpu.memory_space<vmem>>, vector<1x32x128xf32>
    %32 = vector.shape_cast %31 : vector<1x32x128xf32> to vector<32x128xf32>
    %c0_34 = arith.constant 0 : index
    %c0_35 = arith.constant 0 : index
    %33 = vector.load %arg9[%c0_34, %c0_35] : memref<16x1xf32, #tpu.memory_space<vmem>>, vector<16x1xf32>
    %c0_36 = arith.constant 0 : index
    %c0_37 = arith.constant 0 : index
    %34 = vector.load %arg10[%c0_36, %c0_37] : memref<16x1xf32, #tpu.memory_space<vmem>>, vector<16x1xf32>
    %c0_38 = arith.constant 0 : index
    %c0_39 = arith.constant 0 : index
    %35 = vector.load %arg16[%c0_38, %c0_39] : memref<2x32xf32, #tpu.memory_space<vmem>>, vector<2x32xf32>
    %c0_40 = arith.constant 0 : index
    %c0_41 = arith.constant 0 : index
    %36 = vector.load %arg17[%c0_40, %c0_41] : memref<2x32xf32, #tpu.memory_space<vmem>>, vector<2x32xf32>
    %c0_42 = arith.constant 0 : index
    %c0_43 = arith.constant 0 : index
    %37 = vector.load %arg18[%c0_42, %c0_43] : memref<2x32xf32, #tpu.memory_space<vmem>>, vector<2x32xf32>
    %c0_44 = arith.constant 0 : index
    %c0_45 = arith.constant 0 : index
    %38 = vector.load %arg19[%c0_44, %c0_45] : memref<2x32xf32, #tpu.memory_space<vmem>>, vector<2x32xf32>
    %39 = vector.extract_strided_slice %24 {offsets = [0, 0], sizes = [2, 128], strides = [1, 1]} : vector<16x128xf32> to vector<2x128xf32>
    %cst_46 = arith.constant dense<0.000000e+00> : vector<2x128xf32>
    %40 = tpu.matmul %35, %30, %cst_46 {dimension_numbers = #tpu.dot_dimension_numbers<[1], [0], [0], [1], [0, 0, 1, 1], [], []>} : vector<2x32xf32>, vector<32x128xf32>, vector<2x128xf32> -> vector<2x128xf32>
    %41 = arith.addf %39, %40 : vector<2x128xf32>
    %42 = vector.extract_strided_slice %41 {offsets = [0, 0], sizes = [2, 96], strides = [1, 1]} : vector<2x128xf32> to vector<2x96xf32>
    %43 = arith.negf %42 : vector<2x96xf32>
    %44 = math.exp %43 : vector<2x96xf32>
    %cst_47 = arith.constant 1.000000e+00 : f32
    %45 = vector.broadcast %cst_47 : f32 to vector<2x96xf32>
    %46 = arith.addf %45, %44 : vector<2x96xf32>
    %47 = arith.divf %45, %46 : vector<2x96xf32>
    %48 = vector.extract_strided_slice %41 {offsets = [0, 96], sizes = [2, 32], strides = [1, 1]} : vector<2x128xf32> to vector<2x32xf32>
    %49 = math.tanh %48 : vector<2x32xf32>
    %50 = vector.extract_strided_slice %47 {offsets = [0, 32], sizes = [2, 32], strides = [1, 1]} : vector<2x96xf32> to vector<2x32xf32>
    %51 = arith.mulf %50, %36 : vector<2x32xf32>
    %52 = vector.extract_strided_slice %47 {offsets = [0, 0], sizes = [2, 32], strides = [1, 1]} : vector<2x96xf32> to vector<2x32xf32>
    %53 = arith.mulf %52, %49 : vector<2x32xf32>
    %54 = arith.addf %51, %53 : vector<2x32xf32>
    %55 = vector.extract_strided_slice %47 {offsets = [0, 64], sizes = [2, 32], strides = [1, 1]} : vector<2x96xf32> to vector<2x32xf32>
    %56 = math.tanh %54 : vector<2x32xf32>
    %57 = arith.mulf %55, %56 : vector<2x32xf32>
    %58 = vector.extract_strided_slice %33 {offsets = [0, 0], sizes = [2, 1], strides = [1, 1]} : vector<16x1xf32> to vector<2x1xf32>
    %59 = arith.subf %57, %35 : vector<2x32xf32>
    %60 = vector.broadcast %58 : vector<2x1xf32> to vector<2x32xf32>
    %61 = arith.mulf %60, %59 : vector<2x32xf32>
    %62 = arith.addf %35, %61 : vector<2x32xf32>
    %63 = arith.subf %54, %36 : vector<2x32xf32>
    %64 = vector.broadcast %58 : vector<2x1xf32> to vector<2x32xf32>
    %65 = arith.mulf %64, %63 : vector<2x32xf32>
    %66 = arith.addf %36, %65 : vector<2x32xf32>
    %67 = vector.broadcast %58 : vector<2x1xf32> to vector<2x32xf32>
    %68 = arith.mulf %67, %57 : vector<2x32xf32>
    %c0_48 = arith.constant 0 : index
    %c0_49 = arith.constant 0 : index
    %69 = vector.load %arg13[%c0_48, %c0_49] : memref<16x32xf32, #tpu.memory_space<vmem>>, vector<2x32xf32>
    tpu.vector_store %arg13[%c0_48, %c0_49], %68 {strides = array<i32>} : memref<16x32xf32, #tpu.memory_space<vmem>>, vector<2x32xf32>,
    %70 = vector.extract_strided_slice %28 {offsets = [14, 0], sizes = [2, 128], strides = [1, 1]} : vector<16x128xf32> to vector<2x128xf32>
    %cst_50 = arith.constant dense<0.000000e+00> : vector<2x128xf32>
    %71 = tpu.matmul %37, %32, %cst_50 {dimension_numbers = #tpu.dot_dimension_numbers<[1], [0], [0], [1], [0, 0, 1, 1], [], []>} : vector<2x32xf32>, vector<32x128xf32>, vector<2x128xf32> -> vector<2x128xf32>
    %72 = arith.addf %70, %71 : vector<2x128xf32>
    %73 = vector.extract_strided_slice %72 {offsets = [0, 0], sizes = [2, 96], strides = [1, 1]} : vector<2x128xf32> to vector<2x96xf32>
    %74 = arith.negf %73 : vector<2x96xf32>
    %75 = math.exp %74 : vector<2x96xf32>
    %cst_51 = arith.constant 1.000000e+00 : f32
    %76 = vector.broadcast %cst_51 : f32 to vector<2x96xf32>
    %77 = arith.addf %76, %75 : vector<2x96xf32>
    %78 = arith.divf %76, %77 : vector<2x96xf32>
    %79 = vector.extract_strided_slice %72 {offsets = [0, 96], sizes = [2, 32], strides = [1, 1]} : vector<2x128xf32> to vector<2x32xf32>
    %80 = math.tanh %79 : vector<2x32xf32>
    %81 = vector.extract_strided_slice %78 {offsets = [0, 32], sizes = [2, 32], strides = [1, 1]} : vector<2x96xf32> to vector<2x32xf32>
    %82 = arith.mulf %81, %38 : vector<2x32xf32>
    %83 = vector.extract_strided_slice %78 {offsets = [0, 0], sizes = [2, 32], strides = [1, 1]} : vector<2x96xf32> to vector<2x32xf32>
    %84 = arith.mulf %83, %80 : vector<2x32xf32>
    %85 = arith.addf %82, %84 : vector<2x32xf32>
    %86 = vector.extract_strided_slice %78 {offsets = [0, 64], sizes = [2, 32], strides = [1, 1]} : vector<2x96xf32> to vector<2x32xf32>
    %87 = math.tanh %85 : vector<2x32xf32>
    %88 = arith.mulf %86, %87 : vector<2x32xf32>
    %89 = vector.extract_strided_slice %34 {offsets = [14, 0], sizes = [2, 1], strides = [1, 1]} : vector<16x1xf32> to vector<2x1xf32>
    %90 = arith.subf %88, %37 : vector<2x32xf32>
    %91 = vector.broadcast %89 : vector<2x1xf32> to vector<2x32xf32>
    %92 = arith.mulf %91, %90 : vector<2x32xf32>
    %93 = arith.addf %37, %92 : vector<2x32xf32>
    %94 = arith.subf %85, %38 : vector<2x32xf32>
    %95 = vector.broadcast %89 : vector<2x1xf32> to vector<2x32xf32>
    %96 = arith.mulf %95, %94 : vector<2x32xf32>
    %97 = arith.addf %38, %96 : vector<2x32xf32>
    %98 = vector.broadcast %89 : vector<2x1xf32> to vector<2x32xf32>
    %99 = arith.mulf %98, %88 : vector<2x32xf32>
    %c14 = arith.constant 14 : index
    %c0_52 = arith.constant 0 : index
    %100 = vector.load %arg14[%c14, %c0_52] : memref<16x32xf32, #tpu.memory_space<vmem>>, vector<2x32xf32>
    tpu.vector_store %arg14[%c14, %c0_52], %99 {strides = array<i32>} : memref<16x32xf32, #tpu.memory_space<vmem>>, vector<2x32xf32>,
    %101 = vector.extract_strided_slice %24 {offsets = [2, 0], sizes = [2, 128], strides = [1, 1]} : vector<16x128xf32> to vector<2x128xf32>
    %cst_53 = arith.constant dense<0.000000e+00> : vector<2x128xf32>
    %102 = tpu.matmul %62, %30, %cst_53 {dimension_numbers = #tpu.dot_dimension_numbers<[1], [0], [0], [1], [0, 0, 1, 1], [], []>} : vector<2x32xf32>, vector<32x128xf32>, vector<2x128xf32> -> vector<2x128xf32>
    %103 = arith.addf %101, %102 : vector<2x128xf32>
    %104 = vector.extract_strided_slice %103 {offsets = [0, 0], sizes = [2, 96], strides = [1, 1]} : vector<2x128xf32> to vector<2x96xf32>
    %105 = arith.negf %104 : vector<2x96xf32>
    %106 = math.exp %105 : vector<2x96xf32>
    %cst_54 = arith.constant 1.000000e+00 : f32
    %107 = vector.broadcast %cst_54 : f32 to vector<2x96xf32>
    %108 = arith.addf %107, %106 : vector<2x96xf32>
    %109 = arith.divf %107, %108 : vector<2x96xf32>
    %110 = vector.extract_strided_slice %103 {offsets = [0, 96], sizes = [2, 32], strides = [1, 1]} : vector<2x128xf32> to vector<2x32xf32>
    %111 = math.tanh %110 : vector<2x32xf32>
    %112 = vector.extract_strided_slice %109 {offsets = [0, 32], sizes = [2, 32], strides = [1, 1]} : vector<2x96xf32> to vector<2x32xf32>
    %113 = arith.mulf %112, %66 : vector<2x32xf32>
    %114 = vector.extract_strided_slice %109 {offsets = [0, 0], sizes = [2, 32], strides = [1, 1]} : vector<2x96xf32> to vector<2x32xf32>
    %115 = arith.mulf %114, %111 : vector<2x32xf32>
    %116 = arith.addf %113, %115 : vector<2x32xf32>
    %117 = vector.extract_strided_slice %109 {offsets = [0, 64], sizes = [2, 32], strides = [1, 1]} : vector<2x96xf32> to vector<2x32xf32>
    %118 = math.tanh %116 : vector<2x32xf32>
    %119 = arith.mulf %117, %118 : vector<2x32xf32>
    %120 = vector.extract_strided_slice %33 {offsets = [2, 0], sizes = [2, 1], strides = [1, 1]} : vector<16x1xf32> to vector<2x1xf32>
    %121 = arith.subf %119, %62 : vector<2x32xf32>
    %122 = vector.broadcast %120 : vector<2x1xf32> to vector<2x32xf32>
    %123 = arith.mulf %122, %121 : vector<2x32xf32>
    %124 = arith.addf %62, %123 : vector<2x32xf32>
    %125 = arith.subf %116, %66 : vector<2x32xf32>
    %126 = vector.broadcast %120 : vector<2x1xf32> to vector<2x32xf32>
    %127 = arith.mulf %126, %125 : vector<2x32xf32>
    %128 = arith.addf %66, %127 : vector<2x32xf32>
    %129 = vector.broadcast %120 : vector<2x1xf32> to vector<2x32xf32>
    %130 = arith.mulf %129, %119 : vector<2x32xf32>
    %c2 = arith.constant 2 : index
    %c0_55 = arith.constant 0 : index
    %131 = vector.load %arg13[%c2, %c0_55] : memref<16x32xf32, #tpu.memory_space<vmem>>, vector<2x32xf32>
    tpu.vector_store %arg13[%c2, %c0_55], %130 {strides = array<i32>} : memref<16x32xf32, #tpu.memory_space<vmem>>, vector<2x32xf32>,
    %132 = vector.extract_strided_slice %28 {offsets = [12, 0], sizes = [2, 128], strides = [1, 1]} : vector<16x128xf32> to vector<2x128xf32>
    %cst_56 = arith.constant dense<0.000000e+00> : vector<2x128xf32>
    %133 = tpu.matmul %93, %32, %cst_56 {dimension_numbers = #tpu.dot_dimension_numbers<[1], [0], [0], [1], [0, 0, 1, 1], [], []>} : vector<2x32xf32>, vector<32x128xf32>, vector<2x128xf32> -> vector<2x128xf32>
    %134 = arith.addf %132, %133 : vector<2x128xf32>
    %135 = vector.extract_strided_slice %134 {offsets = [0, 0], sizes = [2, 96], strides = [1, 1]} : vector<2x128xf32> to vector<2x96xf32>
    %136 = arith.negf %135 : vector<2x96xf32>
    %137 = math.exp %136 : vector<2x96xf32>
    %cst_57 = arith.constant 1.000000e+00 : f32
    %138 = vector.broadcast %cst_57 : f32 to vector<2x96xf32>
    %139 = arith.addf %138, %137 : vector<2x96xf32>
    %140 = arith.divf %138, %139 : vector<2x96xf32>
    %141 = vector.extract_strided_slice %134 {offsets = [0, 96], sizes = [2, 32], strides = [1, 1]} : vector<2x128xf32> to vector<2x32xf32>
    %142 = math.tanh %141 : vector<2x32xf32>
    %143 = vector.extract_strided_slice %140 {offsets = [0, 32], sizes = [2, 32], strides = [1, 1]} : vector<2x96xf32> to vector<2x32xf32>
    %144 = arith.mulf %143, %97 : vector<2x32xf32>
    %145 = vector.extract_strided_slice %140 {offsets = [0, 0], sizes = [2, 32], strides = [1, 1]} : vector<2x96xf32> to vector<2x32xf32>
    %146 = arith.mulf %145, %142 : vector<2x32xf32>
    %147 = arith.addf %144, %146 : vector<2x32xf32>
    %148 = vector.extract_strided_slice %140 {offsets = [0, 64], sizes = [2, 32], strides = [1, 1]} : vector<2x96xf32> to vector<2x32xf32>
    %149 = math.tanh %147 : vector<2x32xf32>
    %150 = arith.mulf %148, %149 : vector<2x32xf32>
    %151 = vector.extract_strided_slice %34 {offsets = [12, 0], sizes = [2, 1], strides = [1, 1]} : vector<16x1xf32> to vector<2x1xf32>
    %152 = arith.subf %150, %93 : vector<2x32xf32>
    %153 = vector.broadcast %151 : vector<2x1xf32> to vector<2x32xf32>
    %154 = arith.mulf %153, %152 : vector<2x32xf32>
    %155 = arith.addf %93, %154 : vector<2x32xf32>
    %156 = arith.subf %147, %97 : vector<2x32xf32>
    %157 = vector.broadcast %151 : vector<2x1xf32> to vector<2x32xf32>
    %158 = arith.mulf %157, %156 : vector<2x32xf32>
    %159 = arith.addf %97, %158 : vector<2x32xf32>
    %160 = vector.broadcast %151 : vector<2x1xf32> to vector<2x32xf32>
    %161 = arith.mulf %160, %150 : vector<2x32xf32>
    %c12 = arith.constant 12 : index
    %c0_58 = arith.constant 0 : index
    %162 = vector.load %arg14[%c12, %c0_58] : memref<16x32xf32, #tpu.memory_space<vmem>>, vector<2x32xf32>
    tpu.vector_store %arg14[%c12, %c0_58], %161 {strides = array<i32>} : memref<16x32xf32, #tpu.memory_space<vmem>>, vector<2x32xf32>,
    %163 = vector.extract_strided_slice %24 {offsets = [4, 0], sizes = [2, 128], strides = [1, 1]} : vector<16x128xf32> to vector<2x128xf32>
    %cst_59 = arith.constant dense<0.000000e+00> : vector<2x128xf32>
    %164 = tpu.matmul %124, %30, %cst_59 {dimension_numbers = #tpu.dot_dimension_numbers<[1], [0], [0], [1], [0, 0, 1, 1], [], []>} : vector<2x32xf32>, vector<32x128xf32>, vector<2x128xf32> -> vector<2x128xf32>
    %165 = arith.addf %163, %164 : vector<2x128xf32>
    %166 = vector.extract_strided_slice %165 {offsets = [0, 0], sizes = [2, 96], strides = [1, 1]} : vector<2x128xf32> to vector<2x96xf32>
    %167 = arith.negf %166 : vector<2x96xf32>
    %168 = math.exp %167 : vector<2x96xf32>
    %cst_60 = arith.constant 1.000000e+00 : f32
    %169 = vector.broadcast %cst_60 : f32 to vector<2x96xf32>
    %170 = arith.addf %169, %168 : vector<2x96xf32>
    %171 = arith.divf %169, %170 : vector<2x96xf32>
    %172 = vector.extract_strided_slice %165 {offsets = [0, 96], sizes = [2, 32], strides = [1, 1]} : vector<2x128xf32> to vector<2x32xf32>
    %173 = math.tanh %172 : vector<2x32xf32>
    %174 = vector.extract_strided_slice %171 {offsets = [0, 32], sizes = [2, 32], strides = [1, 1]} : vector<2x96xf32> to vector<2x32xf32>
    %175 = arith.mulf %174, %128 : vector<2x32xf32>
    %176 = vector.extract_strided_slice %171 {offsets = [0, 0], sizes = [2, 32], strides = [1, 1]} : vector<2x96xf32> to vector<2x32xf32>
    %177 = arith.mulf %176, %173 : vector<2x32xf32>
    %178 = arith.addf %175, %177 : vector<2x32xf32>
    %179 = vector.extract_strided_slice %171 {offsets = [0, 64], sizes = [2, 32], strides = [1, 1]} : vector<2x96xf32> to vector<2x32xf32>
    %180 = math.tanh %178 : vector<2x32xf32>
    %181 = arith.mulf %179, %180 : vector<2x32xf32>
    %182 = vector.extract_strided_slice %33 {offsets = [4, 0], sizes = [2, 1], strides = [1, 1]} : vector<16x1xf32> to vector<2x1xf32>
    %183 = arith.subf %181, %124 : vector<2x32xf32>
    %184 = vector.broadcast %182 : vector<2x1xf32> to vector<2x32xf32>
    %185 = arith.mulf %184, %183 : vector<2x32xf32>
    %186 = arith.addf %124, %185 : vector<2x32xf32>
    %187 = arith.subf %178, %128 : vector<2x32xf32>
    %188 = vector.broadcast %182 : vector<2x1xf32> to vector<2x32xf32>
    %189 = arith.mulf %188, %187 : vector<2x32xf32>
    %190 = arith.addf %128, %189 : vector<2x32xf32>
    %191 = vector.broadcast %182 : vector<2x1xf32> to vector<2x32xf32>
    %192 = arith.mulf %191, %181 : vector<2x32xf32>
    %c4 = arith.constant 4 : index
    %c0_61 = arith.constant 0 : index
    %193 = vector.load %arg13[%c4, %c0_61] : memref<16x32xf32, #tpu.memory_space<vmem>>, vector<2x32xf32>
    tpu.vector_store %arg13[%c4, %c0_61], %192 {strides = array<i32>} : memref<16x32xf32, #tpu.memory_space<vmem>>, vector<2x32xf32>,
    %194 = vector.extract_strided_slice %28 {offsets = [10, 0], sizes = [2, 128], strides = [1, 1]} : vector<16x128xf32> to vector<2x128xf32>
    %cst_62 = arith.constant dense<0.000000e+00> : vector<2x128xf32>
    %195 = tpu.matmul %155, %32, %cst_62 {dimension_numbers = #tpu.dot_dimension_numbers<[1], [0], [0], [1], [0, 0, 1, 1], [], []>} : vector<2x32xf32>, vector<32x128xf32>, vector<2x128xf32> -> vector<2x128xf32>
    %196 = arith.addf %194, %195 : vector<2x128xf32>
    %197 = vector.extract_strided_slice %196 {offsets = [0, 0], sizes = [2, 96], strides = [1, 1]} : vector<2x128xf32> to vector<2x96xf32>
    %198 = arith.negf %197 : vector<2x96xf32>
    %199 = math.exp %198 : vector<2x96xf32>
    %cst_63 = arith.constant 1.000000e+00 : f32
    %200 = vector.broadcast %cst_63 : f32 to vector<2x96xf32>
    %201 = arith.addf %200, %199 : vector<2x96xf32>
    %202 = arith.divf %200, %201 : vector<2x96xf32>
    %203 = vector.extract_strided_slice %196 {offsets = [0, 96], sizes = [2, 32], strides = [1, 1]} : vector<2x128xf32> to vector<2x32xf32>
    %204 = math.tanh %203 : vector<2x32xf32>
    %205 = vector.extract_strided_slice %202 {offsets = [0, 32], sizes = [2, 32], strides = [1, 1]} : vector<2x96xf32> to vector<2x32xf32>
    %206 = arith.mulf %205, %159 : vector<2x32xf32>
    %207 = vector.extract_strided_slice %202 {offsets = [0, 0], sizes = [2, 32], strides = [1, 1]} : vector<2x96xf32> to vector<2x32xf32>
    %208 = arith.mulf %207, %204 : vector<2x32xf32>
    %209 = arith.addf %206, %208 : vector<2x32xf32>
    %210 = vector.extract_strided_slice %202 {offsets = [0, 64], sizes = [2, 32], strides = [1, 1]} : vector<2x96xf32> to vector<2x32xf32>
    %211 = math.tanh %209 : vector<2x32xf32>
    %212 = arith.mulf %210, %211 : vector<2x32xf32>
    %213 = vector.extract_strided_slice %34 {offsets = [10, 0], sizes = [2, 1], strides = [1, 1]} : vector<16x1xf32> to vector<2x1xf32>
    %214 = arith.subf %212, %155 : vector<2x32xf32>
    %215 = vector.broadcast %213 : vector<2x1xf32> to vector<2x32xf32>
    %216 = arith.mulf %215, %214 : vector<2x32xf32>
    %217 = arith.addf %155, %216 : vector<2x32xf32>
    %218 = arith.subf %209, %159 : vector<2x32xf32>
    %219 = vector.broadcast %213 : vector<2x1xf32> to vector<2x32xf32>
    %220 = arith.mulf %219, %218 : vector<2x32xf32>
    %221 = arith.addf %159, %220 : vector<2x32xf32>
    %222 = vector.broadcast %213 : vector<2x1xf32> to vector<2x32xf32>
    %223 = arith.mulf %222, %212 : vector<2x32xf32>
    %c10 = arith.constant 10 : index
    %c0_64 = arith.constant 0 : index
    %224 = vector.load %arg14[%c10, %c0_64] : memref<16x32xf32, #tpu.memory_space<vmem>>, vector<2x32xf32>
    tpu.vector_store %arg14[%c10, %c0_64], %223 {strides = array<i32>} : memref<16x32xf32, #tpu.memory_space<vmem>>, vector<2x32xf32>,
    %225 = vector.extract_strided_slice %24 {offsets = [6, 0], sizes = [2, 128], strides = [1, 1]} : vector<16x128xf32> to vector<2x128xf32>
    %cst_65 = arith.constant dense<0.000000e+00> : vector<2x128xf32>
    %226 = tpu.matmul %186, %30, %cst_65 {dimension_numbers = #tpu.dot_dimension_numbers<[1], [0], [0], [1], [0, 0, 1, 1], [], []>} : vector<2x32xf32>, vector<32x128xf32>, vector<2x128xf32> -> vector<2x128xf32>
    %227 = arith.addf %225, %226 : vector<2x128xf32>
    %228 = vector.extract_strided_slice %227 {offsets = [0, 0], sizes = [2, 96], strides = [1, 1]} : vector<2x128xf32> to vector<2x96xf32>
    %229 = arith.negf %228 : vector<2x96xf32>
    %230 = math.exp %229 : vector<2x96xf32>
    %cst_66 = arith.constant 1.000000e+00 : f32
    %231 = vector.broadcast %cst_66 : f32 to vector<2x96xf32>
    %232 = arith.addf %231, %230 : vector<2x96xf32>
    %233 = arith.divf %231, %232 : vector<2x96xf32>
    %234 = vector.extract_strided_slice %227 {offsets = [0, 96], sizes = [2, 32], strides = [1, 1]} : vector<2x128xf32> to vector<2x32xf32>
    %235 = math.tanh %234 : vector<2x32xf32>
    %236 = vector.extract_strided_slice %233 {offsets = [0, 32], sizes = [2, 32], strides = [1, 1]} : vector<2x96xf32> to vector<2x32xf32>
    %237 = arith.mulf %236, %190 : vector<2x32xf32>
    %238 = vector.extract_strided_slice %233 {offsets = [0, 0], sizes = [2, 32], strides = [1, 1]} : vector<2x96xf32> to vector<2x32xf32>
    %239 = arith.mulf %238, %235 : vector<2x32xf32>
    %240 = arith.addf %237, %239 : vector<2x32xf32>
    %241 = vector.extract_strided_slice %233 {offsets = [0, 64], sizes = [2, 32], strides = [1, 1]} : vector<2x96xf32> to vector<2x32xf32>
    %242 = math.tanh %240 : vector<2x32xf32>
    %243 = arith.mulf %241, %242 : vector<2x32xf32>
    %244 = vector.extract_strided_slice %33 {offsets = [6, 0], sizes = [2, 1], strides = [1, 1]} : vector<16x1xf32> to vector<2x1xf32>
    %245 = arith.subf %243, %186 : vector<2x32xf32>
    %246 = vector.broadcast %244 : vector<2x1xf32> to vector<2x32xf32>
    %247 = arith.mulf %246, %245 : vector<2x32xf32>
    %248 = arith.addf %186, %247 : vector<2x32xf32>
    %249 = arith.subf %240, %190 : vector<2x32xf32>
    %250 = vector.broadcast %244 : vector<2x1xf32> to vector<2x32xf32>
    %251 = arith.mulf %250, %249 : vector<2x32xf32>
    %252 = arith.addf %190, %251 : vector<2x32xf32>
    %253 = vector.broadcast %244 : vector<2x1xf32> to vector<2x32xf32>
    %254 = arith.mulf %253, %243 : vector<2x32xf32>
    %c6 = arith.constant 6 : index
    %c0_67 = arith.constant 0 : index
    %255 = vector.load %arg13[%c6, %c0_67] : memref<16x32xf32, #tpu.memory_space<vmem>>, vector<2x32xf32>
    tpu.vector_store %arg13[%c6, %c0_67], %254 {strides = array<i32>} : memref<16x32xf32, #tpu.memory_space<vmem>>, vector<2x32xf32>,
    %256 = vector.extract_strided_slice %28 {offsets = [8, 0], sizes = [2, 128], strides = [1, 1]} : vector<16x128xf32> to vector<2x128xf32>
    %cst_68 = arith.constant dense<0.000000e+00> : vector<2x128xf32>
    %257 = tpu.matmul %217, %32, %cst_68 {dimension_numbers = #tpu.dot_dimension_numbers<[1], [0], [0], [1], [0, 0, 1, 1], [], []>} : vector<2x32xf32>, vector<32x128xf32>, vector<2x128xf32> -> vector<2x128xf32>
    %258 = arith.addf %256, %257 : vector<2x128xf32>
    %259 = vector.extract_strided_slice %258 {offsets = [0, 0], sizes = [2, 96], strides = [1, 1]} : vector<2x128xf32> to vector<2x96xf32>
    %260 = arith.negf %259 : vector<2x96xf32>
    %261 = math.exp %260 : vector<2x96xf32>
    %cst_69 = arith.constant 1.000000e+00 : f32
    %262 = vector.broadcast %cst_69 : f32 to vector<2x96xf32>
    %263 = arith.addf %262, %261 : vector<2x96xf32>
    %264 = arith.divf %262, %263 : vector<2x96xf32>
    %265 = vector.extract_strided_slice %258 {offsets = [0, 96], sizes = [2, 32], strides = [1, 1]} : vector<2x128xf32> to vector<2x32xf32>
    %266 = math.tanh %265 : vector<2x32xf32>
    %267 = vector.extract_strided_slice %264 {offsets = [0, 32], sizes = [2, 32], strides = [1, 1]} : vector<2x96xf32> to vector<2x32xf32>
    %268 = arith.mulf %267, %221 : vector<2x32xf32>
    %269 = vector.extract_strided_slice %264 {offsets = [0, 0], sizes = [2, 32], strides = [1, 1]} : vector<2x96xf32> to vector<2x32xf32>
    %270 = arith.mulf %269, %266 : vector<2x32xf32>
    %271 = arith.addf %268, %270 : vector<2x32xf32>
    %272 = vector.extract_strided_slice %264 {offsets = [0, 64], sizes = [2, 32], strides = [1, 1]} : vector<2x96xf32> to vector<2x32xf32>
    %273 = math.tanh %271 : vector<2x32xf32>
    %274 = arith.mulf %272, %273 : vector<2x32xf32>
    %275 = vector.extract_strided_slice %34 {offsets = [8, 0], sizes = [2, 1], strides = [1, 1]} : vector<16x1xf32> to vector<2x1xf32>
    %276 = arith.subf %274, %217 : vector<2x32xf32>
    %277 = vector.broadcast %275 : vector<2x1xf32> to vector<2x32xf32>
    %278 = arith.mulf %277, %276 : vector<2x32xf32>
    %279 = arith.addf %217, %278 : vector<2x32xf32>
    %280 = arith.subf %271, %221 : vector<2x32xf32>
    %281 = vector.broadcast %275 : vector<2x1xf32> to vector<2x32xf32>
    %282 = arith.mulf %281, %280 : vector<2x32xf32>
    %283 = arith.addf %221, %282 : vector<2x32xf32>
    %284 = vector.broadcast %275 : vector<2x1xf32> to vector<2x32xf32>
    %285 = arith.mulf %284, %274 : vector<2x32xf32>
    %c8 = arith.constant 8 : index
    %c0_70 = arith.constant 0 : index
    %286 = vector.load %arg14[%c8, %c0_70] : memref<16x32xf32, #tpu.memory_space<vmem>>, vector<2x32xf32>
    tpu.vector_store %arg14[%c8, %c0_70], %285 {strides = array<i32>} : memref<16x32xf32, #tpu.memory_space<vmem>>, vector<2x32xf32>,
    %287 = vector.extract_strided_slice %24 {offsets = [8, 0], sizes = [2, 128], strides = [1, 1]} : vector<16x128xf32> to vector<2x128xf32>
    %cst_71 = arith.constant dense<0.000000e+00> : vector<2x128xf32>
    %288 = tpu.matmul %248, %30, %cst_71 {dimension_numbers = #tpu.dot_dimension_numbers<[1], [0], [0], [1], [0, 0, 1, 1], [], []>} : vector<2x32xf32>, vector<32x128xf32>, vector<2x128xf32> -> vector<2x128xf32>
    %289 = arith.addf %287, %288 : vector<2x128xf32>
    %290 = vector.extract_strided_slice %289 {offsets = [0, 0], sizes = [2, 96], strides = [1, 1]} : vector<2x128xf32> to vector<2x96xf32>
    %291 = arith.negf %290 : vector<2x96xf32>
    %292 = math.exp %291 : vector<2x96xf32>
    %cst_72 = arith.constant 1.000000e+00 : f32
    %293 = vector.broadcast %cst_72 : f32 to vector<2x96xf32>
    %294 = arith.addf %293, %292 : vector<2x96xf32>
    %295 = arith.divf %293, %294 : vector<2x96xf32>
    %296 = vector.extract_strided_slice %289 {offsets = [0, 96], sizes = [2, 32], strides = [1, 1]} : vector<2x128xf32> to vector<2x32xf32>
    %297 = math.tanh %296 : vector<2x32xf32>
    %298 = vector.extract_strided_slice %295 {offsets = [0, 32], sizes = [2, 32], strides = [1, 1]} : vector<2x96xf32> to vector<2x32xf32>
    %299 = arith.mulf %298, %252 : vector<2x32xf32>
    %300 = vector.extract_strided_slice %295 {offsets = [0, 0], sizes = [2, 32], strides = [1, 1]} : vector<2x96xf32> to vector<2x32xf32>
    %301 = arith.mulf %300, %297 : vector<2x32xf32>
    %302 = arith.addf %299, %301 : vector<2x32xf32>
    %303 = vector.extract_strided_slice %295 {offsets = [0, 64], sizes = [2, 32], strides = [1, 1]} : vector<2x96xf32> to vector<2x32xf32>
    %304 = math.tanh %302 : vector<2x32xf32>
    %305 = arith.mulf %303, %304 : vector<2x32xf32>
    %306 = vector.extract_strided_slice %33 {offsets = [8, 0], sizes = [2, 1], strides = [1, 1]} : vector<16x1xf32> to vector<2x1xf32>
    %307 = arith.subf %305, %248 : vector<2x32xf32>
    %308 = vector.broadcast %306 : vector<2x1xf32> to vector<2x32xf32>
    %309 = arith.mulf %308, %307 : vector<2x32xf32>
    %310 = arith.addf %248, %309 : vector<2x32xf32>
    %311 = arith.subf %302, %252 : vector<2x32xf32>
    %312 = vector.broadcast %306 : vector<2x1xf32> to vector<2x32xf32>
    %313 = arith.mulf %312, %311 : vector<2x32xf32>
    %314 = arith.addf %252, %313 : vector<2x32xf32>
    %315 = vector.broadcast %306 : vector<2x1xf32> to vector<2x32xf32>
    %316 = arith.mulf %315, %305 : vector<2x32xf32>
    %c8_73 = arith.constant 8 : index
    %c0_74 = arith.constant 0 : index
    %317 = vector.load %arg13[%c8_73, %c0_74] : memref<16x32xf32, #tpu.memory_space<vmem>>, vector<2x32xf32>
    tpu.vector_store %arg13[%c8_73, %c0_74], %316 {strides = array<i32>} : memref<16x32xf32, #tpu.memory_space<vmem>>, vector<2x32xf32>,
    %318 = vector.extract_strided_slice %28 {offsets = [6, 0], sizes = [2, 128], strides = [1, 1]} : vector<16x128xf32> to vector<2x128xf32>
    %cst_75 = arith.constant dense<0.000000e+00> : vector<2x128xf32>
    %319 = tpu.matmul %279, %32, %cst_75 {dimension_numbers = #tpu.dot_dimension_numbers<[1], [0], [0], [1], [0, 0, 1, 1], [], []>} : vector<2x32xf32>, vector<32x128xf32>, vector<2x128xf32> -> vector<2x128xf32>
    %320 = arith.addf %318, %319 : vector<2x128xf32>
    %321 = vector.extract_strided_slice %320 {offsets = [0, 0], sizes = [2, 96], strides = [1, 1]} : vector<2x128xf32> to vector<2x96xf32>
    %322 = arith.negf %321 : vector<2x96xf32>
    %323 = math.exp %322 : vector<2x96xf32>
    %cst_76 = arith.constant 1.000000e+00 : f32
    %324 = vector.broadcast %cst_76 : f32 to vector<2x96xf32>
    %325 = arith.addf %324, %323 : vector<2x96xf32>
    %326 = arith.divf %324, %325 : vector<2x96xf32>
    %327 = vector.extract_strided_slice %320 {offsets = [0, 96], sizes = [2, 32], strides = [1, 1]} : vector<2x128xf32> to vector<2x32xf32>
    %328 = math.tanh %327 : vector<2x32xf32>
    %329 = vector.extract_strided_slice %326 {offsets = [0, 32], sizes = [2, 32], strides = [1, 1]} : vector<2x96xf32> to vector<2x32xf32>
    %330 = arith.mulf %329, %283 : vector<2x32xf32>
    %331 = vector.extract_strided_slice %326 {offsets = [0, 0], sizes = [2, 32], strides = [1, 1]} : vector<2x96xf32> to vector<2x32xf32>
    %332 = arith.mulf %331, %328 : vector<2x32xf32>
    %333 = arith.addf %330, %332 : vector<2x32xf32>
    %334 = vector.extract_strided_slice %326 {offsets = [0, 64], sizes = [2, 32], strides = [1, 1]} : vector<2x96xf32> to vector<2x32xf32>
    %335 = math.tanh %333 : vector<2x32xf32>
    %336 = arith.mulf %334, %335 : vector<2x32xf32>
    %337 = vector.extract_strided_slice %34 {offsets = [6, 0], sizes = [2, 1], strides = [1, 1]} : vector<16x1xf32> to vector<2x1xf32>
    %338 = arith.subf %336, %279 : vector<2x32xf32>
    %339 = vector.broadcast %337 : vector<2x1xf32> to vector<2x32xf32>
    %340 = arith.mulf %339, %338 : vector<2x32xf32>
    %341 = arith.addf %279, %340 : vector<2x32xf32>
    %342 = arith.subf %333, %283 : vector<2x32xf32>
    %343 = vector.broadcast %337 : vector<2x1xf32> to vector<2x32xf32>
    %344 = arith.mulf %343, %342 : vector<2x32xf32>
    %345 = arith.addf %283, %344 : vector<2x32xf32>
    %346 = vector.broadcast %337 : vector<2x1xf32> to vector<2x32xf32>
    %347 = arith.mulf %346, %336 : vector<2x32xf32>
    %c6_77 = arith.constant 6 : index
    %c0_78 = arith.constant 0 : index
    %348 = vector.load %arg14[%c6_77, %c0_78] : memref<16x32xf32, #tpu.memory_space<vmem>>, vector<2x32xf32>
    tpu.vector_store %arg14[%c6_77, %c0_78], %347 {strides = array<i32>} : memref<16x32xf32, #tpu.memory_space<vmem>>, vector<2x32xf32>,
    %349 = vector.extract_strided_slice %24 {offsets = [10, 0], sizes = [2, 128], strides = [1, 1]} : vector<16x128xf32> to vector<2x128xf32>
    %cst_79 = arith.constant dense<0.000000e+00> : vector<2x128xf32>
    %350 = tpu.matmul %310, %30, %cst_79 {dimension_numbers = #tpu.dot_dimension_numbers<[1], [0], [0], [1], [0, 0, 1, 1], [], []>} : vector<2x32xf32>, vector<32x128xf32>, vector<2x128xf32> -> vector<2x128xf32>
    %351 = arith.addf %349, %350 : vector<2x128xf32>
    %352 = vector.extract_strided_slice %351 {offsets = [0, 0], sizes = [2, 96], strides = [1, 1]} : vector<2x128xf32> to vector<2x96xf32>
    %353 = arith.negf %352 : vector<2x96xf32>
    %354 = math.exp %353 : vector<2x96xf32>
    %cst_80 = arith.constant 1.000000e+00 : f32
    %355 = vector.broadcast %cst_80 : f32 to vector<2x96xf32>
    %356 = arith.addf %355, %354 : vector<2x96xf32>
    %357 = arith.divf %355, %356 : vector<2x96xf32>
    %358 = vector.extract_strided_slice %351 {offsets = [0, 96], sizes = [2, 32], strides = [1, 1]} : vector<2x128xf32> to vector<2x32xf32>
    %359 = math.tanh %358 : vector<2x32xf32>
    %360 = vector.extract_strided_slice %357 {offsets = [0, 32], sizes = [2, 32], strides = [1, 1]} : vector<2x96xf32> to vector<2x32xf32>
    %361 = arith.mulf %360, %314 : vector<2x32xf32>
    %362 = vector.extract_strided_slice %357 {offsets = [0, 0], sizes = [2, 32], strides = [1, 1]} : vector<2x96xf32> to vector<2x32xf32>
    %363 = arith.mulf %362, %359 : vector<2x32xf32>
    %364 = arith.addf %361, %363 : vector<2x32xf32>
    %365 = vector.extract_strided_slice %357 {offsets = [0, 64], sizes = [2, 32], strides = [1, 1]} : vector<2x96xf32> to vector<2x32xf32>
    %366 = math.tanh %364 : vector<2x32xf32>
    %367 = arith.mulf %365, %366 : vector<2x32xf32>
    %368 = vector.extract_strided_slice %33 {offsets = [10, 0], sizes = [2, 1], strides = [1, 1]} : vector<16x1xf32> to vector<2x1xf32>
    %369 = arith.subf %367, %310 : vector<2x32xf32>
    %370 = vector.broadcast %368 : vector<2x1xf32> to vector<2x32xf32>
    %371 = arith.mulf %370, %369 : vector<2x32xf32>
    %372 = arith.addf %310, %371 : vector<2x32xf32>
    %373 = arith.subf %364, %314 : vector<2x32xf32>
    %374 = vector.broadcast %368 : vector<2x1xf32> to vector<2x32xf32>
    %375 = arith.mulf %374, %373 : vector<2x32xf32>
    %376 = arith.addf %314, %375 : vector<2x32xf32>
    %377 = vector.broadcast %368 : vector<2x1xf32> to vector<2x32xf32>
    %378 = arith.mulf %377, %367 : vector<2x32xf32>
    %c10_81 = arith.constant 10 : index
    %c0_82 = arith.constant 0 : index
    %379 = vector.load %arg13[%c10_81, %c0_82] : memref<16x32xf32, #tpu.memory_space<vmem>>, vector<2x32xf32>
    tpu.vector_store %arg13[%c10_81, %c0_82], %378 {strides = array<i32>} : memref<16x32xf32, #tpu.memory_space<vmem>>, vector<2x32xf32>,
    %380 = vector.extract_strided_slice %28 {offsets = [4, 0], sizes = [2, 128], strides = [1, 1]} : vector<16x128xf32> to vector<2x128xf32>
    %cst_83 = arith.constant dense<0.000000e+00> : vector<2x128xf32>
    %381 = tpu.matmul %341, %32, %cst_83 {dimension_numbers = #tpu.dot_dimension_numbers<[1], [0], [0], [1], [0, 0, 1, 1], [], []>} : vector<2x32xf32>, vector<32x128xf32>, vector<2x128xf32> -> vector<2x128xf32>
    %382 = arith.addf %380, %381 : vector<2x128xf32>
    %383 = vector.extract_strided_slice %382 {offsets = [0, 0], sizes = [2, 96], strides = [1, 1]} : vector<2x128xf32> to vector<2x96xf32>
    %384 = arith.negf %383 : vector<2x96xf32>
    %385 = math.exp %384 : vector<2x96xf32>
    %cst_84 = arith.constant 1.000000e+00 : f32
    %386 = vector.broadcast %cst_84 : f32 to vector<2x96xf32>
    %387 = arith.addf %386, %385 : vector<2x96xf32>
    %388 = arith.divf %386, %387 : vector<2x96xf32>
    %389 = vector.extract_strided_slice %382 {offsets = [0, 96], sizes = [2, 32], strides = [1, 1]} : vector<2x128xf32> to vector<2x32xf32>
    %390 = math.tanh %389 : vector<2x32xf32>
    %391 = vector.extract_strided_slice %388 {offsets = [0, 32], sizes = [2, 32], strides = [1, 1]} : vector<2x96xf32> to vector<2x32xf32>
    %392 = arith.mulf %391, %345 : vector<2x32xf32>
    %393 = vector.extract_strided_slice %388 {offsets = [0, 0], sizes = [2, 32], strides = [1, 1]} : vector<2x96xf32> to vector<2x32xf32>
    %394 = arith.mulf %393, %390 : vector<2x32xf32>
    %395 = arith.addf %392, %394 : vector<2x32xf32>
    %396 = vector.extract_strided_slice %388 {offsets = [0, 64], sizes = [2, 32], strides = [1, 1]} : vector<2x96xf32> to vector<2x32xf32>
    %397 = math.tanh %395 : vector<2x32xf32>
    %398 = arith.mulf %396, %397 : vector<2x32xf32>
    %399 = vector.extract_strided_slice %34 {offsets = [4, 0], sizes = [2, 1], strides = [1, 1]} : vector<16x1xf32> to vector<2x1xf32>
    %400 = arith.subf %398, %341 : vector<2x32xf32>
    %401 = vector.broadcast %399 : vector<2x1xf32> to vector<2x32xf32>
    %402 = arith.mulf %401, %400 : vector<2x32xf32>
    %403 = arith.addf %341, %402 : vector<2x32xf32>
    %404 = arith.subf %395, %345 : vector<2x32xf32>
    %405 = vector.broadcast %399 : vector<2x1xf32> to vector<2x32xf32>
    %406 = arith.mulf %405, %404 : vector<2x32xf32>
    %407 = arith.addf %345, %406 : vector<2x32xf32>
    %408 = vector.broadcast %399 : vector<2x1xf32> to vector<2x32xf32>
    %409 = arith.mulf %408, %398 : vector<2x32xf32>
    %c4_85 = arith.constant 4 : index
    %c0_86 = arith.constant 0 : index
    %410 = vector.load %arg14[%c4_85, %c0_86] : memref<16x32xf32, #tpu.memory_space<vmem>>, vector<2x32xf32>
    tpu.vector_store %arg14[%c4_85, %c0_86], %409 {strides = array<i32>} : memref<16x32xf32, #tpu.memory_space<vmem>>, vector<2x32xf32>,
    %411 = vector.extract_strided_slice %24 {offsets = [12, 0], sizes = [2, 128], strides = [1, 1]} : vector<16x128xf32> to vector<2x128xf32>
    %cst_87 = arith.constant dense<0.000000e+00> : vector<2x128xf32>
    %412 = tpu.matmul %372, %30, %cst_87 {dimension_numbers = #tpu.dot_dimension_numbers<[1], [0], [0], [1], [0, 0, 1, 1], [], []>} : vector<2x32xf32>, vector<32x128xf32>, vector<2x128xf32> -> vector<2x128xf32>
    %413 = arith.addf %411, %412 : vector<2x128xf32>
    %414 = vector.extract_strided_slice %413 {offsets = [0, 0], sizes = [2, 96], strides = [1, 1]} : vector<2x128xf32> to vector<2x96xf32>
    %415 = arith.negf %414 : vector<2x96xf32>
    %416 = math.exp %415 : vector<2x96xf32>
    %cst_88 = arith.constant 1.000000e+00 : f32
    %417 = vector.broadcast %cst_88 : f32 to vector<2x96xf32>
    %418 = arith.addf %417, %416 : vector<2x96xf32>
    %419 = arith.divf %417, %418 : vector<2x96xf32>
    %420 = vector.extract_strided_slice %413 {offsets = [0, 96], sizes = [2, 32], strides = [1, 1]} : vector<2x128xf32> to vector<2x32xf32>
    %421 = math.tanh %420 : vector<2x32xf32>
    %422 = vector.extract_strided_slice %419 {offsets = [0, 32], sizes = [2, 32], strides = [1, 1]} : vector<2x96xf32> to vector<2x32xf32>
    %423 = arith.mulf %422, %376 : vector<2x32xf32>
    %424 = vector.extract_strided_slice %419 {offsets = [0, 0], sizes = [2, 32], strides = [1, 1]} : vector<2x96xf32> to vector<2x32xf32>
    %425 = arith.mulf %424, %421 : vector<2x32xf32>
    %426 = arith.addf %423, %425 : vector<2x32xf32>
    %427 = vector.extract_strided_slice %419 {offsets = [0, 64], sizes = [2, 32], strides = [1, 1]} : vector<2x96xf32> to vector<2x32xf32>
    %428 = math.tanh %426 : vector<2x32xf32>
    %429 = arith.mulf %427, %428 : vector<2x32xf32>
    %430 = vector.extract_strided_slice %33 {offsets = [12, 0], sizes = [2, 1], strides = [1, 1]} : vector<16x1xf32> to vector<2x1xf32>
    %431 = arith.subf %429, %372 : vector<2x32xf32>
    %432 = vector.broadcast %430 : vector<2x1xf32> to vector<2x32xf32>
    %433 = arith.mulf %432, %431 : vector<2x32xf32>
    %434 = arith.addf %372, %433 : vector<2x32xf32>
    %435 = arith.subf %426, %376 : vector<2x32xf32>
    %436 = vector.broadcast %430 : vector<2x1xf32> to vector<2x32xf32>
    %437 = arith.mulf %436, %435 : vector<2x32xf32>
    %438 = arith.addf %376, %437 : vector<2x32xf32>
    %439 = vector.broadcast %430 : vector<2x1xf32> to vector<2x32xf32>
    %440 = arith.mulf %439, %429 : vector<2x32xf32>
    %c12_89 = arith.constant 12 : index
    %c0_90 = arith.constant 0 : index
    %441 = vector.load %arg13[%c12_89, %c0_90] : memref<16x32xf32, #tpu.memory_space<vmem>>, vector<2x32xf32>
    tpu.vector_store %arg13[%c12_89, %c0_90], %440 {strides = array<i32>} : memref<16x32xf32, #tpu.memory_space<vmem>>, vector<2x32xf32>,
    %442 = vector.extract_strided_slice %28 {offsets = [2, 0], sizes = [2, 128], strides = [1, 1]} : vector<16x128xf32> to vector<2x128xf32>
    %cst_91 = arith.constant dense<0.000000e+00> : vector<2x128xf32>
    %443 = tpu.matmul %403, %32, %cst_91 {dimension_numbers = #tpu.dot_dimension_numbers<[1], [0], [0], [1], [0, 0, 1, 1], [], []>} : vector<2x32xf32>, vector<32x128xf32>, vector<2x128xf32> -> vector<2x128xf32>
    %444 = arith.addf %442, %443 : vector<2x128xf32>
    %445 = vector.extract_strided_slice %444 {offsets = [0, 0], sizes = [2, 96], strides = [1, 1]} : vector<2x128xf32> to vector<2x96xf32>
    %446 = arith.negf %445 : vector<2x96xf32>
    %447 = math.exp %446 : vector<2x96xf32>
    %cst_92 = arith.constant 1.000000e+00 : f32
    %448 = vector.broadcast %cst_92 : f32 to vector<2x96xf32>
    %449 = arith.addf %448, %447 : vector<2x96xf32>
    %450 = arith.divf %448, %449 : vector<2x96xf32>
    %451 = vector.extract_strided_slice %444 {offsets = [0, 96], sizes = [2, 32], strides = [1, 1]} : vector<2x128xf32> to vector<2x32xf32>
    %452 = math.tanh %451 : vector<2x32xf32>
    %453 = vector.extract_strided_slice %450 {offsets = [0, 32], sizes = [2, 32], strides = [1, 1]} : vector<2x96xf32> to vector<2x32xf32>
    %454 = arith.mulf %453, %407 : vector<2x32xf32>
    %455 = vector.extract_strided_slice %450 {offsets = [0, 0], sizes = [2, 32], strides = [1, 1]} : vector<2x96xf32> to vector<2x32xf32>
    %456 = arith.mulf %455, %452 : vector<2x32xf32>
    %457 = arith.addf %454, %456 : vector<2x32xf32>
    %458 = vector.extract_strided_slice %450 {offsets = [0, 64], sizes = [2, 32], strides = [1, 1]} : vector<2x96xf32> to vector<2x32xf32>
    %459 = math.tanh %457 : vector<2x32xf32>
    %460 = arith.mulf %458, %459 : vector<2x32xf32>
    %461 = vector.extract_strided_slice %34 {offsets = [2, 0], sizes = [2, 1], strides = [1, 1]} : vector<16x1xf32> to vector<2x1xf32>
    %462 = arith.subf %460, %403 : vector<2x32xf32>
    %463 = vector.broadcast %461 : vector<2x1xf32> to vector<2x32xf32>
    %464 = arith.mulf %463, %462 : vector<2x32xf32>
    %465 = arith.addf %403, %464 : vector<2x32xf32>
    %466 = arith.subf %457, %407 : vector<2x32xf32>
    %467 = vector.broadcast %461 : vector<2x1xf32> to vector<2x32xf32>
    %468 = arith.mulf %467, %466 : vector<2x32xf32>
    %469 = arith.addf %407, %468 : vector<2x32xf32>
    %470 = vector.broadcast %461 : vector<2x1xf32> to vector<2x32xf32>
    %471 = arith.mulf %470, %460 : vector<2x32xf32>
    %c2_93 = arith.constant 2 : index
    %c0_94 = arith.constant 0 : index
    %472 = vector.load %arg14[%c2_93, %c0_94] : memref<16x32xf32, #tpu.memory_space<vmem>>, vector<2x32xf32>
    tpu.vector_store %arg14[%c2_93, %c0_94], %471 {strides = array<i32>} : memref<16x32xf32, #tpu.memory_space<vmem>>, vector<2x32xf32>,
    %473 = vector.extract_strided_slice %24 {offsets = [14, 0], sizes = [2, 128], strides = [1, 1]} : vector<16x128xf32> to vector<2x128xf32>
    %cst_95 = arith.constant dense<0.000000e+00> : vector<2x128xf32>
    %474 = tpu.matmul %434, %30, %cst_95 {dimension_numbers = #tpu.dot_dimension_numbers<[1], [0], [0], [1], [0, 0, 1, 1], [], []>} : vector<2x32xf32>, vector<32x128xf32>, vector<2x128xf32> -> vector<2x128xf32>
    %475 = arith.addf %473, %474 : vector<2x128xf32>
    %476 = vector.extract_strided_slice %475 {offsets = [0, 0], sizes = [2, 96], strides = [1, 1]} : vector<2x128xf32> to vector<2x96xf32>
    %477 = arith.negf %476 : vector<2x96xf32>
    %478 = math.exp %477 : vector<2x96xf32>
    %cst_96 = arith.constant 1.000000e+00 : f32
    %479 = vector.broadcast %cst_96 : f32 to vector<2x96xf32>
    %480 = arith.addf %479, %478 : vector<2x96xf32>
    %481 = arith.divf %479, %480 : vector<2x96xf32>
    %482 = vector.extract_strided_slice %475 {offsets = [0, 96], sizes = [2, 32], strides = [1, 1]} : vector<2x128xf32> to vector<2x32xf32>
    %483 = math.tanh %482 : vector<2x32xf32>
    %484 = vector.extract_strided_slice %481 {offsets = [0, 32], sizes = [2, 32], strides = [1, 1]} : vector<2x96xf32> to vector<2x32xf32>
    %485 = arith.mulf %484, %438 : vector<2x32xf32>
    %486 = vector.extract_strided_slice %481 {offsets = [0, 0], sizes = [2, 32], strides = [1, 1]} : vector<2x96xf32> to vector<2x32xf32>
    %487 = arith.mulf %486, %483 : vector<2x32xf32>
    %488 = arith.addf %485, %487 : vector<2x32xf32>
    %489 = vector.extract_strided_slice %481 {offsets = [0, 64], sizes = [2, 32], strides = [1, 1]} : vector<2x96xf32> to vector<2x32xf32>
    %490 = math.tanh %488 : vector<2x32xf32>
    %491 = arith.mulf %489, %490 : vector<2x32xf32>
    %492 = vector.extract_strided_slice %33 {offsets = [14, 0], sizes = [2, 1], strides = [1, 1]} : vector<16x1xf32> to vector<2x1xf32>
    %493 = arith.subf %491, %434 : vector<2x32xf32>
    %494 = vector.broadcast %492 : vector<2x1xf32> to vector<2x32xf32>
    %495 = arith.mulf %494, %493 : vector<2x32xf32>
    %496 = arith.addf %434, %495 : vector<2x32xf32>
    %497 = arith.subf %488, %438 : vector<2x32xf32>
    %498 = vector.broadcast %492 : vector<2x1xf32> to vector<2x32xf32>
    %499 = arith.mulf %498, %497 : vector<2x32xf32>
    %500 = arith.addf %438, %499 : vector<2x32xf32>
    %501 = vector.broadcast %492 : vector<2x1xf32> to vector<2x32xf32>
    %502 = arith.mulf %501, %491 : vector<2x32xf32>
    %c14_97 = arith.constant 14 : index
    %c0_98 = arith.constant 0 : index
    %503 = vector.load %arg13[%c14_97, %c0_98] : memref<16x32xf32, #tpu.memory_space<vmem>>, vector<2x32xf32>
    tpu.vector_store %arg13[%c14_97, %c0_98], %502 {strides = array<i32>} : memref<16x32xf32, #tpu.memory_space<vmem>>, vector<2x32xf32>,
    %504 = vector.extract_strided_slice %28 {offsets = [0, 0], sizes = [2, 128], strides = [1, 1]} : vector<16x128xf32> to vector<2x128xf32>
    %cst_99 = arith.constant dense<0.000000e+00> : vector<2x128xf32>
    %505 = tpu.matmul %465, %32, %cst_99 {dimension_numbers = #tpu.dot_dimension_numbers<[1], [0], [0], [1], [0, 0, 1, 1], [], []>} : vector<2x32xf32>, vector<32x128xf32>, vector<2x128xf32> -> vector<2x128xf32>
    %506 = arith.addf %504, %505 : vector<2x128xf32>
    %507 = vector.extract_strided_slice %506 {offsets = [0, 0], sizes = [2, 96], strides = [1, 1]} : vector<2x128xf32> to vector<2x96xf32>
    %508 = arith.negf %507 : vector<2x96xf32>
    %509 = math.exp %508 : vector<2x96xf32>
    %cst_100 = arith.constant 1.000000e+00 : f32
    %510 = vector.broadcast %cst_100 : f32 to vector<2x96xf32>
    %511 = arith.addf %510, %509 : vector<2x96xf32>
    %512 = arith.divf %510, %511 : vector<2x96xf32>
    %513 = vector.extract_strided_slice %506 {offsets = [0, 96], sizes = [2, 32], strides = [1, 1]} : vector<2x128xf32> to vector<2x32xf32>
    %514 = math.tanh %513 : vector<2x32xf32>
    %515 = vector.extract_strided_slice %512 {offsets = [0, 32], sizes = [2, 32], strides = [1, 1]} : vector<2x96xf32> to vector<2x32xf32>
    %516 = arith.mulf %515, %469 : vector<2x32xf32>
    %517 = vector.extract_strided_slice %512 {offsets = [0, 0], sizes = [2, 32], strides = [1, 1]} : vector<2x96xf32> to vector<2x32xf32>
    %518 = arith.mulf %517, %514 : vector<2x32xf32>
    %519 = arith.addf %516, %518 : vector<2x32xf32>
    %520 = vector.extract_strided_slice %512 {offsets = [0, 64], sizes = [2, 32], strides = [1, 1]} : vector<2x96xf32> to vector<2x32xf32>
    %521 = math.tanh %519 : vector<2x32xf32>
    %522 = arith.mulf %520, %521 : vector<2x32xf32>
    %523 = vector.extract_strided_slice %34 {offsets = [0, 0], sizes = [2, 1], strides = [1, 1]} : vector<16x1xf32> to vector<2x1xf32>
    %524 = arith.subf %522, %465 : vector<2x32xf32>
    %525 = vector.broadcast %523 : vector<2x1xf32> to vector<2x32xf32>
    %526 = arith.mulf %525, %524 : vector<2x32xf32>
    %527 = arith.addf %465, %526 : vector<2x32xf32>
    %528 = arith.subf %519, %469 : vector<2x32xf32>
    %529 = vector.broadcast %523 : vector<2x1xf32> to vector<2x32xf32>
    %530 = arith.mulf %529, %528 : vector<2x32xf32>
    %531 = arith.addf %469, %530 : vector<2x32xf32>
    %532 = vector.broadcast %523 : vector<2x1xf32> to vector<2x32xf32>
    %533 = arith.mulf %532, %522 : vector<2x32xf32>
    %c0_101 = arith.constant 0 : index
    %c0_102 = arith.constant 0 : index
    %534 = vector.load %arg14[%c0_101, %c0_102] : memref<16x32xf32, #tpu.memory_space<vmem>>, vector<2x32xf32>
    tpu.vector_store %arg14[%c0_101, %c0_102], %533 {strides = array<i32>} : memref<16x32xf32, #tpu.memory_space<vmem>>, vector<2x32xf32>,
    %c0_103 = arith.constant 0 : index
    %c0_104 = arith.constant 0 : index
    %535 = vector.load %arg16[%c0_103, %c0_104] : memref<2x32xf32, #tpu.memory_space<vmem>>, vector<2x32xf32>
    tpu.vector_store %arg16[%c0_103, %c0_104], %496 {strides = array<i32>} : memref<2x32xf32, #tpu.memory_space<vmem>>, vector<2x32xf32>,
    %c0_105 = arith.constant 0 : index
    %c0_106 = arith.constant 0 : index
    %536 = vector.load %arg17[%c0_105, %c0_106] : memref<2x32xf32, #tpu.memory_space<vmem>>, vector<2x32xf32>
    tpu.vector_store %arg17[%c0_105, %c0_106], %500 {strides = array<i32>} : memref<2x32xf32, #tpu.memory_space<vmem>>, vector<2x32xf32>,
    %c0_107 = arith.constant 0 : index
    %c0_108 = arith.constant 0 : index
    %537 = vector.load %arg18[%c0_107, %c0_108] : memref<2x32xf32, #tpu.memory_space<vmem>>, vector<2x32xf32>
    tpu.vector_store %arg18[%c0_107, %c0_108], %527 {strides = array<i32>} : memref<2x32xf32, #tpu.memory_space<vmem>>, vector<2x32xf32>,
    %c0_109 = arith.constant 0 : index
    %c0_110 = arith.constant 0 : index
    %538 = vector.load %arg19[%c0_109, %c0_110] : memref<2x32xf32, #tpu.memory_space<vmem>>, vector<2x32xf32>
    tpu.vector_store %arg19[%c0_109, %c0_110], %531 {strides = array<i32>} : memref<2x32xf32, #tpu.memory_space<vmem>>, vector<2x32xf32>,
    %c0_111 = arith.constant 0 : index
    %c0_112 = arith.constant 0 : index
    %c0_113 = arith.constant 0 : index
    %539 = vector.load %arg15[%c0_111, %c0_112, %c0_113] : memref<2x2x32xf32, #tpu.memory_space<vmem>>, vector<1x2x32xf32>
    %540 = vector.shape_cast %539 : vector<1x2x32xf32> to vector<2x32xf32>
    %541 = vector.shape_cast %496 : vector<2x32xf32> to vector<1x2x32xf32>
    tpu.vector_store %arg15[%c0_111, %c0_112, %c0_113], %541 {strides = array<i32>} : memref<2x2x32xf32, #tpu.memory_space<vmem>>, vector<1x2x32xf32>,
    %c1_114 = arith.constant 1 : index
    %c0_115 = arith.constant 0 : index
    %c0_116 = arith.constant 0 : index
    %542 = vector.load %arg15[%c1_114, %c0_115, %c0_116] : memref<2x2x32xf32, #tpu.memory_space<vmem>>, vector<1x2x32xf32>
    %543 = vector.shape_cast %542 : vector<1x2x32xf32> to vector<2x32xf32>
    %544 = vector.shape_cast %527 : vector<2x32xf32> to vector<1x2x32xf32>
    tpu.vector_store %arg15[%c1_114, %c0_115, %c0_116], %544 {strides = array<i32>} : memref<2x2x32xf32, #tpu.memory_space<vmem>>, vector<1x2x32xf32>,
    return
  }
  func.func @transform_0(%arg0: i32) -> (i32, i32) {
    %c0_i32 = arith.constant 0 : i32
    %c0_i32_0 = arith.constant 0 : i32
    return %arg0, %c0_i32 : i32, i32
  }
  func.func @transform_1(%arg0: i32) -> (i32, i32) {
    %c0_i32 = arith.constant 0 : i32
    %c0_i32_0 = arith.constant 0 : i32
    return %arg0, %c0_i32 : i32, i32
  }
  func.func @transform_2(%arg0: i32) -> (i32, i32) {
    %c0_i32 = arith.constant 0 : i32
    %0 = arith.subi %c0_i32, %arg0 : i32
    %c0_i32_0 = arith.constant 0 : i32
    %c0_i32_1 = arith.constant 0 : i32
    return %0, %c0_i32_0 : i32, i32
  }
  func.func @transform_3(%arg0: i32) -> (i32, i32) {
    %c0_i32 = arith.constant 0 : i32
    %0 = arith.subi %c0_i32, %arg0 : i32
    %c0_i32_0 = arith.constant 0 : i32
    %c0_i32_1 = arith.constant 0 : i32
    return %0, %c0_i32_0 : i32, i32
  }
  func.func @transform_4(%arg0: i32) -> (i32, i32, i32) {
    %c0_i32 = arith.constant 0 : i32
    %c0_i32_0 = arith.constant 0 : i32
    %c0_i32_1 = arith.constant 0 : i32
    %c0_i32_2 = arith.constant 0 : i32
    return %c0_i32, %c0_i32_0, %c0_i32_1 : i32, i32, i32
  }
  func.func @transform_5(%arg0: i32) -> (i32, i32, i32) {
    %c0_i32 = arith.constant 0 : i32
    %c0_i32_0 = arith.constant 0 : i32
    %c0_i32_1 = arith.constant 0 : i32
    %c0_i32_2 = arith.constant 0 : i32
    return %c0_i32, %c0_i32_0, %c0_i32_1 : i32, i32, i32
  }
  func.func @transform_6(%arg0: i32) -> (i32, i32, i32) {
    %c0_i32 = arith.constant 0 : i32
    %c0_i32_0 = arith.constant 0 : i32
    %c0_i32_1 = arith.constant 0 : i32
    %c0_i32_2 = arith.constant 0 : i32
    return %c0_i32, %c0_i32_0, %c0_i32_1 : i32, i32, i32
  }
  func.func @transform_7(%arg0: i32) -> (i32, i32, i32) {
    %c0_i32 = arith.constant 0 : i32
    %c0_i32_0 = arith.constant 0 : i32
    %c0_i32_1 = arith.constant 0 : i32
    %c0_i32_2 = arith.constant 0 : i32
    return %c0_i32, %c0_i32_0, %c0_i32_1 : i32, i32, i32
  }
  func.func @transform_8(%arg0: i32) -> (i32, i32) {
    %c0_i32 = arith.constant 0 : i32
    %c0_i32_0 = arith.constant 0 : i32
    return %arg0, %c0_i32 : i32, i32
  }
  func.func @transform_9(%arg0: i32) -> (i32, i32) {
    %c0_i32 = arith.constant 0 : i32
    %0 = arith.subi %c0_i32, %arg0 : i32
    %c0_i32_0 = arith.constant 0 : i32
    %c0_i32_1 = arith.constant 0 : i32
    return %0, %c0_i32_0 : i32, i32
  }
  func.func @transform_10(%arg0: i32) -> (i32, i32, i32) {
    %c0_i32 = arith.constant 0 : i32
    %c0_i32_0 = arith.constant 0 : i32
    %c0_i32_1 = arith.constant 0 : i32
    %c0_i32_2 = arith.constant 0 : i32
    return %c0_i32, %c0_i32_0, %c0_i32_1 : i32, i32, i32
  }
  func.func @transform_11(%arg0: i32) -> (i32, i32, i32) {
    %c0_i32 = arith.constant 0 : i32
    %c0_i32_0 = arith.constant 0 : i32
    %c0_i32_1 = arith.constant 0 : i32
    %c0_i32_2 = arith.constant 0 : i32
    return %c0_i32, %c0_i32_0, %c0_i32_1 : i32, i32, i32
  }
  func.func @transform_12(%arg0: i32) -> (i32, i32) {
    %c0_i32 = arith.constant 0 : i32
    %c0_i32_0 = arith.constant 0 : i32
    return %arg0, %c0_i32 : i32, i32
  }
  func.func @transform_13(%arg0: i32) -> (i32, i32) {
    %c0_i32 = arith.constant 0 : i32
    %0 = arith.subi %c0_i32, %arg0 : i32
    %c0_i32_0 = arith.constant 0 : i32
    %c0_i32_1 = arith.constant 0 : i32
    return %0, %c0_i32_0 : i32, i32
  }
  func.func @transform_14(%arg0: i32) -> (i32, i32, i32) {
    %c0_i32 = arith.constant 0 : i32
    %c0_i32_0 = arith.constant 0 : i32
    %c0_i32_1 = arith.constant 0 : i32
    %c0_i32_2 = arith.constant 0 : i32
    return %c0_i32, %c0_i32_0, %c0_i32_1 : i32, i32, i32
  }
}

</mosaic_0001>

<llo_original>
// kernel: bilstm_bert_forward.2
$region0: #{bilstm_bert_forward.2}
  #allocation0 [shape = 'u32[]', space=smem, size = 0x4, offset = 0x4, fixed_abs, tag = 'smem constant byte address 0x4 - core index']
  #allocation1 [shape = 'u32[72,128]{1,0:T(1,128)}', space=vmem, size = 0x9000, scoped, tag = 'internal scratch']
  #allocation2 [shape = 'f32[2,32]{1,0:T(2,128)}', space=vmem, size = 0x400, scoped, tag = 'scratch operand']
  #allocation3 [shape = 'f32[2,32]{1,0:T(2,128)}', space=vmem, size = 0x400, scoped, tag = 'scratch operand']
  #allocation4 [shape = 'f32[2,32]{1,0:T(2,128)}', space=vmem, size = 0x400, scoped, tag = 'scratch operand']
  #allocation5 [shape = 'f32[2,32]{1,0:T(2,128)}', space=vmem, size = 0x400, scoped, tag = 'scratch operand']
  %s0 = inlined_call_operand.vmem [shape: f32[16,16], index: 0, kind: input, shape index: {}, may-alias: {0,1}]
  %s1 = inlined_call_operand.vmem [shape: f32[16,16], index: 1, kind: input, shape index: {}, may-alias: {0,1}]
  %s2 = inlined_call_operand.vmem [shape: f32[1,16,128], index: 2, kind: input, shape index: {}]
  %s3 = inlined_call_operand.vmem [shape: f32[1,16,128], index: 3, kind: input, shape index: {}]
  %s4 = inlined_call_operand.hbm [shape: f32[2,32,128], index: 4, kind: input, shape index: {}]
  %s5 = inlined_call_operand.vmem [shape: f32[2,1,128], index: 5, kind: input, shape index: {}]
  %s6 = inlined_call_operand.vmem [shape: f32[16,1], index: 6, kind: input, shape index: {}, may-alias: {6,7}]
  %s7 = inlined_call_operand.vmem [shape: f32[16,1], index: 7, kind: input, shape index: {}, may-alias: {6,7}]
  %s8 = inlined_call_operand.vmem [shape: f32[2,2,32], index: 8, kind: input, shape index: {}]
  %s9 = inlined_call_operand.hbm [shape: f32[2,2,32], index: 9, kind: input, shape index: {}]
  %s10 = inlined_call_operand.vmem [shape: f32[16,32], index: 10, kind: output, shape index: {0}]
  %s11 = inlined_call_operand.vmem [shape: f32[16,32], index: 11, kind: output, shape index: {1}]
  %s12 = inlined_call_operand.hbm [shape: f32[2,2,32], index: 12, kind: output, shape index: {2}]
  %13 = xla_tuple %s10, %s11, %s12
  %s14 = sld [smem:[#allocation0]]
  $region78: #{bilstm_bert_forward.2} parent=0
    _
  %s16 = ssub.s32 1, %s14
  %s17 = scalar_select 0, %s16, %s14
  $region1: #{bilstm_bert_forward.2} parent=0
    #allocation6 [shape = 'u8[32768]{0}', space=vmem, size = 0x8000, scoped, tag = 'input window, operand 4, single buffered']
    #allocation7 [shape = 's32[1]{0}', space=sflag, size = 0x4, scoped, tag = 'scoped memory for bilstm_bert_forward.2']
    #allocation8 [shape = 's32[1]{0}', space=sflag, size = 0x4, scoped, tag = 'scoped memory for bilstm_bert_forward.2']
    #allocation9 [shape = 'u8[2048]{0}', space=vmem, size = 0x800, scoped, tag = 'input window, operand 9, single buffered']
    #allocation10 [shape = 's32[1]{0}', space=sflag, size = 0x4, scoped, tag = 'scoped memory for bilstm_bert_forward.2']
    #allocation11 [shape = 'u8[2048]{0}', space=vmem, size = 0x800, scoped, tag = 'output window, operand 2, single buffered']
    %18 = vsyncpa [#allocation7], 0
    %19 = vsyncpa [#allocation10], 0
    %20 = vsyncpa [#allocation8], 0
    // Predicated region
    $region2: #{bilstm_bert_forward.2} parent=1 // pred_check
      _
    $region3: #{bilstm_bert_forward.2} parent=1 // pred_check_branch
      %22 = sbr.rel (0) target = $region5
    $region4: #{bilstm_bert_forward.2} parent=1 // pred_region
      _
    $region5: #{bilstm_bert_forward.2} parent=1 // pred_fallthru
      _
    // Predicated region
    $region6: #{bilstm_bert_forward.2} parent=1 // pred_check
      _
    $region7: #{bilstm_bert_forward.2} parent=1 // pred_check_branch
      %24 = sbr.rel (0) target = $region9
    $region8: #{bilstm_bert_forward.2} parent=1 // pred_region
      %s25 = ssub.s32 0, 0
      %s26 = smul.u32 2, %s25
      %p27 = scmp.lt.s32.totalorder %s26, 1
      %s28 = scalar_select %p27, %s26, 1
      %s29 = smul.addr %s28, 8
      %s30 = scalar_lea.vmem %s1, %s29
      %s31 = ssub.s32 0, 0
      %s32 = smul.u32 2, %s31
    $region9: #{bilstm_bert_forward.2} parent=1 // pred_fallthru
      _
    // Predicated region
    $region10: #{bilstm_bert_forward.2} parent=1 // pred_check
      _
    $region11: #{bilstm_bert_forward.2} parent=1 // pred_check_branch
      %34 = sbr.rel (0) target = $region13
    $region12: #{bilstm_bert_forward.2} parent=1 // pred_region
      _
    $region13: #{bilstm_bert_forward.2} parent=1 // pred_fallthru
      _
    // Predicated region
    $region14: #{bilstm_bert_forward.2} parent=1 // pred_check
      _
    $region15: #{bilstm_bert_forward.2} parent=1 // pred_check_branch
      %36 = sbr.rel (0) target = $region17
    $region16: #{bilstm_bert_forward.2} parent=1 // pred_region
      _
    $region17: #{bilstm_bert_forward.2} parent=1 // pred_fallthru
      _
    // Predicated region
    $region18: #{bilstm_bert_forward.2} parent=1 // pred_check
      _
    $region19: #{bilstm_bert_forward.2} parent=1 // pred_check_branch
      %38 = sbr.rel (0) target = $region21
    $region20: #{bilstm_bert_forward.2} parent=1 // pred_region
      %40 = vsyncadd [#allocation7], 0
      %s41 = sshll.u32 %s4, 4
      %s42 = int_to_ptr.hbm [resolvable:$true] %s41
      %s43 = sshll.u32 [#allocation6], 4
      %s44 = int_to_ptr.vmem [resolvable:$true] %s43
      %49 = dma.hbm_to_vmem [thread:$0]  %s42, 1024, %s44, [#allocation7], 128, 128, 8
    $region21: #{bilstm_bert_forward.2} parent=1 // pred_fallthru
      _
    // Predicated region
    $region22: #{bilstm_bert_forward.2} parent=1 // pred_check
      _
    $region23: #{bilstm_bert_forward.2} parent=1 // pred_check_branch
      %51 = sbr.rel (0) target = $region25
    $region24: #{bilstm_bert_forward.2} parent=1 // pred_region
      _
    $region25: #{bilstm_bert_forward.2} parent=1 // pred_fallthru
      _
    // Predicated region
    $region26: #{bilstm_bert_forward.2} parent=1 // pred_check
      _
    $region27: #{bilstm_bert_forward.2} parent=1 // pred_check_branch
      %53 = sbr.rel (0) target = $region29
    $region28: #{bilstm_bert_forward.2} parent=1 // pred_region
      _
    $region29: #{bilstm_bert_forward.2} parent=1 // pred_fallthru
      _
    // Predicated region
    $region30: #{bilstm_bert_forward.2} parent=1 // pred_check
      _
    $region31: #{bilstm_bert_forward.2} parent=1 // pred_check_branch
      %55 = sbr.rel (0) target = $region33
    $region32: #{bilstm_bert_forward.2} parent=1 // pred_region
      %s56 = ssub.s32 0, 0
      %s57 = smul.u32 2, %s56
      %p58 = scmp.lt.s32.totalorder %s57, 1
      %s59 = scalar_select %p58, %s57, 1
      %s60 = smul.addr %s59, 8
      %s61 = scalar_lea.vmem %s7, %s60
      %s62 = ssub.s32 0, 0
      %s63 = smul.u32 2, %s62
    $region33: #{bilstm_bert_forward.2} parent=1 // pred_fallthru
      _
    // Predicated region
    $region34: #{bilstm_bert_forward.2} parent=1 // pred_check
      _
    $region35: #{bilstm_bert_forward.2} parent=1 // pred_check_branch
      %65 = sbr.rel (0) target = $region37
    $region36: #{bilstm_bert_forward.2} parent=1 // pred_region
      _
    $region37: #{bilstm_bert_forward.2} parent=1 // pred_fallthru
      _
    // Predicated region
    $region38: #{bilstm_bert_forward.2} parent=1 // pred_check
      _
    $region39: #{bilstm_bert_forward.2} parent=1 // pred_check_branch
      %67 = sbr.rel (0) target = $region41
    $region40: #{bilstm_bert_forward.2} parent=1 // pred_region
      %69 = vsyncadd [#allocation10], 0
      %s70 = sshll.u32 %s9, 4
      %s71 = int_to_ptr.hbm [resolvable:$true] %s70
      %s72 = sshll.u32 [#allocation9], 4
      %s73 = int_to_ptr.vmem [resolvable:$true] %s72
      %78 = dma.hbm_to_vmem [thread:$0]  %s71, 64, %s73, [#allocation10], 32, 32, 2
    $region41: #{bilstm_bert_forward.2} parent=1 // pred_fallthru
      _
    // Predicated region
    $region42: #{bilstm_bert_forward.2} parent=1 // pred_check
      _
    $region43: #{bilstm_bert_forward.2} parent=1 // pred_check_branch
      %80 = sbr.rel (0) target = $region45
    $region44: #{bilstm_bert_forward.2} parent=1 // pred_region
      %82 = dma.done [#allocation7], 1024
    $region45: #{bilstm_bert_forward.2} parent=1 // pred_fallthru
      _
    // Predicated region
    $region46: #{bilstm_bert_forward.2} parent=1 // pred_check
      _
    $region47: #{bilstm_bert_forward.2} parent=1 // pred_check_branch
      %84 = sbr.rel (0) target = $region49
    $region48: #{bilstm_bert_forward.2} parent=1 // pred_region
      %86 = dma.done [#allocation10], 64
    $region49: #{bilstm_bert_forward.2} parent=1 // pred_fallthru
      _
    %s87 = ssub.s32 0, 0
    %s88 = smul.u32 2, %s87
    %p89 = scmp.lt.s32.totalorder %s88, 1
    %s90 = scalar_select %p89, %s88, 1
    %s91 = smul.addr %s90, 8
    %s92 = scalar_lea.vmem %s1, %s91
    %s93 = ssub.s32 0, 0
    %s94 = smul.u32 2, %s93
    %p95 = scmp.lt.s32.totalorder %s94, 1
    %s96 = scalar_select %p95, %s94, 1
    %s97 = smul.addr %s96, 8
    %s98 = scalar_lea.vmem %s7, %s97
    %s99 = ssub.s32 0, 0
    %s100 = smul.u32 2, %s99
    %p101 = scmp.lt.s32.totalorder %s100, 1
    %s102 = scalar_select %p101, %s100, 1
    %s103 = smul.addr %s102, 8
    %s104 = scalar_lea.vmem %s11, %s103
    %s105 = ssub.s32 0, 0
    %s106 = smul.u32 2, %s105
    %p107 = scmp.lt.s32.totalorder %s106, 1
    %s108 = scalar_select %p107, %s106, 1
    %s109 = smul.addr %s108, 8
    %s110 = scalar_lea.vmem %s1, %s109
    %s111 = ssub.s32 0, 0
    %s112 = smul.u32 2, %s111
    %s113 = ssub.s32 0, 0
    %s114 = smul.u32 2, %s113
    %p115 = scmp.lt.s32.totalorder %s114, 1
    %s116 = scalar_select %p115, %s114, 1
    %s117 = smul.addr %s116, 8
    %s118 = scalar_lea.vmem %s7, %s117
    %s119 = ssub.s32 0, 0
    %s120 = smul.u32 2, %s119
    %s121 = ssub.s32 0, 0
    %s122 = smul.u32 2, %s121
    %p123 = scmp.lt.s32.totalorder %s122, 1
    %s124 = scalar_select %p123, %s122, 1
    %s125 = smul.addr %s124, 8
    %s126 = scalar_lea.vmem %s11, %s125
    %s127 = ssub.s32 0, 0
    %s128 = smul.u32 2, %s127
    %p129 = scmp.eq.s32.totalorder 0, 0
    // Predicated region
    $region50: #{bilstm_bert_forward.2} parent=1 // pred_check
      %p130 = pneg %p129
    $region51: #{bilstm_bert_forward.2} parent=1 // pred_check_branch
      %132 = sbr.rel (%p130) target = $region53
    $region52: #{bilstm_bert_forward.2} parent=1 // pred_region
      %v133 = vld [vmem:[%s8] sm:$0x3]
      %vm134 = vcmask 254976
      %135 = vst.msk [vmem:[#allocation2] sm:$0x3] %vm134, %v133
      %v136 = vld [vmem:[#allocation9] sm:$0x3]
      %137 = vst.msk [vmem:[#allocation3] sm:$0x3] %vm134, %v136
      %s138 = scalar_lea.vmem %s8, 2
      %v139 = vld [vmem:[%s138] sm:$0x3]
      %140 = vst.msk [vmem:[#allocation4] sm:$0x3] %vm134, %v139
      %s141 = scalar_lea.vmem [#allocation9], 2
      %v142 = vld [vmem:[%s141] sm:$0x3]
      %143 = vst.msk [vmem:[#allocation5] sm:$0x3] %vm134, %v142
    $region53: #{bilstm_bert_forward.2} parent=1 // pred_fallthru
      _
    %v144 = vld [vmem:[%s0] sm:$0xff]
    %v145 = vld [vmem:[%s0 + $0x8] sm:$0xff]
    %v146 = vld [vmem:[%s2] sm:$0xff]
    %v147 = vld [vmem:[%s2 + $0x8] sm:$0xff]
    %v148 = vld [vmem:[%s110] sm:$0xff]
    %v149 = vld [vmem:[%s110 + $0x8] sm:$0xff]
    %v150 = vld [vmem:[%s3] sm:$0xff]
    %v151 = vld [vmem:[%s3 + $0x8] sm:$0xff]
    %v152 = vld [vmem:[%s5] sm:$0x1]
    %v154 = vperm.slane %v152, 0
    %vm156 = vcmask 130048
    %v158 = vsel %vm156, %v144, 0
    %v161 = vsel %vm156, %v145, 0
    %163 = vmatpush.msra.mxu0 0.0
    %164 = vmatpush.msra.mxu0 0.0
    %165 = vmatpush.msra.mxu0 0.0
    %166 = vmatpush.msra.mxu0 0.0
    %167 = vmatpush.msra.mxu0 0.0
    %168 = vmatpush.msra.mxu0 0.0
    %169 = vmatpush.msra.mxu0 0.0
    %170 = vmatpush.msra.mxu0 0.0
    %171 = vmatpush.msra.mxu0 0.0
    %172 = vmatpush.msra.mxu0 0.0
    %173 = vmatpush.msra.mxu0 0.0
    %174 = vmatpush.msra.mxu0 0.0
    %175 = vmatpush.msra.mxu0 0.0
    %176 = vmatpush.msra.mxu0 0.0
    %177 = vmatpush.msra.mxu0 %v147
    %178 = vmatpush.msra.mxu0 %v146
    %179 = vmatmul.f32.gmra.mxu0 %v158
    %v180 = vpop.f32.mrf.mxu0
    %v181 = vadd.f32 %v154, %v180
    %182 = vmatmul.f32.gmra.mxu0 %v161
    %v183 = vpop.f32.mrf.mxu0
    %v184 = vadd.f32 %v154, %v183
    %185 = vdwg.mxu0
    %s186 = scalar_lea.vmem %s5, 1
    %v187 = vld [vmem:[%s186] sm:$0x1]
    %v189 = vperm.slane %v187, 0
    %v192 = vsel %vm156, %v148, 0
    %v195 = vsel %vm156, %v149, 0
    %197 = vmatpush.msra.mxu0 0.0
    %198 = vmatpush.msra.mxu0 0.0
    %199 = vmatpush.msra.mxu0 0.0
    %200 = vmatpush.msra.mxu0 0.0
    %201 = vmatpush.msra.mxu0 0.0
    %202 = vmatpush.msra.mxu0 0.0
    %203 = vmatpush.msra.mxu0 0.0
    %204 = vmatpush.msra.mxu0 0.0
    %205 = vmatpush.msra.mxu0 0.0
    %206 = vmatpush.msra.mxu0 0.0
    %207 = vmatpush.msra.mxu0 0.0
    %208 = vmatpush.msra.mxu0 0.0
    %209 = vmatpush.msra.mxu0 0.0
    %210 = vmatpush.msra.mxu0 0.0
    %211 = vmatpush.msra.mxu0 %v151
    %212 = vmatpush.msra.mxu0 %v150
    %213 = vmatmul.f32.gmra.mxu0 %v192
    %v214 = vpop.f32.mrf.mxu0
    %v215 = vadd.f32 %v189, %v214
    %216 = vmatmul.f32.gmra.mxu0 %v195
    %v217 = vpop.f32.mrf.mxu0
    %v218 = vadd.f32 %v189, %v217
    %219 = vdwg.mxu0
    %v220 = vld [vmem:[#allocation6] sm:$0xff]
    %v221 = vld [vmem:[#allocation6 + $0x8] sm:$0xff]
    %v222 = vld [vmem:[#allocation6 + $0x10] sm:$0xff]
    %v223 = vld [vmem:[#allocation6 + $0x18] sm:$0xff]
    %s224 = scalar_lea.vmem [#allocation6], 32
    %v225 = vld [vmem:[%s224] sm:$0xff]
    %v226 = vld [vmem:[%s224 + $0x8] sm:$0xff]
    %v227 = vld [vmem:[%s224 + $0x10] sm:$0xff]
    %v228 = vld [vmem:[%s224 + $0x18] sm:$0xff]
    %v229 = vld [vmem:[%s6] sm:$0xff]
    %v230 = vld [vmem:[%s6 + $0x8] sm:$0xff]
    %v231 = vld [vmem:[%s118] sm:$0xff]
    %v232 = vld [vmem:[%s118 + $0x8] sm:$0xff]
    %v233 = vld [vmem:[#allocation2] sm:$0x3]
    %v234 = vld [vmem:[#allocation3] sm:$0x3]
    %v235 = vld [vmem:[#allocation4] sm:$0x3]
    %v236 = vld [vmem:[#allocation5] sm:$0x3]
    %vm237 = vcmask 261120
    %v239 = vsel %vm237, %v233, 0
    %241 = vmatpush.msra.mxu0 0.0
    %242 = vmatpush.msra.mxu0 0.0
    %243 = vmatpush.msra.mxu0 0.0
    %244 = vmatpush.msra.mxu0 0.0
    %245 = vmatpush.msra.mxu0 0.0
    %246 = vmatpush.msra.mxu0 0.0
    %247 = vmatpush.msra.mxu0 0.0
    %248 = vmatpush.msra.mxu0 0.0
    %249 = vmatpush.msra.mxu0 0.0
    %250 = vmatpush.msra.mxu0 0.0
    %251 = vmatpush.msra.mxu0 0.0
    %252 = vmatpush.msra.mxu0 0.0
    %253 = vmatpush.msra.mxu0 %v223
    %254 = vmatpush.msra.mxu0 %v222
    %255 = vmatpush.msra.mxu0 %v221
    %256 = vmatpush.msra.mxu0 %v220
    %257 = vmatmul.f32.gmra.mxu0 %v239
    %v258 = vpop.f32.mrf.mxu0
    %v259 = vadd.f32 0.0, %v258
    %260 = vdwg.mxu0
    %v261 = vadd.f32 %v181, %v259
    %v262 = vxor.u32 %v261, 2147483648
    %v263 = vmul.f32 %v262, 1.442695
    %v264 = vpow.pop %v263
    %v265 = vadd.f32 %v264, 1.0
    %v266 = vrcp.pop %v265
    %v267 = vmul.f32 %v265, %v266
    %v268 = vsub.f32 1.0, %v267
    %v269 = vmul.f32 %v266, %v268
    %v270 = vadd.f32 %v266, %v269
    %vm271 = vweird.f32 %v265
    %vm272 = vweird.f32 %v266
    %vm273 = vmor %vm271, %vm272
    %v274 = vsel %vm273, %v266, %v270
    %v275 = vand.u32 2147483647, %v265
    %vm276 = vcmp.eq.f32.partialorder %v275, 8.507059e+37
    %v277 = vand.u32 %v265, 2147483648
    %v278 = vor.u32 1.1754944e-38, %v277
    %v279 = vsel %vm276, %v278, %v274
    %v280 = vmul.f32 1.0, %v279
    %v281 = vtanh.pop %v261
    %283 = vrot.lane.b32.xlu0 %v234, 32
    %v284 = vpop.permute.xlu0 %283
    %v286 = vmul.f32 %v280, %v284
    %288 = vrot.lane.b32.xlu0 %v281, 32
    %v289 = vpop.permute.xlu0 %288
    %v291 = vmul.f32 %v280, %v289
    %293 = vrot.lane.b32.xlu0 %v291, 32
    %v294 = vpop.permute.xlu0 %293
    %v296 = vadd.f32 %v286, %v294
    %v297 = vtanh.pop %v296
    %299 = vrot.lane.b32.xlu0 %v297, 32
    %v300 = vpop.permute.xlu0 %299
    %v302 = vmul.f32 %v280, %v300
    %303 = vrot.lane.b32.xlu0 %v233, 64
    %v304 = vpop.permute.xlu0 %303
    %v306 = vsub.f32 %v302, %v304
    %308 = vset.pattern.permute.xlu0 0
    %309 = vperm.xlu0 %308, %v229
    %v310 = vpop.permute.xlu0 %309
    %v312 = vmul.f32 %v310, %v306
    %314 = vrot.lane.b32.xlu0 %v312, 64
    %v315 = vpop.permute.xlu0 %314
    %v317 = vadd.f32 %v233, %v315
    %v318 = vsub.f32 %v296, %v284
    %v319 = vmul.f32 %v310, %v318
    %321 = vrot.lane.b32.xlu0 %v319, 96
    %v322 = vpop.permute.xlu0 %321
    %v324 = vadd.f32 %v234, %v322
    %v325 = vmul.f32 %v310, %v302
    %327 = vrot.lane.b32.xlu0 %v325, 64
    %v328 = vpop.permute.xlu0 %327
    %vm330 = vcmask 254976
    %331 = vst.msk [vmem:[%s10] sm:$0x3] %vm330, %v328
    %v333 = vsel %vm237, %v235, 0
    %335 = vmatpush.msra.mxu0 0.0
    %336 = vmatpush.msra.mxu0 0.0
    %337 = vmatpush.msra.mxu0 0.0
    %338 = vmatpush.msra.mxu0 0.0
    %339 = vmatpush.msra.mxu0 0.0
    %340 = vmatpush.msra.mxu0 0.0
    %341 = vmatpush.msra.mxu0 0.0
    %342 = vmatpush.msra.mxu0 0.0
    %343 = vmatpush.msra.mxu0 0.0
    %344 = vmatpush.msra.mxu0 0.0
    %345 = vmatpush.msra.mxu0 0.0
    %346 = vmatpush.msra.mxu0 0.0
    %347 = vmatpush.msra.mxu0 %v228
    %348 = vmatpush.msra.mxu0 %v227
    %349 = vmatpush.msra.mxu0 %v226
    %350 = vmatpush.msra.mxu0 %v225
    %351 = vmatmul.f32.gmra.mxu0 %v333
    %v352 = vpop.f32.mrf.mxu0
    %v353 = vadd.f32 0.0, %v352
    %354 = vdwg.mxu0
    %v356 = vrot.slane %v353, 2
    %v358 = vadd.f32 %v218, %v356
    %v359 = vxor.u32 %v358, 2147483648
    %v360 = vmul.f32 %v359, 1.442695
    %v361 = vpow.pop %v360
    %v362 = vadd.f32 %v361, 1.0
    %v363 = vrcp.pop %v362
    %v364 = vmul.f32 %v362, %v363
    %v365 = vsub.f32 1.0, %v364
    %v366 = vmul.f32 %v363, %v365
    %v367 = vadd.f32 %v363, %v366
    %vm368 = vweird.f32 %v362
    %vm369 = vweird.f32 %v363
    %vm370 = vmor %vm368, %vm369
    %v371 = vsel %vm370, %v363, %v367
    %v372 = vand.u32 2147483647, %v362
    %vm373 = vcmp.eq.f32.partialorder %v372, 8.507059e+37
    %v374 = vand.u32 %v362, 2147483648
    %v375 = vor.u32 1.1754944e-38, %v374
    %v376 = vsel %vm373, %v375, %v371
    %v377 = vmul.f32 1.0, %v376
    %v378 = vtanh.pop %v358
    %v380 = vrot.slane %v236, 2
    %381 = vrot.lane.b32.xlu0 %v380, 32
    %v382 = vpop.permute.xlu0 %381
    %v384 = vmul.f32 %v377, %v382
    %386 = vrot.lane.b32.xlu0 %v378, 32
    %v387 = vpop.permute.xlu0 %386
    %v389 = vmul.f32 %v377, %v387
    %391 = vrot.lane.b32.xlu0 %v389, 32
    %v392 = vpop.permute.xlu0 %391
    %v394 = vadd.f32 %v384, %v392
    %v395 = vtanh.pop %v394
    %397 = vrot.lane.b32.xlu0 %v395, 32
    %v398 = vpop.permute.xlu0 %397
    %v400 = vmul.f32 %v377, %v398
    %v401 = vrot.slane %v235, 2
    %402 = vrot.lane.b32.xlu0 %v401, 64
    %v403 = vpop.permute.xlu0 %402
    %v405 = vsub.f32 %v400, %v403
    %407 = vset.pattern.permute.xlu0 0
    %408 = vperm.xlu0 %407, %v232
    %v409 = vpop.permute.xlu0 %408
    %v411 = vmul.f32 %v409, %v405
    %v413 = vrot.slane %v411, 6
    %414 = vrot.lane.b32.xlu0 %v413, 64
    %v415 = vpop.permute.xlu0 %414
    %v417 = vadd.f32 %v235, %v415
    %v418 = vsub.f32 %v394, %v382
    %v419 = vmul.f32 %v409, %v418
    %v421 = vrot.slane %v419, 6
    %422 = vrot.lane.b32.xlu0 %v421, 96
    %v423 = vpop.permute.xlu0 %422
    %v425 = vadd.f32 %v236, %v423
    %v426 = vmul.f32 %v409, %v400
    %428 = vrot.lane.b32.xlu0 %v426, 64
    %v429 = vpop.permute.xlu0 %428
    %vm431 = vcmask 261126
    %432 = vst.msk [vmem:[%s126 + $0x8] sm:$0xc0] %vm431, %v429
    %v434 = vsel %vm237, %v317, 0
    %436 = vmatpush.msra.mxu0 0.0
    %437 = vmatpush.msra.mxu0 0.0
    %438 = vmatpush.msra.mxu0 0.0
    %439 = vmatpush.msra.mxu0 0.0
    %440 = vmatpush.msra.mxu0 0.0
    %441 = vmatpush.msra.mxu0 0.0
    %442 = vmatpush.msra.mxu0 0.0
    %443 = vmatpush.msra.mxu0 0.0
    %444 = vmatpush.msra.mxu0 0.0
    %445 = vmatpush.msra.mxu0 0.0
    %446 = vmatpush.msra.mxu0 0.0
    %447 = vmatpush.msra.mxu0 0.0
    %448 = vmatpush.msra.mxu0 %v223
    %449 = vmatpush.msra.mxu0 %v222
    %450 = vmatpush.msra.mxu0 %v221
    %451 = vmatpush.msra.mxu0 %v220
    %452 = vmatmul.f32.gmra.mxu0 %v434
    %v453 = vpop.f32.mrf.mxu0
    %v454 = vadd.f32 0.0, %v453
    %455 = vdwg.mxu0
    %v457 = vrot.slane %v454, 6
    %v459 = vadd.f32 %v181, %v457
    %v460 = vxor.u32 %v459, 2147483648
    %v461 = vmul.f32 %v460, 1.442695
    %v462 = vpow.pop %v461
    %v463 = vadd.f32 %v462, 1.0
    %v464 = vrcp.pop %v463
    %v465 = vmul.f32 %v463, %v464
    %v466 = vsub.f32 1.0, %v465
    %v467 = vmul.f32 %v464, %v466
    %v468 = vadd.f32 %v464, %v467
    %vm469 = vweird.f32 %v463
    %vm470 = vweird.f32 %v464
    %vm471 = vmor %vm469, %vm470
    %v472 = vsel %vm471, %v464, %v468
    %v473 = vand.u32 2147483647, %v463
    %vm474 = vcmp.eq.f32.partialorder %v473, 8.507059e+37
    %v475 = vand.u32 %v463, 2147483648
    %v476 = vor.u32 1.1754944e-38, %v475
    %v477 = vsel %vm474, %v476, %v472
    %v478 = vmul.f32 1.0, %v477
    %v479 = vtanh.pop %v459
    %v481 = vrot.slane %v324, 6
    %482 = vrot.lane.b32.xlu0 %v481, 32
    %v483 = vpop.permute.xlu0 %482
    %v485 = vmul.f32 %v478, %v483
    %487 = vrot.lane.b32.xlu0 %v479, 32
    %v488 = vpop.permute.xlu0 %487
    %v490 = vmul.f32 %v478, %v488
    %492 = vrot.lane.b32.xlu0 %v490, 32
    %v493 = vpop.permute.xlu0 %492
    %v495 = vadd.f32 %v485, %v493
    %v496 = vtanh.pop %v495
    %498 = vrot.lane.b32.xlu0 %v496, 32
    %v499 = vpop.permute.xlu0 %498
    %v501 = vmul.f32 %v478, %v499
    %v502 = vrot.slane %v317, 6
    %503 = vrot.lane.b32.xlu0 %v502, 64
    %v504 = vpop.permute.xlu0 %503
    %v506 = vsub.f32 %v501, %v504
    %v507 = vmul.f32 %v310, %v506
    %v509 = vrot.slane %v507, 2
    %510 = vrot.lane.b32.xlu0 %v509, 64
    %v511 = vpop.permute.xlu0 %510
    %v513 = vadd.f32 %v317, %v511
    %v514 = vsub.f32 %v495, %v483
    %v515 = vmul.f32 %v310, %v514
    %v517 = vrot.slane %v515, 2
    %518 = vrot.lane.b32.xlu0 %v517, 96
    %v519 = vpop.permute.xlu0 %518
    %v521 = vadd.f32 %v324, %v519
    %v522 = vmul.f32 %v310, %v501
    %524 = vrot.lane.b32.xlu0 %v522, 64
    %v525 = vpop.permute.xlu0 %524
    %vm527 = vcmask 257026
    %528 = vst.msk [vmem:[%s10] sm:$0xc] %vm527, %v525
    %v530 = vsel %vm237, %v417, 0
    %532 = vmatpush.msra.mxu0 0.0
    %533 = vmatpush.msra.mxu0 0.0
    %534 = vmatpush.msra.mxu0 0.0
    %535 = vmatpush.msra.mxu0 0.0
    %536 = vmatpush.msra.mxu0 0.0
    %537 = vmatpush.msra.mxu0 0.0
    %538 = vmatpush.msra.mxu0 0.0
    %539 = vmatpush.msra.mxu0 0.0
    %540 = vmatpush.msra.mxu0 0.0
    %541 = vmatpush.msra.mxu0 0.0
    %542 = vmatpush.msra.mxu0 0.0
    %543 = vmatpush.msra.mxu0 0.0
    %544 = vmatpush.msra.mxu0 %v228
    %545 = vmatpush.msra.mxu0 %v227
    %546 = vmatpush.msra.mxu0 %v226
    %547 = vmatpush.msra.mxu0 %v225
    %548 = vmatmul.f32.gmra.mxu0 %v530
    %v549 = vpop.f32.mrf.mxu0
    %v550 = vadd.f32 0.0, %v549
    %551 = vdwg.mxu0
    %v553 = vrot.slane %v550, 4
    %v555 = vadd.f32 %v218, %v553
    %v556 = vxor.u32 %v555, 2147483648
    %v557 = vmul.f32 %v556, 1.442695
    %v558 = vpow.pop %v557
    %v559 = vadd.f32 %v558, 1.0
    %v560 = vrcp.pop %v559
    %v561 = vmul.f32 %v559, %v560
    %v562 = vsub.f32 1.0, %v561
    %v563 = vmul.f32 %v560, %v562
    %v564 = vadd.f32 %v560, %v563
    %vm565 = vweird.f32 %v559
    %vm566 = vweird.f32 %v560
    %vm567 = vmor %vm565, %vm566
    %v568 = vsel %vm567, %v560, %v564
    %v569 = vand.u32 2147483647, %v559
    %vm570 = vcmp.eq.f32.partialorder %v569, 8.507059e+37
    %v571 = vand.u32 %v559, 2147483648
    %v572 = vor.u32 1.1754944e-38, %v571
    %v573 = vsel %vm570, %v572, %v568
    %v574 = vmul.f32 1.0, %v573
    %v575 = vtanh.pop %v555
    %v577 = vrot.slane %v425, 4
    %578 = vrot.lane.b32.xlu0 %v577, 32
    %v579 = vpop.permute.xlu0 %578
    %v581 = vmul.f32 %v574, %v579
    %583 = vrot.lane.b32.xlu0 %v575, 32
    %v584 = vpop.permute.xlu0 %583
    %v586 = vmul.f32 %v574, %v584
    %588 = vrot.lane.b32.xlu0 %v586, 32
    %v589 = vpop.permute.xlu0 %588
    %v591 = vadd.f32 %v581, %v589
    %v592 = vtanh.pop %v591
    %594 = vrot.lane.b32.xlu0 %v592, 32
    %v595 = vpop.permute.xlu0 %594
    %v597 = vmul.f32 %v574, %v595
    %v598 = vrot.slane %v417, 4
    %599 = vrot.lane.b32.xlu0 %v598, 64
    %v600 = vpop.permute.xlu0 %599
    %v602 = vsub.f32 %v597, %v600
    %v603 = vmul.f32 %v409, %v602
    %v605 = vrot.slane %v603, 4
    %606 = vrot.lane.b32.xlu0 %v605, 64
    %v607 = vpop.permute.xlu0 %606
    %v609 = vadd.f32 %v417, %v607
    %v610 = vsub.f32 %v591, %v579
    %v611 = vmul.f32 %v409, %v610
    %v613 = vrot.slane %v611, 4
    %614 = vrot.lane.b32.xlu0 %v613, 96
    %v615 = vpop.permute.xlu0 %614
    %v617 = vadd.f32 %v425, %v615
    %v618 = vmul.f32 %v409, %v597
    %620 = vrot.lane.b32.xlu0 %v618, 64
    %v621 = vpop.permute.xlu0 %620
    %vm623 = vcmask 259076
    %624 = vst.msk [vmem:[%s126 + $0x8] sm:$0x30] %vm623, %v621
    %v626 = vsel %vm237, %v513, 0
    %628 = vmatpush.msra.mxu0 0.0
    %629 = vmatpush.msra.mxu0 0.0
    %630 = vmatpush.msra.mxu0 0.0
    %631 = vmatpush.msra.mxu0 0.0
    %632 = vmatpush.msra.mxu0 0.0
    %633 = vmatpush.msra.mxu0 0.0
    %634 = vmatpush.msra.mxu0 0.0
    %635 = vmatpush.msra.mxu0 0.0
    %636 = vmatpush.msra.mxu0 0.0
    %637 = vmatpush.msra.mxu0 0.0
    %638 = vmatpush.msra.mxu0 0.0
    %639 = vmatpush.msra.mxu0 0.0
    %640 = vmatpush.msra.mxu0 %v223
    %641 = vmatpush.msra.mxu0 %v222
    %642 = vmatpush.msra.mxu0 %v221
    %643 = vmatpush.msra.mxu0 %v220
    %644 = vmatmul.f32.gmra.mxu0 %v626
    %v645 = vpop.f32.mrf.mxu0
    %v646 = vadd.f32 0.0, %v645
    %647 = vdwg.mxu0
    %v649 = vrot.slane %v646, 4
    %v651 = vadd.f32 %v181, %v649
    %v652 = vxor.u32 %v651, 2147483648
    %v653 = vmul.f32 %v652, 1.442695
    %v654 = vpow.pop %v653
    %v655 = vadd.f32 %v654, 1.0
    %v656 = vrcp.pop %v655
    %v657 = vmul.f32 %v655, %v656
    %v658 = vsub.f32 1.0, %v657
    %v659 = vmul.f32 %v656, %v658
    %v660 = vadd.f32 %v656, %v659
    %vm661 = vweird.f32 %v655
    %vm662 = vweird.f32 %v656
    %vm663 = vmor %vm661, %vm662
    %v664 = vsel %vm663, %v656, %v660
    %v665 = vand.u32 2147483647, %v655
    %vm666 = vcmp.eq.f32.partialorder %v665, 8.507059e+37
    %v667 = vand.u32 %v655, 2147483648
    %v668 = vor.u32 1.1754944e-38, %v667
    %v669 = vsel %vm666, %v668, %v664
    %v670 = vmul.f32 1.0, %v669
    %v671 = vtanh.pop %v651
    %v673 = vrot.slane %v521, 4
    %674 = vrot.lane.b32.xlu0 %v673, 32
    %v675 = vpop.permute.xlu0 %674
    %v677 = vmul.f32 %v670, %v675
    %679 = vrot.lane.b32.xlu0 %v671, 32
    %v680 = vpop.permute.xlu0 %679
    %v682 = vmul.f32 %v670, %v680
    %684 = vrot.lane.b32.xlu0 %v682, 32
    %v685 = vpop.permute.xlu0 %684
    %v687 = vadd.f32 %v677, %v685
    %v688 = vtanh.pop %v687
    %690 = vrot.lane.b32.xlu0 %v688, 32
    %v691 = vpop.permute.xlu0 %690
    %v693 = vmul.f32 %v670, %v691
    %v694 = vrot.slane %v513, 4
    %695 = vrot.lane.b32.xlu0 %v694, 64
    %v696 = vpop.permute.xlu0 %695
    %v698 = vsub.f32 %v693, %v696
    %v699 = vmul.f32 %v310, %v698
    %v701 = vrot.slane %v699, 4
    %702 = vrot.lane.b32.xlu0 %v701, 64
    %v703 = vpop.permute.xlu0 %702
    %v705 = vadd.f32 %v513, %v703
    %v706 = vsub.f32 %v687, %v675
    %v707 = vmul.f32 %v310, %v706
    %v709 = vrot.slane %v707, 4
    %710 = vrot.lane.b32.xlu0 %v709, 96
    %v711 = vpop.permute.xlu0 %710
    %v713 = vadd.f32 %v521, %v711
    %v714 = vmul.f32 %v310, %v693
    %716 = vrot.lane.b32.xlu0 %v714, 64
    %v717 = vpop.permute.xlu0 %716
    %719 = vst.msk [vmem:[%s10] sm:$0x30] %vm623, %v717
    %v721 = vsel %vm237, %v609, 0
    %723 = vmatpush.msra.mxu0 0.0
    %724 = vmatpush.msra.mxu0 0.0
    %725 = vmatpush.msra.mxu0 0.0
    %726 = vmatpush.msra.mxu0 0.0
    %727 = vmatpush.msra.mxu0 0.0
    %728 = vmatpush.msra.mxu0 0.0
    %729 = vmatpush.msra.mxu0 0.0
    %730 = vmatpush.msra.mxu0 0.0
    %731 = vmatpush.msra.mxu0 0.0
    %732 = vmatpush.msra.mxu0 0.0
    %733 = vmatpush.msra.mxu0 0.0
    %734 = vmatpush.msra.mxu0 0.0
    %735 = vmatpush.msra.mxu0 %v228
    %736 = vmatpush.msra.mxu0 %v227
    %737 = vmatpush.msra.mxu0 %v226
    %738 = vmatpush.msra.mxu0 %v225
    %739 = vmatmul.f32.gmra.mxu0 %v721
    %v740 = vpop.f32.mrf.mxu0
    %v741 = vadd.f32 0.0, %v740
    %742 = vdwg.mxu0
    %v744 = vrot.slane %v741, 6
    %v746 = vadd.f32 %v218, %v744
    %v747 = vxor.u32 %v746, 2147483648
    %v748 = vmul.f32 %v747, 1.442695
    %v749 = vpow.pop %v748
    %v750 = vadd.f32 %v749, 1.0
    %v751 = vrcp.pop %v750
    %v752 = vmul.f32 %v750, %v751
    %v753 = vsub.f32 1.0, %v752
    %v754 = vmul.f32 %v751, %v753
    %v755 = vadd.f32 %v751, %v754
    %vm756 = vweird.f32 %v750
    %vm757 = vweird.f32 %v751
    %vm758 = vmor %vm756, %vm757
    %v759 = vsel %vm758, %v751, %v755
    %v760 = vand.u32 2147483647, %v750
    %vm761 = vcmp.eq.f32.partialorder %v760, 8.507059e+37
    %v762 = vand.u32 %v750, 2147483648
    %v763 = vor.u32 1.1754944e-38, %v762
    %v764 = vsel %vm761, %v763, %v759
    %v765 = vmul.f32 1.0, %v764
    %v766 = vtanh.pop %v746
    %v768 = vrot.slane %v617, 6
    %769 = vrot.lane.b32.xlu0 %v768, 32
    %v770 = vpop.permute.xlu0 %769
    %v772 = vmul.f32 %v765, %v770
    %774 = vrot.lane.b32.xlu0 %v766, 32
    %v775 = vpop.permute.xlu0 %774
    %v777 = vmul.f32 %v765, %v775
    %779 = vrot.lane.b32.xlu0 %v777, 32
    %v780 = vpop.permute.xlu0 %779
    %v782 = vadd.f32 %v772, %v780
    %v783 = vtanh.pop %v782
    %785 = vrot.lane.b32.xlu0 %v783, 32
    %v786 = vpop.permute.xlu0 %785
    %v788 = vmul.f32 %v765, %v786
    %v789 = vrot.slane %v609, 6
    %790 = vrot.lane.b32.xlu0 %v789, 64
    %v791 = vpop.permute.xlu0 %790
    %v793 = vsub.f32 %v788, %v791
    %v794 = vmul.f32 %v409, %v793
    %v796 = vrot.slane %v794, 2
    %797 = vrot.lane.b32.xlu0 %v796, 64
    %v798 = vpop.permute.xlu0 %797
    %v800 = vadd.f32 %v609, %v798
    %v801 = vsub.f32 %v782, %v770
    %v802 = vmul.f32 %v409, %v801
    %v804 = vrot.slane %v802, 2
    %805 = vrot.lane.b32.xlu0 %v804, 96
    %v806 = vpop.permute.xlu0 %805
    %v808 = vadd.f32 %v617, %v806
    %v809 = vmul.f32 %v409, %v788
    %811 = vrot.lane.b32.xlu0 %v809, 64
    %v812 = vpop.permute.xlu0 %811
    %814 = vst.msk [vmem:[%s126 + $0x8] sm:$0xc] %vm527, %v812
    %v816 = vsel %vm237, %v705, 0
    %818 = vmatpush.msra.mxu0 0.0
    %819 = vmatpush.msra.mxu0 0.0
    %820 = vmatpush.msra.mxu0 0.0
    %821 = vmatpush.msra.mxu0 0.0
    %822 = vmatpush.msra.mxu0 0.0
    %823 = vmatpush.msra.mxu0 0.0
    %824 = vmatpush.msra.mxu0 0.0
    %825 = vmatpush.msra.mxu0 0.0
    %826 = vmatpush.msra.mxu0 0.0
    %827 = vmatpush.msra.mxu0 0.0
    %828 = vmatpush.msra.mxu0 0.0
    %829 = vmatpush.msra.mxu0 0.0
    %830 = vmatpush.msra.mxu0 %v223
    %831 = vmatpush.msra.mxu0 %v222
    %832 = vmatpush.msra.mxu0 %v221
    %833 = vmatpush.msra.mxu0 %v220
    %834 = vmatmul.f32.gmra.mxu0 %v816
    %v835 = vpop.f32.mrf.mxu0
    %v836 = vadd.f32 0.0, %v835
    %837 = vdwg.mxu0
    %v839 = vrot.slane %v836, 2
    %v841 = vadd.f32 %v181, %v839
    %v842 = vxor.u32 %v841, 2147483648
    %v843 = vmul.f32 %v842, 1.442695
    %v844 = vpow.pop %v843
    %v845 = vadd.f32 %v844, 1.0
    %v846 = vrcp.pop %v845
    %v847 = vmul.f32 %v845, %v846
    %v848 = vsub.f32 1.0, %v847
    %v849 = vmul.f32 %v846, %v848
    %v850 = vadd.f32 %v846, %v849
    %vm851 = vweird.f32 %v845
    %vm852 = vweird.f32 %v846
    %vm853 = vmor %vm851, %vm852
    %v854 = vsel %vm853, %v846, %v850
    %v855 = vand.u32 2147483647, %v845
    %vm856 = vcmp.eq.f32.partialorder %v855, 8.507059e+37
    %v857 = vand.u32 %v845, 2147483648
    %v858 = vor.u32 1.1754944e-38, %v857
    %v859 = vsel %vm856, %v858, %v854
    %v860 = vmul.f32 1.0, %v859
    %v861 = vtanh.pop %v841
    %v863 = vrot.slane %v713, 2
    %864 = vrot.lane.b32.xlu0 %v863, 32
    %v865 = vpop.permute.xlu0 %864
    %v867 = vmul.f32 %v860, %v865
    %869 = vrot.lane.b32.xlu0 %v861, 32
    %v870 = vpop.permute.xlu0 %869
    %v872 = vmul.f32 %v860, %v870
    %874 = vrot.lane.b32.xlu0 %v872, 32
    %v875 = vpop.permute.xlu0 %874
    %v877 = vadd.f32 %v867, %v875
    %v878 = vtanh.pop %v877
    %880 = vrot.lane.b32.xlu0 %v878, 32
    %v881 = vpop.permute.xlu0 %880
    %v883 = vmul.f32 %v860, %v881
    %v884 = vrot.slane %v705, 2
    %885 = vrot.lane.b32.xlu0 %v884, 64
    %v886 = vpop.permute.xlu0 %885
    %v888 = vsub.f32 %v883, %v886
    %v889 = vmul.f32 %v310, %v888
    %v891 = vrot.slane %v889, 6
    %892 = vrot.lane.b32.xlu0 %v891, 64
    %v893 = vpop.permute.xlu0 %892
    %v895 = vadd.f32 %v705, %v893
    %v896 = vsub.f32 %v877, %v865
    %v897 = vmul.f32 %v310, %v896
    %v899 = vrot.slane %v897, 6
    %900 = vrot.lane.b32.xlu0 %v899, 96
    %v901 = vpop.permute.xlu0 %900
    %v903 = vadd.f32 %v713, %v901
    %v904 = vmul.f32 %v310, %v883
    %906 = vrot.lane.b32.xlu0 %v904, 64
    %v907 = vpop.permute.xlu0 %906
    %909 = vst.msk [vmem:[%s10] sm:$0xc0] %vm431, %v907
    %v911 = vsel %vm237, %v800, 0
    %913 = vmatpush.msra.mxu0 0.0
    %914 = vmatpush.msra.mxu0 0.0
    %915 = vmatpush.msra.mxu0 0.0
    %916 = vmatpush.msra.mxu0 0.0
    %917 = vmatpush.msra.mxu0 0.0
    %918 = vmatpush.msra.mxu0 0.0
    %919 = vmatpush.msra.mxu0 0.0
    %920 = vmatpush.msra.mxu0 0.0
    %921 = vmatpush.msra.mxu0 0.0
    %922 = vmatpush.msra.mxu0 0.0
    %923 = vmatpush.msra.mxu0 0.0
    %924 = vmatpush.msra.mxu0 0.0
    %925 = vmatpush.msra.mxu0 %v228
    %926 = vmatpush.msra.mxu0 %v227
    %927 = vmatpush.msra.mxu0 %v226
    %928 = vmatpush.msra.mxu0 %v225
    %929 = vmatmul.f32.gmra.mxu0 %v911
    %v930 = vpop.f32.mrf.mxu0
    %v931 = vadd.f32 0.0, %v930
    %932 = vdwg.mxu0
    %v933 = vadd.f32 %v218, %v931
    %v934 = vxor.u32 %v933, 2147483648
    %v935 = vmul.f32 %v934, 1.442695
    %v936 = vpow.pop %v935
    %v937 = vadd.f32 %v936, 1.0
    %v938 = vrcp.pop %v937
    %v939 = vmul.f32 %v937, %v938
    %v940 = vsub.f32 1.0, %v939
    %v941 = vmul.f32 %v938, %v940
    %v942 = vadd.f32 %v938, %v941
    %vm943 = vweird.f32 %v937
    %vm944 = vweird.f32 %v938
    %vm945 = vmor %vm943, %vm944
    %v946 = vsel %vm945, %v938, %v942
    %v947 = vand.u32 2147483647, %v937
    %vm948 = vcmp.eq.f32.partialorder %v947, 8.507059e+37
    %v949 = vand.u32 %v937, 2147483648
    %v950 = vor.u32 1.1754944e-38, %v949
    %v951 = vsel %vm948, %v950, %v946
    %v952 = vmul.f32 1.0, %v951
    %v953 = vtanh.pop %v933
    %955 = vrot.lane.b32.xlu0 %v808, 32
    %v956 = vpop.permute.xlu0 %955
    %v958 = vmul.f32 %v952, %v956
    %960 = vrot.lane.b32.xlu0 %v953, 32
    %v961 = vpop.permute.xlu0 %960
    %v963 = vmul.f32 %v952, %v961
    %965 = vrot.lane.b32.xlu0 %v963, 32
    %v966 = vpop.permute.xlu0 %965
    %v968 = vadd.f32 %v958, %v966
    %v969 = vtanh.pop %v968
    %971 = vrot.lane.b32.xlu0 %v969, 32
    %v972 = vpop.permute.xlu0 %971
    %v974 = vmul.f32 %v952, %v972
    %975 = vrot.lane.b32.xlu0 %v800, 64
    %v976 = vpop.permute.xlu0 %975
    %v978 = vsub.f32 %v974, %v976
    %v979 = vmul.f32 %v409, %v978
    %981 = vrot.lane.b32.xlu0 %v979, 64
    %v982 = vpop.permute.xlu0 %981
    %v984 = vadd.f32 %v800, %v982
    %v985 = vsub.f32 %v968, %v956
    %v986 = vmul.f32 %v409, %v985
    %988 = vrot.lane.b32.xlu0 %v986, 96
    %v989 = vpop.permute.xlu0 %988
    %v991 = vadd.f32 %v808, %v989
    %v992 = vmul.f32 %v409, %v974
    %994 = vrot.lane.b32.xlu0 %v992, 64
    %v995 = vpop.permute.xlu0 %994
    %997 = vst.msk [vmem:[%s126 + $0x8] sm:$0x3] %vm330, %v995
    %v999 = vsel %vm237, %v895, 0
    %1001 = vmatpush.msra.mxu0 0.0
    %1002 = vmatpush.msra.mxu0 0.0
    %1003 = vmatpush.msra.mxu0 0.0
    %1004 = vmatpush.msra.mxu0 0.0
    %1005 = vmatpush.msra.mxu0 0.0
    %1006 = vmatpush.msra.mxu0 0.0
    %1007 = vmatpush.msra.mxu0 0.0
    %1008 = vmatpush.msra.mxu0 0.0
    %1009 = vmatpush.msra.mxu0 0.0
    %1010 = vmatpush.msra.mxu0 0.0
    %1011 = vmatpush.msra.mxu0 0.0
    %1012 = vmatpush.msra.mxu0 0.0
    %1013 = vmatpush.msra.mxu0 %v223
    %1014 = vmatpush.msra.mxu0 %v222
    %1015 = vmatpush.msra.mxu0 %v221
    %1016 = vmatpush.msra.mxu0 %v220
    %1017 = vmatmul.f32.gmra.mxu0 %v999
    %v1018 = vpop.f32.mrf.mxu0
    %v1019 = vadd.f32 0.0, %v1018
    %1020 = vdwg.mxu0
    %v1021 = vadd.f32 %v184, %v1019
    %v1022 = vxor.u32 %v1021, 2147483648
    %v1023 = vmul.f32 %v1022, 1.442695
    %v1024 = vpow.pop %v1023
    %v1025 = vadd.f32 %v1024, 1.0
    %v1026 = vrcp.pop %v1025
    %v1027 = vmul.f32 %v1025, %v1026
    %v1028 = vsub.f32 1.0, %v1027
    %v1029 = vmul.f32 %v1026, %v1028
    %v1030 = vadd.f32 %v1026, %v1029
    %vm1031 = vweird.f32 %v1025
    %vm1032 = vweird.f32 %v1026
    %vm1033 = vmor %vm1031, %vm1032
    %v1034 = vsel %vm1033, %v1026, %v1030
    %v1035 = vand.u32 2147483647, %v1025
    %vm1036 = vcmp.eq.f32.partialorder %v1035, 8.507059e+37
    %v1037 = vand.u32 %v1025, 2147483648
    %v1038 = vor.u32 1.1754944e-38, %v1037
    %v1039 = vsel %vm1036, %v1038, %v1034
    %v1040 = vmul.f32 1.0, %v1039
    %v1041 = vtanh.pop %v1021
    %1043 = vrot.lane.b32.xlu0 %v903, 32
    %v1044 = vpop.permute.xlu0 %1043
    %v1046 = vmul.f32 %v1040, %v1044
    %1048 = vrot.lane.b32.xlu0 %v1041, 32
    %v1049 = vpop.permute.xlu0 %1048
    %v1051 = vmul.f32 %v1040, %v1049
    %1053 = vrot.lane.b32.xlu0 %v1051, 32
    %v1054 = vpop.permute.xlu0 %1053
    %v1056 = vadd.f32 %v1046, %v1054
    %v1057 = vtanh.pop %v1056
    %1059 = vrot.lane.b32.xlu0 %v1057, 32
    %v1060 = vpop.permute.xlu0 %1059
    %v1062 = vmul.f32 %v1040, %v1060
    %1063 = vrot.lane.b32.xlu0 %v895, 64
    %v1064 = vpop.permute.xlu0 %1063
    %v1066 = vsub.f32 %v1062, %v1064
    %1068 = vset.pattern.permute.xlu0 0
    %1069 = vperm.xlu0 %1068, %v230
    %v1070 = vpop.permute.xlu0 %1069
    %v1072 = vmul.f32 %v1070, %v1066
    %1074 = vrot.lane.b32.xlu0 %v1072, 64
    %v1075 = vpop.permute.xlu0 %1074
    %v1077 = vadd.f32 %v895, %v1075
    %v1078 = vsub.f32 %v1056, %v1044
    %v1079 = vmul.f32 %v1070, %v1078
    %1081 = vrot.lane.b32.xlu0 %v1079, 96
    %v1082 = vpop.permute.xlu0 %1081
    %v1084 = vadd.f32 %v903, %v1082
    %v1085 = vmul.f32 %v1070, %v1062
    %1087 = vrot.lane.b32.xlu0 %v1085, 64
    %v1088 = vpop.permute.xlu0 %1087
    %1090 = vst.msk [vmem:[%s10 + $0x8] sm:$0x3] %vm330, %v1088
    %v1092 = vsel %vm237, %v984, 0
    %1094 = vmatpush.msra.mxu0 0.0
    %1095 = vmatpush.msra.mxu0 0.0
    %1096 = vmatpush.msra.mxu0 0.0
    %1097 = vmatpush.msra.mxu0 0.0
    %1098 = vmatpush.msra.mxu0 0.0
    %1099 = vmatpush.msra.mxu0 0.0
    %1100 = vmatpush.msra.mxu0 0.0
    %1101 = vmatpush.msra.mxu0 0.0
    %1102 = vmatpush.msra.mxu0 0.0
    %1103 = vmatpush.msra.mxu0 0.0
    %1104 = vmatpush.msra.mxu0 0.0
    %1105 = vmatpush.msra.mxu0 0.0
    %1106 = vmatpush.msra.mxu0 %v228
    %1107 = vmatpush.msra.mxu0 %v227
    %1108 = vmatpush.msra.mxu0 %v226
    %1109 = vmatpush.msra.mxu0 %v225
    %1110 = vmatmul.f32.gmra.mxu0 %v1092
    %v1111 = vpop.f32.mrf.mxu0
    %v1112 = vadd.f32 0.0, %v1111
    %1113 = vdwg.mxu0
    %v1115 = vrot.slane %v1112, 2
    %v1117 = vadd.f32 %v215, %v1115
    %v1118 = vxor.u32 %v1117, 2147483648
    %v1119 = vmul.f32 %v1118, 1.442695
    %v1120 = vpow.pop %v1119
    %v1121 = vadd.f32 %v1120, 1.0
    %v1122 = vrcp.pop %v1121
    %v1123 = vmul.f32 %v1121, %v1122
    %v1124 = vsub.f32 1.0, %v1123
    %v1125 = vmul.f32 %v1122, %v1124
    %v1126 = vadd.f32 %v1122, %v1125
    %vm1127 = vweird.f32 %v1121
    %vm1128 = vweird.f32 %v1122
    %vm1129 = vmor %vm1127, %vm1128
    %v1130 = vsel %vm1129, %v1122, %v1126
    %v1131 = vand.u32 2147483647, %v1121
    %vm1132 = vcmp.eq.f32.partialorder %v1131, 8.507059e+37
    %v1133 = vand.u32 %v1121, 2147483648
    %v1134 = vor.u32 1.1754944e-38, %v1133
    %v1135 = vsel %vm1132, %v1134, %v1130
    %v1136 = vmul.f32 1.0, %v1135
    %v1137 = vtanh.pop %v1117
    %v1139 = vrot.slane %v991, 2
    %1140 = vrot.lane.b32.xlu0 %v1139, 32
    %v1141 = vpop.permute.xlu0 %1140
    %v1143 = vmul.f32 %v1136, %v1141
    %1145 = vrot.lane.b32.xlu0 %v1137, 32
    %v1146 = vpop.permute.xlu0 %1145
    %v1148 = vmul.f32 %v1136, %v1146
    %1150 = vrot.lane.b32.xlu0 %v1148, 32
    %v1151 = vpop.permute.xlu0 %1150
    %v1153 = vadd.f32 %v1143, %v1151
    %v1154 = vtanh.pop %v1153
    %1156 = vrot.lane.b32.xlu0 %v1154, 32
    %v1157 = vpop.permute.xlu0 %1156
    %v1159 = vmul.f32 %v1136, %v1157
    %v1160 = vrot.slane %v984, 2
    %1161 = vrot.lane.b32.xlu0 %v1160, 64
    %v1162 = vpop.permute.xlu0 %1161
    %v1164 = vsub.f32 %v1159, %v1162
    %1166 = vset.pattern.permute.xlu0 0
    %1167 = vperm.xlu0 %1166, %v231
    %v1168 = vpop.permute.xlu0 %1167
    %v1170 = vmul.f32 %v1168, %v1164
    %v1172 = vrot.slane %v1170, 6
    %1173 = vrot.lane.b32.xlu0 %v1172, 64
    %v1174 = vpop.permute.xlu0 %1173
    %v1176 = vadd.f32 %v984, %v1174
    %v1177 = vsub.f32 %v1153, %v1141
    %v1178 = vmul.f32 %v1168, %v1177
    %v1180 = vrot.slane %v1178, 6
    %1181 = vrot.lane.b32.xlu0 %v1180, 96
    %v1182 = vpop.permute.xlu0 %1181
    %v1184 = vadd.f32 %v991, %v1182
    %v1185 = vmul.f32 %v1168, %v1159
    %1187 = vrot.lane.b32.xlu0 %v1185, 64
    %v1188 = vpop.permute.xlu0 %1187
    %1190 = vst.msk [vmem:[%s126] sm:$0xc0] %vm431, %v1188
    %v1192 = vsel %vm237, %v1077, 0
    %1194 = vmatpush.msra.mxu0 0.0
    %1195 = vmatpush.msra.mxu0 0.0
    %1196 = vmatpush.msra.mxu0 0.0
    %1197 = vmatpush.msra.mxu0 0.0
    %1198 = vmatpush.msra.mxu0 0.0
    %1199 = vmatpush.msra.mxu0 0.0
    %1200 = vmatpush.msra.mxu0 0.0
    %1201 = vmatpush.msra.mxu0 0.0
    %1202 = vmatpush.msra.mxu0 0.0
    %1203 = vmatpush.msra.mxu0 0.0
    %1204 = vmatpush.msra.mxu0 0.0
    %1205 = vmatpush.msra.mxu0 0.0
    %1206 = vmatpush.msra.mxu0 %v223
    %1207 = vmatpush.msra.mxu0 %v222
    %1208 = vmatpush.msra.mxu0 %v221
    %1209 = vmatpush.msra.mxu0 %v220
    %1210 = vmatmul.f32.gmra.mxu0 %v1192
    %v1211 = vpop.f32.mrf.mxu0
    %v1212 = vadd.f32 0.0, %v1211
    %1213 = vdwg.mxu0
    %v1215 = vrot.slane %v1212, 6
    %v1217 = vadd.f32 %v184, %v1215
    %v1218 = vxor.u32 %v1217, 2147483648
    %v1219 = vmul.f32 %v1218, 1.442695
    %v1220 = vpow.pop %v1219
    %v1221 = vadd.f32 %v1220, 1.0
    %v1222 = vrcp.pop %v1221
    %v1223 = vmul.f32 %v1221, %v1222
    %v1224 = vsub.f32 1.0, %v1223
    %v1225 = vmul.f32 %v1222, %v1224
    %v1226 = vadd.f32 %v1222, %v1225
    %vm1227 = vweird.f32 %v1221
    %vm1228 = vweird.f32 %v1222
    %vm1229 = vmor %vm1227, %vm1228
    %v1230 = vsel %vm1229, %v1222, %v1226
    %v1231 = vand.u32 2147483647, %v1221
    %vm1232 = vcmp.eq.f32.partialorder %v1231, 8.507059e+37
    %v1233 = vand.u32 %v1221, 2147483648
    %v1234 = vor.u32 1.1754944e-38, %v1233
    %v1235 = vsel %vm1232, %v1234, %v1230
    %v1236 = vmul.f32 1.0, %v1235
    %v1237 = vtanh.pop %v1217
    %v1239 = vrot.slane %v1084, 6
    %1240 = vrot.lane.b32.xlu0 %v1239, 32
    %v1241 = vpop.permute.xlu0 %1240
    %v1243 = vmul.f32 %v1236, %v1241
    %1245 = vrot.lane.b32.xlu0 %v1237, 32
    %v1246 = vpop.permute.xlu0 %1245
    %v1248 = vmul.f32 %v1236, %v1246
    %1250 = vrot.lane.b32.xlu0 %v1248, 32
    %v1251 = vpop.permute.xlu0 %1250
    %v1253 = vadd.f32 %v1243, %v1251
    %v1254 = vtanh.pop %v1253
    %1256 = vrot.lane.b32.xlu0 %v1254, 32
    %v1257 = vpop.permute.xlu0 %1256
    %v1259 = vmul.f32 %v1236, %v1257
    %v1260 = vrot.slane %v1077, 6
    %1261 = vrot.lane.b32.xlu0 %v1260, 64
    %v1262 = vpop.permute.xlu0 %1261
    %v1264 = vsub.f32 %v1259, %v1262
    %v1265 = vmul.f32 %v1070, %v1264
    %v1267 = vrot.slane %v1265, 2
    %1268 = vrot.lane.b32.xlu0 %v1267, 64
    %v1269 = vpop.permute.xlu0 %1268
    %v1271 = vadd.f32 %v1077, %v1269
    %v1272 = vsub.f32 %v1253, %v1241
    %v1273 = vmul.f32 %v1070, %v1272
    %v1275 = vrot.slane %v1273, 2
    %1276 = vrot.lane.b32.xlu0 %v1275, 96
    %v1277 = vpop.permute.xlu0 %1276
    %v1279 = vadd.f32 %v1084, %v1277
    %v1280 = vmul.f32 %v1070, %v1259
    %1282 = vrot.lane.b32.xlu0 %v1280, 64
    %v1283 = vpop.permute.xlu0 %1282
    %1285 = vst.msk [vmem:[%s10 + $0x8] sm:$0xc] %vm527, %v1283
    %v1287 = vsel %vm237, %v1176, 0
    %1289 = vmatpush.msra.mxu0 0.0
    %1290 = vmatpush.msra.mxu0 0.0
    %1291 = vmatpush.msra.mxu0 0.0
    %1292 = vmatpush.msra.mxu0 0.0
    %1293 = vmatpush.msra.mxu0 0.0
    %1294 = vmatpush.msra.mxu0 0.0
    %1295 = vmatpush.msra.mxu0 0.0
    %1296 = vmatpush.msra.mxu0 0.0
    %1297 = vmatpush.msra.mxu0 0.0
    %1298 = vmatpush.msra.mxu0 0.0
    %1299 = vmatpush.msra.mxu0 0.0
    %1300 = vmatpush.msra.mxu0 0.0
    %1301 = vmatpush.msra.mxu0 %v228
    %1302 = vmatpush.msra.mxu0 %v227
    %1303 = vmatpush.msra.mxu0 %v226
    %1304 = vmatpush.msra.mxu0 %v225
    %1305 = vmatmul.f32.gmra.mxu0 %v1287
    %v1306 = vpop.f32.mrf.mxu0
    %v1307 = vadd.f32 0.0, %v1306
    %1308 = vdwg.mxu0
    %v1310 = vrot.slane %v1307, 4
    %v1312 = vadd.f32 %v215, %v1310
    %v1313 = vxor.u32 %v1312, 2147483648
    %v1314 = vmul.f32 %v1313, 1.442695
    %v1315 = vpow.pop %v1314
    %v1316 = vadd.f32 %v1315, 1.0
    %v1317 = vrcp.pop %v1316
    %v1318 = vmul.f32 %v1316, %v1317
    %v1319 = vsub.f32 1.0, %v1318
    %v1320 = vmul.f32 %v1317, %v1319
    %v1321 = vadd.f32 %v1317, %v1320
    %vm1322 = vweird.f32 %v1316
    %vm1323 = vweird.f32 %v1317
    %vm1324 = vmor %vm1322, %vm1323
    %v1325 = vsel %vm1324, %v1317, %v1321
    %v1326 = vand.u32 2147483647, %v1316
    %vm1327 = vcmp.eq.f32.partialorder %v1326, 8.507059e+37
    %v1328 = vand.u32 %v1316, 2147483648
    %v1329 = vor.u32 1.1754944e-38, %v1328
    %v1330 = vsel %vm1327, %v1329, %v1325
    %v1331 = vmul.f32 1.0, %v1330
    %v1332 = vtanh.pop %v1312
    %v1334 = vrot.slane %v1184, 4
    %1335 = vrot.lane.b32.xlu0 %v1334, 32
    %v1336 = vpop.permute.xlu0 %1335
    %v1338 = vmul.f32 %v1331, %v1336
    %1340 = vrot.lane.b32.xlu0 %v1332, 32
    %v1341 = vpop.permute.xlu0 %1340
    %v1343 = vmul.f32 %v1331, %v1341
    %1345 = vrot.lane.b32.xlu0 %v1343, 32
    %v1346 = vpop.permute.xlu0 %1345
    %v1348 = vadd.f32 %v1338, %v1346
    %v1349 = vtanh.pop %v1348
    %1351 = vrot.lane.b32.xlu0 %v1349, 32
    %v1352 = vpop.permute.xlu0 %1351
    %v1354 = vmul.f32 %v1331, %v1352
    %v1355 = vrot.slane %v1176, 4
    %1356 = vrot.lane.b32.xlu0 %v1355, 64
    %v1357 = vpop.permute.xlu0 %1356
    %v1359 = vsub.f32 %v1354, %v1357
    %v1360 = vmul.f32 %v1168, %v1359
    %v1362 = vrot.slane %v1360, 4
    %1363 = vrot.lane.b32.xlu0 %v1362, 64
    %v1364 = vpop.permute.xlu0 %1363
    %v1366 = vadd.f32 %v1176, %v1364
    %v1367 = vsub.f32 %v1348, %v1336
    %v1368 = vmul.f32 %v1168, %v1367
    %v1370 = vrot.slane %v1368, 4
    %1371 = vrot.lane.b32.xlu0 %v1370, 96
    %v1372 = vpop.permute.xlu0 %1371
    %v1374 = vadd.f32 %v1184, %v1372
    %v1375 = vmul.f32 %v1168, %v1354
    %1377 = vrot.lane.b32.xlu0 %v1375, 64
    %v1378 = vpop.permute.xlu0 %1377
    %1380 = vst.msk [vmem:[%s126] sm:$0x30] %vm623, %v1378
    %v1382 = vsel %vm237, %v1271, 0
    %1384 = vmatpush.msra.mxu0 0.0
    %1385 = vmatpush.msra.mxu0 0.0
    %1386 = vmatpush.msra.mxu0 0.0
    %1387 = vmatpush.msra.mxu0 0.0
    %1388 = vmatpush.msra.mxu0 0.0
    %1389 = vmatpush.msra.mxu0 0.0
    %1390 = vmatpush.msra.mxu0 0.0
    %1391 = vmatpush.msra.mxu0 0.0
    %1392 = vmatpush.msra.mxu0 0.0
    %1393 = vmatpush.msra.mxu0 0.0
    %1394 = vmatpush.msra.mxu0 0.0
    %1395 = vmatpush.msra.mxu0 0.0
    %1396 = vmatpush.msra.mxu0 %v223
    %1397 = vmatpush.msra.mxu0 %v222
    %1398 = vmatpush.msra.mxu0 %v221
    %1399 = vmatpush.msra.mxu0 %v220
    %1400 = vmatmul.f32.gmra.mxu0 %v1382
    %v1401 = vpop.f32.mrf.mxu0
    %v1402 = vadd.f32 0.0, %v1401
    %1403 = vdwg.mxu0
    %v1405 = vrot.slane %v1402, 4
    %v1407 = vadd.f32 %v184, %v1405
    %v1408 = vxor.u32 %v1407, 2147483648
    %v1409 = vmul.f32 %v1408, 1.442695
    %v1410 = vpow.pop %v1409
    %v1411 = vadd.f32 %v1410, 1.0
    %v1412 = vrcp.pop %v1411
    %v1413 = vmul.f32 %v1411, %v1412
    %v1414 = vsub.f32 1.0, %v1413
    %v1415 = vmul.f32 %v1412, %v1414
    %v1416 = vadd.f32 %v1412, %v1415
    %vm1417 = vweird.f32 %v1411
    %vm1418 = vweird.f32 %v1412
    %vm1419 = vmor %vm1417, %vm1418
    %v1420 = vsel %vm1419, %v1412, %v1416
    %v1421 = vand.u32 2147483647, %v1411
    %vm1422 = vcmp.eq.f32.partialorder %v1421, 8.507059e+37
    %v1423 = vand.u32 %v1411, 2147483648
    %v1424 = vor.u32 1.1754944e-38, %v1423
    %v1425 = vsel %vm1422, %v1424, %v1420
    %v1426 = vmul.f32 1.0, %v1425
    %v1427 = vtanh.pop %v1407
    %v1429 = vrot.slane %v1279, 4
    %1430 = vrot.lane.b32.xlu0 %v1429, 32
    %v1431 = vpop.permute.xlu0 %1430
    %v1433 = vmul.f32 %v1426, %v1431
    %1435 = vrot.lane.b32.xlu0 %v1427, 32
    %v1436 = vpop.permute.xlu0 %1435
    %v1438 = vmul.f32 %v1426, %v1436
    %1440 = vrot.lane.b32.xlu0 %v1438, 32
    %v1441 = vpop.permute.xlu0 %1440
    %v1443 = vadd.f32 %v1433, %v1441
    %v1444 = vtanh.pop %v1443
    %1446 = vrot.lane.b32.xlu0 %v1444, 32
    %v1447 = vpop.permute.xlu0 %1446
    %v1449 = vmul.f32 %v1426, %v1447
    %v1450 = vrot.slane %v1271, 4
    %1451 = vrot.lane.b32.xlu0 %v1450, 64
    %v1452 = vpop.permute.xlu0 %1451
    %v1454 = vsub.f32 %v1449, %v1452
    %v1455 = vmul.f32 %v1070, %v1454
    %v1457 = vrot.slane %v1455, 4
    %1458 = vrot.lane.b32.xlu0 %v1457, 64
    %v1459 = vpop.permute.xlu0 %1458
    %v1461 = vadd.f32 %v1271, %v1459
    %v1462 = vsub.f32 %v1443, %v1431
    %v1463 = vmul.f32 %v1070, %v1462
    %v1465 = vrot.slane %v1463, 4
    %1466 = vrot.lane.b32.xlu0 %v1465, 96
    %v1467 = vpop.permute.xlu0 %1466
    %v1469 = vadd.f32 %v1279, %v1467
    %v1470 = vmul.f32 %v1070, %v1449
    %1472 = vrot.lane.b32.xlu0 %v1470, 64
    %v1473 = vpop.permute.xlu0 %1472
    %1475 = vst.msk [vmem:[%s10 + $0x8] sm:$0x30] %vm623, %v1473
    %v1477 = vsel %vm237, %v1366, 0
    %1479 = vmatpush.msra.mxu0 0.0
    %1480 = vmatpush.msra.mxu0 0.0
    %1481 = vmatpush.msra.mxu0 0.0
    %1482 = vmatpush.msra.mxu0 0.0
    %1483 = vmatpush.msra.mxu0 0.0
    %1484 = vmatpush.msra.mxu0 0.0
    %1485 = vmatpush.msra.mxu0 0.0
    %1486 = vmatpush.msra.mxu0 0.0
    %1487 = vmatpush.msra.mxu0 0.0
    %1488 = vmatpush.msra.mxu0 0.0
    %1489 = vmatpush.msra.mxu0 0.0
    %1490 = vmatpush.msra.mxu0 0.0
    %1491 = vmatpush.msra.mxu0 %v228
    %1492 = vmatpush.msra.mxu0 %v227
    %1493 = vmatpush.msra.mxu0 %v226
    %1494 = vmatpush.msra.mxu0 %v225
    %1495 = vmatmul.f32.gmra.mxu0 %v1477
    %v1496 = vpop.f32.mrf.mxu0
    %v1497 = vadd.f32 0.0, %v1496
    %1498 = vdwg.mxu0
    %v1500 = vrot.slane %v1497, 6
    %v1502 = vadd.f32 %v215, %v1500
    %v1503 = vxor.u32 %v1502, 2147483648
    %v1504 = vmul.f32 %v1503, 1.442695
    %v1505 = vpow.pop %v1504
    %v1506 = vadd.f32 %v1505, 1.0
    %v1507 = vrcp.pop %v1506
    %v1508 = vmul.f32 %v1506, %v1507
    %v1509 = vsub.f32 1.0, %v1508
    %v1510 = vmul.f32 %v1507, %v1509
    %v1511 = vadd.f32 %v1507, %v1510
    %vm1512 = vweird.f32 %v1506
    %vm1513 = vweird.f32 %v1507
    %vm1514 = vmor %vm1512, %vm1513
    %v1515 = vsel %vm1514, %v1507, %v1511
    %v1516 = vand.u32 2147483647, %v1506
    %vm1517 = vcmp.eq.f32.partialorder %v1516, 8.507059e+37
    %v1518 = vand.u32 %v1506, 2147483648
    %v1519 = vor.u32 1.1754944e-38, %v1518
    %v1520 = vsel %vm1517, %v1519, %v1515
    %v1521 = vmul.f32 1.0, %v1520
    %v1522 = vtanh.pop %v1502
    %v1524 = vrot.slane %v1374, 6
    %1525 = vrot.lane.b32.xlu0 %v1524, 32
    %v1526 = vpop.permute.xlu0 %1525
    %v1528 = vmul.f32 %v1521, %v1526
    %1530 = vrot.lane.b32.xlu0 %v1522, 32
    %v1531 = vpop.permute.xlu0 %1530
    %v1533 = vmul.f32 %v1521, %v1531
    %1535 = vrot.lane.b32.xlu0 %v1533, 32
    %v1536 = vpop.permute.xlu0 %1535
    %v1538 = vadd.f32 %v1528, %v1536
    %v1539 = vtanh.pop %v1538
    %1541 = vrot.lane.b32.xlu0 %v1539, 32
    %v1542 = vpop.permute.xlu0 %1541
    %v1544 = vmul.f32 %v1521, %v1542
    %v1545 = vrot.slane %v1366, 6
    %1546 = vrot.lane.b32.xlu0 %v1545, 64
    %v1547 = vpop.permute.xlu0 %1546
    %v1549 = vsub.f32 %v1544, %v1547
    %v1550 = vmul.f32 %v1168, %v1549
    %v1552 = vrot.slane %v1550, 2
    %1553 = vrot.lane.b32.xlu0 %v1552, 64
    %v1554 = vpop.permute.xlu0 %1553
    %v1556 = vadd.f32 %v1366, %v1554
    %v1557 = vsub.f32 %v1538, %v1526
    %v1558 = vmul.f32 %v1168, %v1557
    %v1560 = vrot.slane %v1558, 2
    %1561 = vrot.lane.b32.xlu0 %v1560, 96
    %v1562 = vpop.permute.xlu0 %1561
    %v1564 = vadd.f32 %v1374, %v1562
    %v1565 = vmul.f32 %v1168, %v1544
    %1567 = vrot.lane.b32.xlu0 %v1565, 64
    %v1568 = vpop.permute.xlu0 %1567
    %1570 = vst.msk [vmem:[%s126] sm:$0xc] %vm527, %v1568
    %v1572 = vsel %vm237, %v1461, 0
    %1574 = vmatpush.msra.mxu0 0.0
    %1575 = vmatpush.msra.mxu0 0.0
    %1576 = vmatpush.msra.mxu0 0.0
    %1577 = vmatpush.msra.mxu0 0.0
    %1578 = vmatpush.msra.mxu0 0.0
    %1579 = vmatpush.msra.mxu0 0.0
    %1580 = vmatpush.msra.mxu0 0.0
    %1581 = vmatpush.msra.mxu0 0.0
    %1582 = vmatpush.msra.mxu0 0.0
    %1583 = vmatpush.msra.mxu0 0.0
    %1584 = vmatpush.msra.mxu0 0.0
    %1585 = vmatpush.msra.mxu0 0.0
    %1586 = vmatpush.msra.mxu0 %v223
    %1587 = vmatpush.msra.mxu0 %v222
    %1588 = vmatpush.msra.mxu0 %v221
    %1589 = vmatpush.msra.mxu0 %v220
    %1590 = vmatmul.f32.gmra.mxu0 %v1572
    %v1591 = vpop.f32.mrf.mxu0
    %v1592 = vadd.f32 0.0, %v1591
    %1593 = vdwg.mxu0
    %v1595 = vrot.slane %v1592, 2
    %v1597 = vadd.f32 %v184, %v1595
    %v1598 = vxor.u32 %v1597, 2147483648
    %v1599 = vmul.f32 %v1598, 1.442695
    %v1600 = vpow.pop %v1599
    %v1601 = vadd.f32 %v1600, 1.0
    %v1602 = vrcp.pop %v1601
    %v1603 = vmul.f32 %v1601, %v1602
    %v1604 = vsub.f32 1.0, %v1603
    %v1605 = vmul.f32 %v1602, %v1604
    %v1606 = vadd.f32 %v1602, %v1605
    %vm1607 = vweird.f32 %v1601
    %vm1608 = vweird.f32 %v1602
    %vm1609 = vmor %vm1607, %vm1608
    %v1610 = vsel %vm1609, %v1602, %v1606
    %v1611 = vand.u32 2147483647, %v1601
    %vm1612 = vcmp.eq.f32.partialorder %v1611, 8.507059e+37
    %v1613 = vand.u32 %v1601, 2147483648
    %v1614 = vor.u32 1.1754944e-38, %v1613
    %v1615 = vsel %vm1612, %v1614, %v1610
    %v1616 = vmul.f32 1.0, %v1615
    %v1617 = vtanh.pop %v1597
    %v1619 = vrot.slane %v1469, 2
    %1620 = vrot.lane.b32.xlu0 %v1619, 32
    %v1621 = vpop.permute.xlu0 %1620
    %v1623 = vmul.f32 %v1616, %v1621
    %1625 = vrot.lane.b32.xlu0 %v1617, 32
    %v1626 = vpop.permute.xlu0 %1625
    %v1628 = vmul.f32 %v1616, %v1626
    %1630 = vrot.lane.b32.xlu0 %v1628, 32
    %v1631 = vpop.permute.xlu0 %1630
    %v1633 = vadd.f32 %v1623, %v1631
    %v1634 = vtanh.pop %v1633
    %1636 = vrot.lane.b32.xlu0 %v1634, 32
    %v1637 = vpop.permute.xlu0 %1636
    %v1639 = vmul.f32 %v1616, %v1637
    %v1640 = vrot.slane %v1461, 2
    %1641 = vrot.lane.b32.xlu0 %v1640, 64
    %v1642 = vpop.permute.xlu0 %1641
    %v1644 = vsub.f32 %v1639, %v1642
    %v1645 = vmul.f32 %v1070, %v1644
    %v1647 = vrot.slane %v1645, 6
    %1648 = vrot.lane.b32.xlu0 %v1647, 64
    %v1649 = vpop.permute.xlu0 %1648
    %v1651 = vadd.f32 %v1461, %v1649
    %v1652 = vsub.f32 %v1633, %v1621
    %v1653 = vmul.f32 %v1070, %v1652
    %v1655 = vrot.slane %v1653, 6
    %1656 = vrot.lane.b32.xlu0 %v1655, 96
    %v1657 = vpop.permute.xlu0 %1656
    %v1659 = vadd.f32 %v1469, %v1657
    %v1660 = vmul.f32 %v1070, %v1639
    %1662 = vrot.lane.b32.xlu0 %v1660, 64
    %v1663 = vpop.permute.xlu0 %1662
    %1665 = vst.msk [vmem:[%s10 + $0x8] sm:$0xc0] %vm431, %v1663
    %v1667 = vsel %vm237, %v1556, 0
    %1669 = vmatpush.msra.mxu0 0.0
    %1670 = vmatpush.msra.mxu0 0.0
    %1671 = vmatpush.msra.mxu0 0.0
    %1672 = vmatpush.msra.mxu0 0.0
    %1673 = vmatpush.msra.mxu0 0.0
    %1674 = vmatpush.msra.mxu0 0.0
    %1675 = vmatpush.msra.mxu0 0.0
    %1676 = vmatpush.msra.mxu0 0.0
    %1677 = vmatpush.msra.mxu0 0.0
    %1678 = vmatpush.msra.mxu0 0.0
    %1679 = vmatpush.msra.mxu0 0.0
    %1680 = vmatpush.msra.mxu0 0.0
    %1681 = vmatpush.msra.mxu0 %v228
    %1682 = vmatpush.msra.mxu0 %v227
    %1683 = vmatpush.msra.mxu0 %v226
    %1684 = vmatpush.msra.mxu0 %v225
    %1685 = vmatmul.f32.gmra.mxu0 %v1667
    %v1686 = vpop.f32.mrf.mxu0
    %v1687 = vadd.f32 0.0, %v1686
    %1688 = vdwg.mxu0
    %v1689 = vadd.f32 %v215, %v1687
    %v1690 = vxor.u32 %v1689, 2147483648
    %v1691 = vmul.f32 %v1690, 1.442695
    %v1692 = vpow.pop %v1691
    %v1693 = vadd.f32 %v1692, 1.0
    %v1694 = vrcp.pop %v1693
    %v1695 = vmul.f32 %v1693, %v1694
    %v1696 = vsub.f32 1.0, %v1695
    %v1697 = vmul.f32 %v1694, %v1696
    %v1698 = vadd.f32 %v1694, %v1697
    %vm1699 = vweird.f32 %v1693
    %vm1700 = vweird.f32 %v1694
    %vm1701 = vmor %vm1699, %vm1700
    %v1702 = vsel %vm1701, %v1694, %v1698
    %v1703 = vand.u32 2147483647, %v1693
    %vm1704 = vcmp.eq.f32.partialorder %v1703, 8.507059e+37
    %v1705 = vand.u32 %v1693, 2147483648
    %v1706 = vor.u32 1.1754944e-38, %v1705
    %v1707 = vsel %vm1704, %v1706, %v1702
    %v1708 = vmul.f32 1.0, %v1707
    %v1709 = vtanh.pop %v1689
    %1711 = vrot.lane.b32.xlu0 %v1564, 32
    %v1712 = vpop.permute.xlu0 %1711
    %v1714 = vmul.f32 %v1708, %v1712
    %1716 = vrot.lane.b32.xlu0 %v1709, 32
    %v1717 = vpop.permute.xlu0 %1716
    %v1719 = vmul.f32 %v1708, %v1717
    %1721 = vrot.lane.b32.xlu0 %v1719, 32
    %v1722 = vpop.permute.xlu0 %1721
    %v1724 = vadd.f32 %v1714, %v1722
    %v1725 = vtanh.pop %v1724
    %1727 = vrot.lane.b32.xlu0 %v1725, 32
    %v1728 = vpop.permute.xlu0 %1727
    %v1730 = vmul.f32 %v1708, %v1728
    %1731 = vrot.lane.b32.xlu0 %v1556, 64
    %v1732 = vpop.permute.xlu0 %1731
    %v1734 = vsub.f32 %v1730, %v1732
    %v1735 = vmul.f32 %v1168, %v1734
    %1737 = vrot.lane.b32.xlu0 %v1735, 64
    %v1738 = vpop.permute.xlu0 %1737
    %v1740 = vadd.f32 %v1556, %v1738
    %v1741 = vsub.f32 %v1724, %v1712
    %v1742 = vmul.f32 %v1168, %v1741
    %1744 = vrot.lane.b32.xlu0 %v1742, 96
    %v1745 = vpop.permute.xlu0 %1744
    %v1747 = vadd.f32 %v1564, %v1745
    %v1748 = vmul.f32 %v1168, %v1730
    %1750 = vrot.lane.b32.xlu0 %v1748, 64
    %v1751 = vpop.permute.xlu0 %1750
    %1753 = vst.msk [vmem:[%s126] sm:$0x3] %vm330, %v1751
    %1754 = vst.msk [vmem:[#allocation2] sm:$0x3] %vm330, %v1651
    %1755 = vst.msk [vmem:[#allocation3] sm:$0x3] %vm330, %v1659
    %1756 = vst.msk [vmem:[#allocation4] sm:$0x3] %vm330, %v1740
    %1757 = vst.msk [vmem:[#allocation5] sm:$0x3] %vm330, %v1747
    %1758 = vst.msk [vmem:[#allocation11] sm:$0x3] %vm330, %v1651
    %s1759 = scalar_lea.vmem [#allocation11], 2
    %1760 = vst.msk [vmem:[%s1759] sm:$0x3] %vm330, %v1740
    %s1761 = ssub.s32 0, 0
    %s1762 = smul.u32 2, %s1761
    %p1763 = scmp.lt.s32.totalorder %s1762, 1
    %s1764 = scalar_select %p1763, %s1762, 1
    %s1765 = smul.addr %s1764, 8
    %s1766 = scalar_lea.vmem %s11, %s1765
    // Predicated region
    $region54: #{bilstm_bert_forward.2} parent=1 // pred_check
      _
    $region55: #{bilstm_bert_forward.2} parent=1 // pred_check_branch
      %1768 = sbr.rel (0) target = $region57
    $region56: #{bilstm_bert_forward.2} parent=1 // pred_region
      _
    $region57: #{bilstm_bert_forward.2} parent=1 // pred_fallthru
      _
    // Predicated region
    $region58: #{bilstm_bert_forward.2} parent=1 // pred_check
      _
    $region59: #{bilstm_bert_forward.2} parent=1 // pred_check_branch
      %1770 = sbr.rel (0) target = $region61
    $region60: #{bilstm_bert_forward.2} parent=1 // pred_region
      %s1771 = ssub.s32 0, 0
      %s1772 = smul.u32 2, %s1771
    $region61: #{bilstm_bert_forward.2} parent=1 // pred_fallthru
      _
    // Predicated region
    $region62: #{bilstm_bert_forward.2} parent=1 // pred_check
      _
    $region63: #{bilstm_bert_forward.2} parent=1 // pred_check_branch
      %1774 = sbr.rel (0) target = $region65
    $region64: #{bilstm_bert_forward.2} parent=1 // pred_region
      %1776 = vsyncadd [#allocation8], 0
      %s1777 = sshll.u32 [#allocation11], 4
      %s1778 = int_to_ptr.vmem [resolvable:$true] %s1777
      %s1779 = sshll.u32 %s12, 4
      %s1780 = int_to_ptr.hbm [resolvable:$true] %s1779
      %1785 = dma.vmem_to_hbm [thread:$0]  %s1778, 64, %s1780, [#allocation8], 32, 32, 2
    $region65: #{bilstm_bert_forward.2} parent=1 // pred_fallthru
      _
    // Predicated region
    $region66: #{bilstm_bert_forward.2} parent=1 // pred_check
      _
    $region67: #{bilstm_bert_forward.2} parent=1 // pred_check_branch
      %1787 = sbr.rel (0) target = $region69
    $region68: #{bilstm_bert_forward.2} parent=1 // pred_region
      _
    $region69: #{bilstm_bert_forward.2} parent=1 // pred_fallthru
      _
    // Predicated region
    $region70: #{bilstm_bert_forward.2} parent=1 // pred_check
      _
    $region71: #{bilstm_bert_forward.2} parent=1 // pred_check_branch
      %1789 = sbr.rel (0) target = $region73
    $region72: #{bilstm_bert_forward.2} parent=1 // pred_region
      %s1790 = ssub.s32 0, 0
      %s1791 = smul.u32 2, %s1790
      %p1792 = scmp.lt.s32.totalorder %s1791, 1
      %s1793 = scalar_select %p1792, %s1791, 1
      %s1794 = smul.addr %s1793, 8
      %s1795 = scalar_lea.vmem %s11, %s1794
    $region73: #{bilstm_bert_forward.2} parent=1 // pred_fallthru
      _
    // Predicated region
    $region74: #{bilstm_bert_forward.2} parent=1 // pred_check
      _
    $region75: #{bilstm_bert_forward.2} parent=1 // pred_check_branch
      %1797 = sbr.rel (0) target = $region77
    $region76: #{bilstm_bert_forward.2} parent=1 // pred_region
      %1799 = dma.done [#allocation8], 64
    $region77: #{bilstm_bert_forward.2} parent=1 // pred_fallthru
      _
    %1800 = vsyncpa [#allocation7], 1
    %1801 = vsyncpa [#allocation10], 1
    %1802 = vsyncpa [#allocation8], 1

// kernel: bilstm_bert_forward.3
$region0: #{bilstm_bert_forward.3}
  #allocation0 [shape = 'u32[]', space=smem, size = 0x4, offset = 0x4, fixed_abs, tag = 'smem constant byte address 0x4 - core index']
  #allocation1 [shape = 'u32[72,128]{1,0:T(1,128)}', space=vmem, size = 0x9000, scoped, tag = 'internal scratch']
  #allocation2 [shape = 'f32[2,32]{1,0:T(2,128)}', space=vmem, size = 0x400, scoped, tag = 'scratch operand']
  #allocation3 [shape = 'f32[2,32]{1,0:T(2,128)}', space=vmem, size = 0x400, scoped, tag = 'scratch operand']
  #allocation4 [shape = 'f32[2,32]{1,0:T(2,128)}', space=vmem, size = 0x400, scoped, tag = 'scratch operand']
  #allocation5 [shape = 'f32[2,32]{1,0:T(2,128)}', space=vmem, size = 0x400, scoped, tag = 'scratch operand']
  %s0 = inlined_call_operand.vmem [shape: f32[16,32], index: 0, kind: input, shape index: {}, may-alias: {0,2}]
  %s1 = inlined_call_operand.vmem [shape: f32[16,32], index: 1, kind: input, shape index: {}, may-alias: {1,3}]
  %s2 = inlined_call_operand.vmem [shape: f32[16,32], index: 2, kind: input, shape index: {}, may-alias: {0,2}]
  %s3 = inlined_call_operand.vmem [shape: f32[16,32], index: 3, kind: input, shape index: {}, may-alias: {1,3}]
  %s4 = inlined_call_operand.hbm [shape: f32[2,32,128], index: 4, kind: input, shape index: {}]
  %s5 = inlined_call_operand.hbm [shape: f32[2,32,128], index: 5, kind: input, shape index: {}]
  %s6 = inlined_call_operand.hbm [shape: f32[2,32,128], index: 6, kind: input, shape index: {}]
  %s7 = inlined_call_operand.vmem [shape: f32[2,1,128], index: 7, kind: input, shape index: {}]
  %s8 = inlined_call_operand.vmem [shape: f32[16,1], index: 8, kind: input, shape index: {}, may-alias: {8,9}]
  %s9 = inlined_call_operand.vmem [shape: f32[16,1], index: 9, kind: input, shape index: {}, may-alias: {8,9}]
  %s10 = inlined_call_operand.vmem [shape: f32[2,2,32], index: 10, kind: input, shape index: {}]
  %s11 = inlined_call_operand.hbm [shape: f32[2,2,32], index: 11, kind: input, shape index: {}]
  %s12 = inlined_call_operand.hbm [shape: f32[16,32], index: 12, kind: output, shape index: {0}]
  %s13 = inlined_call_operand.hbm [shape: f32[16,32], index: 13, kind: output, shape index: {1}]
  %s14 = inlined_call_operand.vmem [shape: f32[2,2,32], index: 14, kind: output, shape index: {2}]
  %15 = xla_tuple %s12, %s13, %s14
  %s16 = sld [smem:[#allocation0]]
  $region94: #{bilstm_bert_forward.3} parent=0
    _
  %s18 = ssub.s32 1, %s16
  %s19 = scalar_select 0, %s18, %s16
  $region1: #{bilstm_bert_forward.3} parent=0
    #allocation6 [shape = 'u8[32768]{0}', space=vmem, size = 0x8000, scoped, tag = 'input window, operand 4, single buffered']
    #allocation7 [shape = 's32[1]{0}', space=sflag, size = 0x4, scoped, tag = 'scoped memory for bilstm_bert_forward.3']
    #allocation8 [shape = 's32[1]{0}', space=sflag, size = 0x4, scoped, tag = 'scoped memory for bilstm_bert_forward.3']
    #allocation9 [shape = 'u8[32768]{0}', space=vmem, size = 0x8000, scoped, tag = 'input window, operand 5, single buffered']
    #allocation10 [shape = 's32[1]{0}', space=sflag, size = 0x4, scoped, tag = 'scoped memory for bilstm_bert_forward.3']
    #allocation11 [shape = 'u8[32768]{0}', space=vmem, size = 0x8000, scoped, tag = 'input window, operand 6, single buffered']
    #allocation12 [shape = 'u8[2048]{0}', space=vmem, size = 0x800, scoped, tag = 'input window, operand 11, single buffered']
    #allocation13 [shape = 's32[1]{0}', space=sflag, size = 0x4, scoped, tag = 'scoped memory for bilstm_bert_forward.3']
    #allocation14 [shape = 'u8[8192]{0}', space=vmem, size = 0x2000, scoped, tag = 'output window, operand 0, single buffered']
    #allocation15 [shape = 'u8[8192]{0}', space=vmem, size = 0x2000, scoped, tag = 'output window, operand 1, single buffered']
    #allocation16 [shape = 's32[1]{0}', space=sflag, size = 0x4, scoped, tag = 'scoped memory for bilstm_bert_forward.3']
    %20 = vsyncpa [#allocation7], 0
    %21 = vsyncpa [#allocation10], 0
    %22 = vsyncpa [#allocation13], 0
    %23 = vsyncpa [#allocation8], 0
    %24 = vsyncpa [#allocation16], 0
    // Predicated region
    $region2: #{bilstm_bert_forward.3} parent=1 // pred_check
      _
    $region3: #{bilstm_bert_forward.3} parent=1 // pred_check_branch
      %26 = sbr.rel (0) target = $region5
    $region4: #{bilstm_bert_forward.3} parent=1 // pred_region
      _
    $region5: #{bilstm_bert_forward.3} parent=1 // pred_fallthru
      _
    // Predicated region
    $region6: #{bilstm_bert_forward.3} parent=1 // pred_check
      _
    $region7: #{bilstm_bert_forward.3} parent=1 // pred_check_branch
      %28 = sbr.rel (0) target = $region9
    $region8: #{bilstm_bert_forward.3} parent=1 // pred_region
      _
    $region9: #{bilstm_bert_forward.3} parent=1 // pred_fallthru
      _
    // Predicated region
    $region10: #{bilstm_bert_forward.3} parent=1 // pred_check
      _
    $region11: #{bilstm_bert_forward.3} parent=1 // pred_check_branch
      %30 = sbr.rel (0) target = $region13
    $region12: #{bilstm_bert_forward.3} parent=1 // pred_region
      %s31 = ssub.s32 0, 0
      %s32 = smul.u32 2, %s31
      %p33 = scmp.lt.s32.totalorder %s32, 1
      %s34 = scalar_select %p33, %s32, 1
      %s35 = smul.addr %s34, 8
      %s36 = scalar_lea.vmem %s2, %s35
      %s37 = ssub.s32 0, 0
      %s38 = smul.u32 2, %s37
    $region13: #{bilstm_bert_forward.3} parent=1 // pred_fallthru
      _
    // Predicated region
    $region14: #{bilstm_bert_forward.3} parent=1 // pred_check
      _
    $region15: #{bilstm_bert_forward.3} parent=1 // pred_check_branch
      %40 = sbr.rel (0) target = $region17
    $region16: #{bilstm_bert_forward.3} parent=1 // pred_region
      %s41 = ssub.s32 0, 0
      %s42 = smul.u32 2, %s41
      %p43 = scmp.lt.s32.totalorder %s42, 1
      %s44 = scalar_select %p43, %s42, 1
      %s45 = smul.addr %s44, 8
      %s46 = scalar_lea.vmem %s3, %s45
      %s47 = ssub.s32 0, 0
      %s48 = smul.u32 2, %s47
    $region17: #{bilstm_bert_forward.3} parent=1 // pred_fallthru
      _
    // Predicated region
    $region18: #{bilstm_bert_forward.3} parent=1 // pred_check
      _
    $region19: #{bilstm_bert_forward.3} parent=1 // pred_check_branch
      %50 = sbr.rel (0) target = $region21
    $region20: #{bilstm_bert_forward.3} parent=1 // pred_region
      %52 = vsyncadd [#allocation7], 0
      %s53 = sshll.u32 %s4, 4
      %s54 = int_to_ptr.hbm [resolvable:$true] %s53
      %s55 = sshll.u32 [#allocation6], 4
      %s56 = int_to_ptr.vmem [resolvable:$true] %s55
      %61 = dma.hbm_to_vmem [thread:$0]  %s54, 1024, %s56, [#allocation7], 128, 128, 8
    $region21: #{bilstm_bert_forward.3} parent=1 // pred_fallthru
      _
    // Predicated region
    $region22: #{bilstm_bert_forward.3} parent=1 // pred_check
      _
    $region23: #{bilstm_bert_forward.3} parent=1 // pred_check_branch
      %63 = sbr.rel (0) target = $region25
    $region24: #{bilstm_bert_forward.3} parent=1 // pred_region
      %65 = vsyncadd [#allocation10], 0
      %s66 = sshll.u32 %s5, 4
      %s67 = int_to_ptr.hbm [resolvable:$true] %s66
      %s68 = sshll.u32 [#allocation9], 4
      %s69 = int_to_ptr.vmem [resolvable:$true] %s68
      %74 = dma.hbm_to_vmem [thread:$0]  %s67, 1024, %s69, [#allocation10], 128, 128, 8
    $region25: #{bilstm_bert_forward.3} parent=1 // pred_fallthru
      _
    // Predicated region
    $region26: #{bilstm_bert_forward.3} parent=1 // pred_check
      _
    $region27: #{bilstm_bert_forward.3} parent=1 // pred_check_branch
      %76 = sbr.rel (0) target = $region29
    $region28: #{bilstm_bert_forward.3} parent=1 // pred_region
      %78 = vsyncadd [#allocation10], 0
      %s79 = sshll.u32 %s6, 4
      %s80 = int_to_ptr.hbm [resolvable:$true] %s79
      %s81 = sshll.u32 [#allocation11], 4
      %s82 = int_to_ptr.vmem [resolvable:$true] %s81
      %87 = dma.hbm_to_vmem [thread:$0]  %s80, 1024, %s82, [#allocation10], 128, 128, 8
    $region29: #{bilstm_bert_forward.3} parent=1 // pred_fallthru
      _
    // Predicated region
    $region30: #{bilstm_bert_forward.3} parent=1 // pred_check
      _
    $region31: #{bilstm_bert_forward.3} parent=1 // pred_check_branch
      %89 = sbr.rel (0) target = $region33
    $region32: #{bilstm_bert_forward.3} parent=1 // pred_region
      _
    $region33: #{bilstm_bert_forward.3} parent=1 // pred_fallthru
      _
    // Predicated region
    $region34: #{bilstm_bert_forward.3} parent=1 // pred_check
      _
    $region35: #{bilstm_bert_forward.3} parent=1 // pred_check_branch
      %91 = sbr.rel (0) target = $region37
    $region36: #{bilstm_bert_forward.3} parent=1 // pred_region
      _
    $region37: #{bilstm_bert_forward.3} parent=1 // pred_fallthru
      _
    // Predicated region
    $region38: #{bilstm_bert_forward.3} parent=1 // pred_check
      _
    $region39: #{bilstm_bert_forward.3} parent=1 // pred_check_branch
      %93 = sbr.rel (0) target = $region41
    $region40: #{bilstm_bert_forward.3} parent=1 // pred_region
      %s94 = ssub.s32 0, 0
      %s95 = smul.u32 2, %s94
      %p96 = scmp.lt.s32.totalorder %s95, 1
      %s97 = scalar_select %p96, %s95, 1
      %s98 = smul.addr %s97, 8
      %s99 = scalar_lea.vmem %s9, %s98
      %s100 = ssub.s32 0, 0
      %s101 = smul.u32 2, %s100
    $region41: #{bilstm_bert_forward.3} parent=1 // pred_fallthru
      _
    // Predicated region
    $region42: #{bilstm_bert_forward.3} parent=1 // pred_check
      _
    $region43: #{bilstm_bert_forward.3} parent=1 // pred_check_branch
      %103 = sbr.rel (0) target = $region45
    $region44: #{bilstm_bert_forward.3} parent=1 // pred_region
      _
    $region45: #{bilstm_bert_forward.3} parent=1 // pred_fallthru
      _
    // Predicated region
    $region46: #{bilstm_bert_forward.3} parent=1 // pred_check
      _
    $region47: #{bilstm_bert_forward.3} parent=1 // pred_check_branch
      %105 = sbr.rel (0) target = $region49
    $region48: #{bilstm_bert_forward.3} parent=1 // pred_region
      %107 = vsyncadd [#allocation13], 0
      %s108 = sshll.u32 %s11, 4
      %s109 = int_to_ptr.hbm [resolvable:$true] %s108
      %s110 = sshll.u32 [#allocation12], 4
      %s111 = int_to_ptr.vmem [resolvable:$true] %s110
      %116 = dma.hbm_to_vmem [thread:$0]  %s109, 64, %s111, [#allocation13], 32, 32, 2
    $region49: #{bilstm_bert_forward.3} parent=1 // pred_fallthru
      _
    // Predicated region
    $region50: #{bilstm_bert_forward.3} parent=1 // pred_check
      _
    $region51: #{bilstm_bert_forward.3} parent=1 // pred_check_branch
      %118 = sbr.rel (0) target = $region53
    $region52: #{bilstm_bert_forward.3} parent=1 // pred_region
      %120 = dma.done [#allocation7], 1024
    $region53: #{bilstm_bert_forward.3} parent=1 // pred_fallthru
      _
    // Predicated region
    $region54: #{bilstm_bert_forward.3} parent=1 // pred_check
      _
    $region55: #{bilstm_bert_forward.3} parent=1 // pred_check_branch
      %122 = sbr.rel (0) target = $region57
    $region56: #{bilstm_bert_forward.3} parent=1 // pred_region
      %124 = dma.done [#allocation10], 1024
    $region57: #{bilstm_bert_forward.3} parent=1 // pred_fallthru
      _
    // Predicated region
    $region58: #{bilstm_bert_forward.3} parent=1 // pred_check
      _
    $region59: #{bilstm_bert_forward.3} parent=1 // pred_check_branch
      %126 = sbr.rel (0) target = $region61
    $region60: #{bilstm_bert_forward.3} parent=1 // pred_region
      %128 = dma.done [#allocation10], 1024
    $region61: #{bilstm_bert_forward.3} parent=1 // pred_fallthru
      _
    // Predicated region
    $region62: #{bilstm_bert_forward.3} parent=1 // pred_check
      _
    $region63: #{bilstm_bert_forward.3} parent=1 // pred_check_branch
      %130 = sbr.rel (0) target = $region65
    $region64: #{bilstm_bert_forward.3} parent=1 // pred_region
      %132 = dma.done [#allocation13], 64
    $region65: #{bilstm_bert_forward.3} parent=1 // pred_fallthru
      _
    %s133 = ssub.s32 0, 0
    %s134 = smul.u32 2, %s133
    %p135 = scmp.lt.s32.totalorder %s134, 1
    %s136 = scalar_select %p135, %s134, 1
    %s137 = smul.addr %s136, 8
    %s138 = scalar_lea.vmem %s2, %s137
    %s139 = ssub.s32 0, 0
    %s140 = smul.u32 2, %s139
    %p141 = scmp.lt.s32.totalorder %s140, 1
    %s142 = scalar_select %p141, %s140, 1
    %s143 = smul.addr %s142, 8
    %s144 = scalar_lea.vmem %s3, %s143
    %s145 = ssub.s32 0, 0
    %s146 = smul.u32 2, %s145
    %p147 = scmp.lt.s32.totalorder %s146, 1
    %s148 = scalar_select %p147, %s146, 1
    %s149 = smul.addr %s148, 8
    %s150 = scalar_lea.vmem %s9, %s149
    %s151 = ssub.s32 0, 0
    %s152 = smul.u32 2, %s151
    %p153 = scmp.lt.s32.totalorder %s152, 1
    %s154 = scalar_select %p153, %s152, 1
    %s155 = smul.addr %s154, 8
    %s156 = scalar_lea.vmem %s2, %s155
    %s157 = ssub.s32 0, 0
    %s158 = smul.u32 2, %s157
    %s159 = ssub.s32 0, 0
    %s160 = smul.u32 2, %s159
    %p161 = scmp.lt.s32.totalorder %s160, 1
    %s162 = scalar_select %p161, %s160, 1
    %s163 = smul.addr %s162, 8
    %s164 = scalar_lea.vmem %s3, %s163
    %s165 = ssub.s32 0, 0
    %s166 = smul.u32 2, %s165
    %s167 = ssub.s32 0, 0
    %s168 = smul.u32 2, %s167
    %p169 = scmp.lt.s32.totalorder %s168, 1
    %s170 = scalar_select %p169, %s168, 1
    %s171 = smul.addr %s170, 8
    %s172 = scalar_lea.vmem %s9, %s171
    %s173 = ssub.s32 0, 0
    %s174 = smul.u32 2, %s173
    %s175 = ssub.s32 0, 0
    %s176 = smul.u32 2, %s175
    %p177 = scmp.eq.s32.totalorder 0, 0
    // Predicated region
    $region66: #{bilstm_bert_forward.3} parent=1 // pred_check
      %p178 = pneg %p177
    $region67: #{bilstm_bert_forward.3} parent=1 // pred_check_branch
      %180 = sbr.rel (%p178) target = $region69
    $region68: #{bilstm_bert_forward.3} parent=1 // pred_region
      %v181 = vld [vmem:[%s10] sm:$0x3]
      %vm182 = vcmask 254976
      %183 = vst.msk [vmem:[#allocation2] sm:$0x3] %vm182, %v181
      %v184 = vld [vmem:[#allocation12] sm:$0x3]
      %185 = vst.msk [vmem:[#allocation3] sm:$0x3] %vm182, %v184
      %s186 = scalar_lea.vmem %s10, 2
      %v187 = vld [vmem:[%s186] sm:$0x3]
      %188 = vst.msk [vmem:[#allocation4] sm:$0x3] %vm182, %v187
      %s189 = scalar_lea.vmem [#allocation12], 2
      %v190 = vld [vmem:[%s189] sm:$0x3]
      %191 = vst.msk [vmem:[#allocation5] sm:$0x3] %vm182, %v190
    $region69: #{bilstm_bert_forward.3} parent=1 // pred_fallthru
      _
    %v192 = vld [vmem:[%s0] sm:$0xff]
    %v193 = vld [vmem:[%s0 + $0x8] sm:$0xff]
    %v194 = vld [vmem:[#allocation6] sm:$0xff]
    %v195 = vld [vmem:[#allocation6 + $0x8] sm:$0xff]
    %v196 = vld [vmem:[#allocation6 + $0x10] sm:$0xff]
    %v197 = vld [vmem:[#allocation6 + $0x18] sm:$0xff]
    %v198 = vld [vmem:[%s156] sm:$0xff]
    %v199 = vld [vmem:[%s156 + $0x8] sm:$0xff]
    %v200 = vld [vmem:[#allocation9] sm:$0xff]
    %v201 = vld [vmem:[#allocation9 + $0x8] sm:$0xff]
    %v202 = vld [vmem:[#allocation9 + $0x10] sm:$0xff]
    %v203 = vld [vmem:[#allocation9 + $0x18] sm:$0xff]
    %v204 = vld [vmem:[%s1] sm:$0xff]
    %v205 = vld [vmem:[%s1 + $0x8] sm:$0xff]
    %s206 = scalar_lea.vmem [#allocation6], 32
    %v207 = vld [vmem:[%s206] sm:$0xff]
    %v208 = vld [vmem:[%s206 + $0x8] sm:$0xff]
    %v209 = vld [vmem:[%s206 + $0x10] sm:$0xff]
    %v210 = vld [vmem:[%s206 + $0x18] sm:$0xff]
    %vm211 = vcmask 261120
    %v213 = vsel %vm211, %v204, 0
    %v216 = vsel %vm211, %v205, 0
    %218 = vmatpush.msra.mxu0 0.0
    %219 = vmatpush.msra.mxu0 0.0
    %220 = vmatpush.msra.mxu0 0.0
    %221 = vmatpush.msra.mxu0 0.0
    %222 = vmatpush.msra.mxu0 0.0
    %223 = vmatpush.msra.mxu0 0.0
    %224 = vmatpush.msra.mxu0 0.0
    %225 = vmatpush.msra.mxu0 0.0
    %226 = vmatpush.msra.mxu0 0.0
    %227 = vmatpush.msra.mxu0 0.0
    %228 = vmatpush.msra.mxu0 0.0
    %229 = vmatpush.msra.mxu0 0.0
    %230 = vmatpush.msra.mxu0 %v210
    %231 = vmatpush.msra.mxu0 %v209
    %232 = vmatpush.msra.mxu0 %v208
    %233 = vmatpush.msra.mxu0 %v207
    %234 = vmatmul.f32.gmra.mxu0 %v213
    %v235 = vpop.f32.mrf.mxu0
    %v236 = vadd.f32 0.0, %v235
    %237 = vmatmul.f32.gmra.mxu0 %v216
    %v238 = vpop.f32.mrf.mxu0
    %v239 = vadd.f32 0.0, %v238
    %240 = vdwg.mxu0
    %v242 = vsel %vm211, %v192, 0
    %v245 = vsel %vm211, %v193, 0
    %247 = vmatpush.msra.mxu0 0.0
    %248 = vmatpush.msra.mxu0 0.0
    %249 = vmatpush.msra.mxu0 0.0
    %250 = vmatpush.msra.mxu0 0.0
    %251 = vmatpush.msra.mxu0 0.0
    %252 = vmatpush.msra.mxu0 0.0
    %253 = vmatpush.msra.mxu0 0.0
    %254 = vmatpush.msra.mxu0 0.0
    %255 = vmatpush.msra.mxu0 0.0
    %256 = vmatpush.msra.mxu0 0.0
    %257 = vmatpush.msra.mxu0 0.0
    %258 = vmatpush.msra.mxu0 0.0
    %259 = vmatpush.msra.mxu0 %v197
    %260 = vmatpush.msra.mxu0 %v196
    %261 = vmatpush.msra.mxu0 %v195
    %262 = vmatpush.msra.mxu0 %v194
    %263 = vmatmul.f32.gmra.mxu0 %v242
    %v264 = vpop.f32.mrf.mxu0
    %v265 = vadd.f32 %v236, %v264
    %266 = vmatmul.f32.gmra.mxu0 %v245
    %v267 = vpop.f32.mrf.mxu0
    %v268 = vadd.f32 %v239, %v267
    %269 = vdwg.mxu0
    %v270 = vld [vmem:[%s164] sm:$0xff]
    %v271 = vld [vmem:[%s164 + $0x8] sm:$0xff]
    %s272 = scalar_lea.vmem [#allocation9], 32
    %v273 = vld [vmem:[%s272] sm:$0xff]
    %v274 = vld [vmem:[%s272 + $0x8] sm:$0xff]
    %v275 = vld [vmem:[%s272 + $0x10] sm:$0xff]
    %v276 = vld [vmem:[%s272 + $0x18] sm:$0xff]
    %v278 = vsel %vm211, %v270, 0
    %v281 = vsel %vm211, %v271, 0
    %283 = vmatpush.msra.mxu0 0.0
    %284 = vmatpush.msra.mxu0 0.0
    %285 = vmatpush.msra.mxu0 0.0
    %286 = vmatpush.msra.mxu0 0.0
    %287 = vmatpush.msra.mxu0 0.0
    %288 = vmatpush.msra.mxu0 0.0
    %289 = vmatpush.msra.mxu0 0.0
    %290 = vmatpush.msra.mxu0 0.0
    %291 = vmatpush.msra.mxu0 0.0
    %292 = vmatpush.msra.mxu0 0.0
    %293 = vmatpush.msra.mxu0 0.0
    %294 = vmatpush.msra.mxu0 0.0
    %295 = vmatpush.msra.mxu0 %v276
    %296 = vmatpush.msra.mxu0 %v275
    %297 = vmatpush.msra.mxu0 %v274
    %298 = vmatpush.msra.mxu0 %v273
    %299 = vmatmul.f32.gmra.mxu0 %v278
    %v300 = vpop.f32.mrf.mxu0
    %v301 = vadd.f32 0.0, %v300
    %302 = vmatmul.f32.gmra.mxu0 %v281
    %v303 = vpop.f32.mrf.mxu0
    %v304 = vadd.f32 0.0, %v303
    %305 = vdwg.mxu0
    %v307 = vsel %vm211, %v198, 0
    %v310 = vsel %vm211, %v199, 0
    %312 = vmatpush.msra.mxu0 0.0
    %313 = vmatpush.msra.mxu0 0.0
    %314 = vmatpush.msra.mxu0 0.0
    %315 = vmatpush.msra.mxu0 0.0
    %316 = vmatpush.msra.mxu0 0.0
    %317 = vmatpush.msra.mxu0 0.0
    %318 = vmatpush.msra.mxu0 0.0
    %319 = vmatpush.msra.mxu0 0.0
    %320 = vmatpush.msra.mxu0 0.0
    %321 = vmatpush.msra.mxu0 0.0
    %322 = vmatpush.msra.mxu0 0.0
    %323 = vmatpush.msra.mxu0 0.0
    %324 = vmatpush.msra.mxu0 %v203
    %325 = vmatpush.msra.mxu0 %v202
    %326 = vmatpush.msra.mxu0 %v201
    %327 = vmatpush.msra.mxu0 %v200
    %328 = vmatmul.f32.gmra.mxu0 %v307
    %v329 = vpop.f32.mrf.mxu0
    %v330 = vadd.f32 %v301, %v329
    %331 = vmatmul.f32.gmra.mxu0 %v310
    %v332 = vpop.f32.mrf.mxu0
    %v333 = vadd.f32 %v304, %v332
    %334 = vdwg.mxu0
    %v335 = vld [vmem:[%s7] sm:$0x1]
    %v337 = vperm.slane %v335, 0
    %v339 = vadd.f32 %v265, %v337
    %v340 = vadd.f32 %v268, %v337
    %s341 = scalar_lea.vmem %s7, 1
    %v342 = vld [vmem:[%s341] sm:$0x1]
    %v344 = vperm.slane %v342, 0
    %v346 = vadd.f32 %v330, %v344
    %v347 = vadd.f32 %v333, %v344
    %v348 = vld [vmem:[#allocation11] sm:$0xff]
    %v349 = vld [vmem:[#allocation11 + $0x8] sm:$0xff]
    %v350 = vld [vmem:[#allocation11 + $0x10] sm:$0xff]
    %v351 = vld [vmem:[#allocation11 + $0x18] sm:$0xff]
    %s352 = scalar_lea.vmem [#allocation11], 32
    %v353 = vld [vmem:[%s352] sm:$0xff]
    %v354 = vld [vmem:[%s352 + $0x8] sm:$0xff]
    %v355 = vld [vmem:[%s352 + $0x10] sm:$0xff]
    %v356 = vld [vmem:[%s352 + $0x18] sm:$0xff]
    %v357 = vld [vmem:[%s8] sm:$0xff]
    %v358 = vld [vmem:[%s8 + $0x8] sm:$0xff]
    %v359 = vld [vmem:[%s172] sm:$0xff]
    %v360 = vld [vmem:[%s172 + $0x8] sm:$0xff]
    %v361 = vld [vmem:[#allocation2] sm:$0x3]
    %v362 = vld [vmem:[#allocation3] sm:$0x3]
    %v363 = vld [vmem:[#allocation4] sm:$0x3]
    %v364 = vld [vmem:[#allocation5] sm:$0x3]
    %v366 = vsel %vm211, %v361, 0
    %368 = vmatpush.msra.mxu0 0.0
    %369 = vmatpush.msra.mxu0 0.0
    %370 = vmatpush.msra.mxu0 0.0
    %371 = vmatpush.msra.mxu0 0.0
    %372 = vmatpush.msra.mxu0 0.0
    %373 = vmatpush.msra.mxu0 0.0
    %374 = vmatpush.msra.mxu0 0.0
    %375 = vmatpush.msra.mxu0 0.0
    %376 = vmatpush.msra.mxu0 0.0
    %377 = vmatpush.msra.mxu0 0.0
    %378 = vmatpush.msra.mxu0 0.0
    %379 = vmatpush.msra.mxu0 0.0
    %380 = vmatpush.msra.mxu0 %v351
    %381 = vmatpush.msra.mxu0 %v350
    %382 = vmatpush.msra.mxu0 %v349
    %383 = vmatpush.msra.mxu0 %v348
    %384 = vmatmul.f32.gmra.mxu0 %v366
    %v385 = vpop.f32.mrf.mxu0
    %v386 = vadd.f32 0.0, %v385
    %387 = vdwg.mxu0
    %v388 = vadd.f32 %v339, %v386
    %v389 = vxor.u32 %v388, 2147483648
    %v390 = vmul.f32 %v389, 1.442695
    %v391 = vpow.pop %v390
    %v392 = vadd.f32 %v391, 1.0
    %v393 = vrcp.pop %v392
    %v394 = vmul.f32 %v392, %v393
    %v395 = vsub.f32 1.0, %v394
    %v396 = vmul.f32 %v393, %v395
    %v397 = vadd.f32 %v393, %v396
    %vm398 = vweird.f32 %v392
    %vm399 = vweird.f32 %v393
    %vm400 = vmor %vm398, %vm399
    %v401 = vsel %vm400, %v393, %v397
    %v402 = vand.u32 2147483647, %v392
    %vm403 = vcmp.eq.f32.partialorder %v402, 8.507059e+37
    %v404 = vand.u32 %v392, 2147483648
    %v405 = vor.u32 1.1754944e-38, %v404
    %v406 = vsel %vm403, %v405, %v401
    %v407 = vmul.f32 1.0, %v406
    %v408 = vtanh.pop %v388
    %410 = vrot.lane.b32.xlu0 %v362, 32
    %v411 = vpop.permute.xlu0 %410
    %v413 = vmul.f32 %v407, %v411
    %415 = vrot.lane.b32.xlu0 %v408, 32
    %v416 = vpop.permute.xlu0 %415
    %v418 = vmul.f32 %v407, %v416
    %420 = vrot.lane.b32.xlu0 %v418, 32
    %v421 = vpop.permute.xlu0 %420
    %v423 = vadd.f32 %v413, %v421
    %v424 = vtanh.pop %v423
    %426 = vrot.lane.b32.xlu0 %v424, 32
    %v427 = vpop.permute.xlu0 %426
    %v429 = vmul.f32 %v407, %v427
    %430 = vrot.lane.b32.xlu0 %v361, 64
    %v431 = vpop.permute.xlu0 %430
    %v433 = vsub.f32 %v429, %v431
    %435 = vset.pattern.permute.xlu0 0
    %436 = vperm.xlu0 %435, %v357
    %v437 = vpop.permute.xlu0 %436
    %v439 = vmul.f32 %v437, %v433
    %441 = vrot.lane.b32.xlu0 %v439, 64
    %v442 = vpop.permute.xlu0 %441
    %v444 = vadd.f32 %v361, %v442
    %v445 = vsub.f32 %v423, %v411
    %v446 = vmul.f32 %v437, %v445
    %448 = vrot.lane.b32.xlu0 %v446, 96
    %v449 = vpop.permute.xlu0 %448
    %v451 = vadd.f32 %v362, %v449
    %v452 = vmul.f32 %v437, %v429
    %454 = vrot.lane.b32.xlu0 %v452, 64
    %v455 = vpop.permute.xlu0 %454
    %vm457 = vcmask 254976
    %458 = vst.msk [vmem:[#allocation14] sm:$0x3] %vm457, %v455
    %v460 = vsel %vm211, %v363, 0
    %462 = vmatpush.msra.mxu0 0.0
    %463 = vmatpush.msra.mxu0 0.0
    %464 = vmatpush.msra.mxu0 0.0
    %465 = vmatpush.msra.mxu0 0.0
    %466 = vmatpush.msra.mxu0 0.0
    %467 = vmatpush.msra.mxu0 0.0
    %468 = vmatpush.msra.mxu0 0.0
    %469 = vmatpush.msra.mxu0 0.0
    %470 = vmatpush.msra.mxu0 0.0
    %471 = vmatpush.msra.mxu0 0.0
    %472 = vmatpush.msra.mxu0 0.0
    %473 = vmatpush.msra.mxu0 0.0
    %474 = vmatpush.msra.mxu0 %v356
    %475 = vmatpush.msra.mxu0 %v355
    %476 = vmatpush.msra.mxu0 %v354
    %477 = vmatpush.msra.mxu0 %v353
    %478 = vmatmul.f32.gmra.mxu0 %v460
    %v479 = vpop.f32.mrf.mxu0
    %v480 = vadd.f32 0.0, %v479
    %481 = vdwg.mxu0
    %v483 = vrot.slane %v480, 2
    %v485 = vadd.f32 %v347, %v483
    %v486 = vxor.u32 %v485, 2147483648
    %v487 = vmul.f32 %v486, 1.442695
    %v488 = vpow.pop %v487
    %v489 = vadd.f32 %v488, 1.0
    %v490 = vrcp.pop %v489
    %v491 = vmul.f32 %v489, %v490
    %v492 = vsub.f32 1.0, %v491
    %v493 = vmul.f32 %v490, %v492
    %v494 = vadd.f32 %v490, %v493
    %vm495 = vweird.f32 %v489
    %vm496 = vweird.f32 %v490
    %vm497 = vmor %vm495, %vm496
    %v498 = vsel %vm497, %v490, %v494
    %v499 = vand.u32 2147483647, %v489
    %vm500 = vcmp.eq.f32.partialorder %v499, 8.507059e+37
    %v501 = vand.u32 %v489, 2147483648
    %v502 = vor.u32 1.1754944e-38, %v501
    %v503 = vsel %vm500, %v502, %v498
    %v504 = vmul.f32 1.0, %v503
    %v505 = vtanh.pop %v485
    %v507 = vrot.slane %v364, 2
    %508 = vrot.lane.b32.xlu0 %v507, 32
    %v509 = vpop.permute.xlu0 %508
    %v511 = vmul.f32 %v504, %v509
    %513 = vrot.lane.b32.xlu0 %v505, 32
    %v514 = vpop.permute.xlu0 %513
    %v516 = vmul.f32 %v504, %v514
    %518 = vrot.lane.b32.xlu0 %v516, 32
    %v519 = vpop.permute.xlu0 %518
    %v521 = vadd.f32 %v511, %v519
    %v522 = vtanh.pop %v521
    %524 = vrot.lane.b32.xlu0 %v522, 32
    %v525 = vpop.permute.xlu0 %524
    %v527 = vmul.f32 %v504, %v525
    %v528 = vrot.slane %v363, 2
    %529 = vrot.lane.b32.xlu0 %v528, 64
    %v530 = vpop.permute.xlu0 %529
    %v532 = vsub.f32 %v527, %v530
    %534 = vset.pattern.permute.xlu0 0
    %535 = vperm.xlu0 %534, %v360
    %v536 = vpop.permute.xlu0 %535
    %v538 = vmul.f32 %v536, %v532
    %v540 = vrot.slane %v538, 6
    %541 = vrot.lane.b32.xlu0 %v540, 64
    %v542 = vpop.permute.xlu0 %541
    %v544 = vadd.f32 %v363, %v542
    %v545 = vsub.f32 %v521, %v509
    %v546 = vmul.f32 %v536, %v545
    %v548 = vrot.slane %v546, 6
    %549 = vrot.lane.b32.xlu0 %v548, 96
    %v550 = vpop.permute.xlu0 %549
    %v552 = vadd.f32 %v364, %v550
    %v553 = vmul.f32 %v536, %v527
    %555 = vrot.lane.b32.xlu0 %v553, 64
    %v556 = vpop.permute.xlu0 %555
    %vm558 = vcmask 261126
    %559 = vst.msk [vmem:[#allocation15 + $0x8] sm:$0xc0] %vm558, %v556
    %v561 = vsel %vm211, %v444, 0
    %563 = vmatpush.msra.mxu0 0.0
    %564 = vmatpush.msra.mxu0 0.0
    %565 = vmatpush.msra.mxu0 0.0
    %566 = vmatpush.msra.mxu0 0.0
    %567 = vmatpush.msra.mxu0 0.0
    %568 = vmatpush.msra.mxu0 0.0
    %569 = vmatpush.msra.mxu0 0.0
    %570 = vmatpush.msra.mxu0 0.0
    %571 = vmatpush.msra.mxu0 0.0
    %572 = vmatpush.msra.mxu0 0.0
    %573 = vmatpush.msra.mxu0 0.0
    %574 = vmatpush.msra.mxu0 0.0
    %575 = vmatpush.msra.mxu0 %v351
    %576 = vmatpush.msra.mxu0 %v350
    %577 = vmatpush.msra.mxu0 %v349
    %578 = vmatpush.msra.mxu0 %v348
    %579 = vmatmul.f32.gmra.mxu0 %v561
    %v580 = vpop.f32.mrf.mxu0
    %v581 = vadd.f32 0.0, %v580
    %582 = vdwg.mxu0
    %v584 = vrot.slane %v581, 6
    %v586 = vadd.f32 %v339, %v584
    %v587 = vxor.u32 %v586, 2147483648
    %v588 = vmul.f32 %v587, 1.442695
    %v589 = vpow.pop %v588
    %v590 = vadd.f32 %v589, 1.0
    %v591 = vrcp.pop %v590
    %v592 = vmul.f32 %v590, %v591
    %v593 = vsub.f32 1.0, %v592
    %v594 = vmul.f32 %v591, %v593
    %v595 = vadd.f32 %v591, %v594
    %vm596 = vweird.f32 %v590
    %vm597 = vweird.f32 %v591
    %vm598 = vmor %vm596, %vm597
    %v599 = vsel %vm598, %v591, %v595
    %v600 = vand.u32 2147483647, %v590
    %vm601 = vcmp.eq.f32.partialorder %v600, 8.507059e+37
    %v602 = vand.u32 %v590, 2147483648
    %v603 = vor.u32 1.1754944e-38, %v602
    %v604 = vsel %vm601, %v603, %v599
    %v605 = vmul.f32 1.0, %v604
    %v606 = vtanh.pop %v586
    %v608 = vrot.slane %v451, 6
    %609 = vrot.lane.b32.xlu0 %v608, 32
    %v610 = vpop.permute.xlu0 %609
    %v612 = vmul.f32 %v605, %v610
    %614 = vrot.lane.b32.xlu0 %v606, 32
    %v615 = vpop.permute.xlu0 %614
    %v617 = vmul.f32 %v605, %v615
    %619 = vrot.lane.b32.xlu0 %v617, 32
    %v620 = vpop.permute.xlu0 %619
    %v622 = vadd.f32 %v612, %v620
    %v623 = vtanh.pop %v622
    %625 = vrot.lane.b32.xlu0 %v623, 32
    %v626 = vpop.permute.xlu0 %625
    %v628 = vmul.f32 %v605, %v626
    %v629 = vrot.slane %v444, 6
    %630 = vrot.lane.b32.xlu0 %v629, 64
    %v631 = vpop.permute.xlu0 %630
    %v633 = vsub.f32 %v628, %v631
    %v634 = vmul.f32 %v437, %v633
    %v636 = vrot.slane %v634, 2
    %637 = vrot.lane.b32.xlu0 %v636, 64
    %v638 = vpop.permute.xlu0 %637
    %v640 = vadd.f32 %v444, %v638
    %v641 = vsub.f32 %v622, %v610
    %v642 = vmul.f32 %v437, %v641
    %v644 = vrot.slane %v642, 2
    %645 = vrot.lane.b32.xlu0 %v644, 96
    %v646 = vpop.permute.xlu0 %645
    %v648 = vadd.f32 %v451, %v646
    %v649 = vmul.f32 %v437, %v628
    %651 = vrot.lane.b32.xlu0 %v649, 64
    %v652 = vpop.permute.xlu0 %651
    %vm654 = vcmask 257026
    %655 = vst.msk [vmem:[#allocation14] sm:$0xc] %vm654, %v652
    %v657 = vsel %vm211, %v544, 0
    %659 = vmatpush.msra.mxu0 0.0
    %660 = vmatpush.msra.mxu0 0.0
    %661 = vmatpush.msra.mxu0 0.0
    %662 = vmatpush.msra.mxu0 0.0
    %663 = vmatpush.msra.mxu0 0.0
    %664 = vmatpush.msra.mxu0 0.0
    %665 = vmatpush.msra.mxu0 0.0
    %666 = vmatpush.msra.mxu0 0.0
    %667 = vmatpush.msra.mxu0 0.0
    %668 = vmatpush.msra.mxu0 0.0
    %669 = vmatpush.msra.mxu0 0.0
    %670 = vmatpush.msra.mxu0 0.0
    %671 = vmatpush.msra.mxu0 %v356
    %672 = vmatpush.msra.mxu0 %v355
    %673 = vmatpush.msra.mxu0 %v354
    %674 = vmatpush.msra.mxu0 %v353
    %675 = vmatmul.f32.gmra.mxu0 %v657
    %v676 = vpop.f32.mrf.mxu0
    %v677 = vadd.f32 0.0, %v676
    %678 = vdwg.mxu0
    %v680 = vrot.slane %v677, 4
    %v682 = vadd.f32 %v347, %v680
    %v683 = vxor.u32 %v682, 2147483648
    %v684 = vmul.f32 %v683, 1.442695
    %v685 = vpow.pop %v684
    %v686 = vadd.f32 %v685, 1.0
    %v687 = vrcp.pop %v686
    %v688 = vmul.f32 %v686, %v687
    %v689 = vsub.f32 1.0, %v688
    %v690 = vmul.f32 %v687, %v689
    %v691 = vadd.f32 %v687, %v690
    %vm692 = vweird.f32 %v686
    %vm693 = vweird.f32 %v687
    %vm694 = vmor %vm692, %vm693
    %v695 = vsel %vm694, %v687, %v691
    %v696 = vand.u32 2147483647, %v686
    %vm697 = vcmp.eq.f32.partialorder %v696, 8.507059e+37
    %v698 = vand.u32 %v686, 2147483648
    %v699 = vor.u32 1.1754944e-38, %v698
    %v700 = vsel %vm697, %v699, %v695
    %v701 = vmul.f32 1.0, %v700
    %v702 = vtanh.pop %v682
    %v704 = vrot.slane %v552, 4
    %705 = vrot.lane.b32.xlu0 %v704, 32
    %v706 = vpop.permute.xlu0 %705
    %v708 = vmul.f32 %v701, %v706
    %710 = vrot.lane.b32.xlu0 %v702, 32
    %v711 = vpop.permute.xlu0 %710
    %v713 = vmul.f32 %v701, %v711
    %715 = vrot.lane.b32.xlu0 %v713, 32
    %v716 = vpop.permute.xlu0 %715
    %v718 = vadd.f32 %v708, %v716
    %v719 = vtanh.pop %v718
    %721 = vrot.lane.b32.xlu0 %v719, 32
    %v722 = vpop.permute.xlu0 %721
    %v724 = vmul.f32 %v701, %v722
    %v725 = vrot.slane %v544, 4
    %726 = vrot.lane.b32.xlu0 %v725, 64
    %v727 = vpop.permute.xlu0 %726
    %v729 = vsub.f32 %v724, %v727
    %v730 = vmul.f32 %v536, %v729
    %v732 = vrot.slane %v730, 4
    %733 = vrot.lane.b32.xlu0 %v732, 64
    %v734 = vpop.permute.xlu0 %733
    %v736 = vadd.f32 %v544, %v734
    %v737 = vsub.f32 %v718, %v706
    %v738 = vmul.f32 %v536, %v737
    %v740 = vrot.slane %v738, 4
    %741 = vrot.lane.b32.xlu0 %v740, 96
    %v742 = vpop.permute.xlu0 %741
    %v744 = vadd.f32 %v552, %v742
    %v745 = vmul.f32 %v536, %v724
    %747 = vrot.lane.b32.xlu0 %v745, 64
    %v748 = vpop.permute.xlu0 %747
    %vm750 = vcmask 259076
    %751 = vst.msk [vmem:[#allocation15 + $0x8] sm:$0x30] %vm750, %v748
    %v753 = vsel %vm211, %v640, 0
    %755 = vmatpush.msra.mxu0 0.0
    %756 = vmatpush.msra.mxu0 0.0
    %757 = vmatpush.msra.mxu0 0.0
    %758 = vmatpush.msra.mxu0 0.0
    %759 = vmatpush.msra.mxu0 0.0
    %760 = vmatpush.msra.mxu0 0.0
    %761 = vmatpush.msra.mxu0 0.0
    %762 = vmatpush.msra.mxu0 0.0
    %763 = vmatpush.msra.mxu0 0.0
    %764 = vmatpush.msra.mxu0 0.0
    %765 = vmatpush.msra.mxu0 0.0
    %766 = vmatpush.msra.mxu0 0.0
    %767 = vmatpush.msra.mxu0 %v351
    %768 = vmatpush.msra.mxu0 %v350
    %769 = vmatpush.msra.mxu0 %v349
    %770 = vmatpush.msra.mxu0 %v348
    %771 = vmatmul.f32.gmra.mxu0 %v753
    %v772 = vpop.f32.mrf.mxu0
    %v773 = vadd.f32 0.0, %v772
    %774 = vdwg.mxu0
    %v776 = vrot.slane %v773, 4
    %v778 = vadd.f32 %v339, %v776
    %v779 = vxor.u32 %v778, 2147483648
    %v780 = vmul.f32 %v779, 1.442695
    %v781 = vpow.pop %v780
    %v782 = vadd.f32 %v781, 1.0
    %v783 = vrcp.pop %v782
    %v784 = vmul.f32 %v782, %v783
    %v785 = vsub.f32 1.0, %v784
    %v786 = vmul.f32 %v783, %v785
    %v787 = vadd.f32 %v783, %v786
    %vm788 = vweird.f32 %v782
    %vm789 = vweird.f32 %v783
    %vm790 = vmor %vm788, %vm789
    %v791 = vsel %vm790, %v783, %v787
    %v792 = vand.u32 2147483647, %v782
    %vm793 = vcmp.eq.f32.partialorder %v792, 8.507059e+37
    %v794 = vand.u32 %v782, 2147483648
    %v795 = vor.u32 1.1754944e-38, %v794
    %v796 = vsel %vm793, %v795, %v791
    %v797 = vmul.f32 1.0, %v796
    %v798 = vtanh.pop %v778
    %v800 = vrot.slane %v648, 4
    %801 = vrot.lane.b32.xlu0 %v800, 32
    %v802 = vpop.permute.xlu0 %801
    %v804 = vmul.f32 %v797, %v802
    %806 = vrot.lane.b32.xlu0 %v798, 32
    %v807 = vpop.permute.xlu0 %806
    %v809 = vmul.f32 %v797, %v807
    %811 = vrot.lane.b32.xlu0 %v809, 32
    %v812 = vpop.permute.xlu0 %811
    %v814 = vadd.f32 %v804, %v812
    %v815 = vtanh.pop %v814
    %817 = vrot.lane.b32.xlu0 %v815, 32
    %v818 = vpop.permute.xlu0 %817
    %v820 = vmul.f32 %v797, %v818
    %v821 = vrot.slane %v640, 4
    %822 = vrot.lane.b32.xlu0 %v821, 64
    %v823 = vpop.permute.xlu0 %822
    %v825 = vsub.f32 %v820, %v823
    %v826 = vmul.f32 %v437, %v825
    %v828 = vrot.slane %v826, 4
    %829 = vrot.lane.b32.xlu0 %v828, 64
    %v830 = vpop.permute.xlu0 %829
    %v832 = vadd.f32 %v640, %v830
    %v833 = vsub.f32 %v814, %v802
    %v834 = vmul.f32 %v437, %v833
    %v836 = vrot.slane %v834, 4
    %837 = vrot.lane.b32.xlu0 %v836, 96
    %v838 = vpop.permute.xlu0 %837
    %v840 = vadd.f32 %v648, %v838
    %v841 = vmul.f32 %v437, %v820
    %843 = vrot.lane.b32.xlu0 %v841, 64
    %v844 = vpop.permute.xlu0 %843
    %846 = vst.msk [vmem:[#allocation14] sm:$0x30] %vm750, %v844
    %v848 = vsel %vm211, %v736, 0
    %850 = vmatpush.msra.mxu0 0.0
    %851 = vmatpush.msra.mxu0 0.0
    %852 = vmatpush.msra.mxu0 0.0
    %853 = vmatpush.msra.mxu0 0.0
    %854 = vmatpush.msra.mxu0 0.0
    %855 = vmatpush.msra.mxu0 0.0
    %856 = vmatpush.msra.mxu0 0.0
    %857 = vmatpush.msra.mxu0 0.0
    %858 = vmatpush.msra.mxu0 0.0
    %859 = vmatpush.msra.mxu0 0.0
    %860 = vmatpush.msra.mxu0 0.0
    %861 = vmatpush.msra.mxu0 0.0
    %862 = vmatpush.msra.mxu0 %v356
    %863 = vmatpush.msra.mxu0 %v355
    %864 = vmatpush.msra.mxu0 %v354
    %865 = vmatpush.msra.mxu0 %v353
    %866 = vmatmul.f32.gmra.mxu0 %v848
    %v867 = vpop.f32.mrf.mxu0
    %v868 = vadd.f32 0.0, %v867
    %869 = vdwg.mxu0
    %v871 = vrot.slane %v868, 6
    %v873 = vadd.f32 %v347, %v871
    %v874 = vxor.u32 %v873, 2147483648
    %v875 = vmul.f32 %v874, 1.442695
    %v876 = vpow.pop %v875
    %v877 = vadd.f32 %v876, 1.0
    %v878 = vrcp.pop %v877
    %v879 = vmul.f32 %v877, %v878
    %v880 = vsub.f32 1.0, %v879
    %v881 = vmul.f32 %v878, %v880
    %v882 = vadd.f32 %v878, %v881
    %vm883 = vweird.f32 %v877
    %vm884 = vweird.f32 %v878
    %vm885 = vmor %vm883, %vm884
    %v886 = vsel %vm885, %v878, %v882
    %v887 = vand.u32 2147483647, %v877
    %vm888 = vcmp.eq.f32.partialorder %v887, 8.507059e+37
    %v889 = vand.u32 %v877, 2147483648
    %v890 = vor.u32 1.1754944e-38, %v889
    %v891 = vsel %vm888, %v890, %v886
    %v892 = vmul.f32 1.0, %v891
    %v893 = vtanh.pop %v873
    %v895 = vrot.slane %v744, 6
    %896 = vrot.lane.b32.xlu0 %v895, 32
    %v897 = vpop.permute.xlu0 %896
    %v899 = vmul.f32 %v892, %v897
    %901 = vrot.lane.b32.xlu0 %v893, 32
    %v902 = vpop.permute.xlu0 %901
    %v904 = vmul.f32 %v892, %v902
    %906 = vrot.lane.b32.xlu0 %v904, 32
    %v907 = vpop.permute.xlu0 %906
    %v909 = vadd.f32 %v899, %v907
    %v910 = vtanh.pop %v909
    %912 = vrot.lane.b32.xlu0 %v910, 32
    %v913 = vpop.permute.xlu0 %912
    %v915 = vmul.f32 %v892, %v913
    %v916 = vrot.slane %v736, 6
    %917 = vrot.lane.b32.xlu0 %v916, 64
    %v918 = vpop.permute.xlu0 %917
    %v920 = vsub.f32 %v915, %v918
    %v921 = vmul.f32 %v536, %v920
    %v923 = vrot.slane %v921, 2
    %924 = vrot.lane.b32.xlu0 %v923, 64
    %v925 = vpop.permute.xlu0 %924
    %v927 = vadd.f32 %v736, %v925
    %v928 = vsub.f32 %v909, %v897
    %v929 = vmul.f32 %v536, %v928
    %v931 = vrot.slane %v929, 2
    %932 = vrot.lane.b32.xlu0 %v931, 96
    %v933 = vpop.permute.xlu0 %932
    %v935 = vadd.f32 %v744, %v933
    %v936 = vmul.f32 %v536, %v915
    %938 = vrot.lane.b32.xlu0 %v936, 64
    %v939 = vpop.permute.xlu0 %938
    %941 = vst.msk [vmem:[#allocation15 + $0x8] sm:$0xc] %vm654, %v939
    %v943 = vsel %vm211, %v832, 0
    %945 = vmatpush.msra.mxu0 0.0
    %946 = vmatpush.msra.mxu0 0.0
    %947 = vmatpush.msra.mxu0 0.0
    %948 = vmatpush.msra.mxu0 0.0
    %949 = vmatpush.msra.mxu0 0.0
    %950 = vmatpush.msra.mxu0 0.0
    %951 = vmatpush.msra.mxu0 0.0
    %952 = vmatpush.msra.mxu0 0.0
    %953 = vmatpush.msra.mxu0 0.0
    %954 = vmatpush.msra.mxu0 0.0
    %955 = vmatpush.msra.mxu0 0.0
    %956 = vmatpush.msra.mxu0 0.0
    %957 = vmatpush.msra.mxu0 %v351
    %958 = vmatpush.msra.mxu0 %v350
    %959 = vmatpush.msra.mxu0 %v349
    %960 = vmatpush.msra.mxu0 %v348
    %961 = vmatmul.f32.gmra.mxu0 %v943
    %v962 = vpop.f32.mrf.mxu0
    %v963 = vadd.f32 0.0, %v962
    %964 = vdwg.mxu0
    %v966 = vrot.slane %v963, 2
    %v968 = vadd.f32 %v339, %v966
    %v969 = vxor.u32 %v968, 2147483648
    %v970 = vmul.f32 %v969, 1.442695
    %v971 = vpow.pop %v970
    %v972 = vadd.f32 %v971, 1.0
    %v973 = vrcp.pop %v972
    %v974 = vmul.f32 %v972, %v973
    %v975 = vsub.f32 1.0, %v974
    %v976 = vmul.f32 %v973, %v975
    %v977 = vadd.f32 %v973, %v976
    %vm978 = vweird.f32 %v972
    %vm979 = vweird.f32 %v973
    %vm980 = vmor %vm978, %vm979
    %v981 = vsel %vm980, %v973, %v977
    %v982 = vand.u32 2147483647, %v972
    %vm983 = vcmp.eq.f32.partialorder %v982, 8.507059e+37
    %v984 = vand.u32 %v972, 2147483648
    %v985 = vor.u32 1.1754944e-38, %v984
    %v986 = vsel %vm983, %v985, %v981
    %v987 = vmul.f32 1.0, %v986
    %v988 = vtanh.pop %v968
    %v990 = vrot.slane %v840, 2
    %991 = vrot.lane.b32.xlu0 %v990, 32
    %v992 = vpop.permute.xlu0 %991
    %v994 = vmul.f32 %v987, %v992
    %996 = vrot.lane.b32.xlu0 %v988, 32
    %v997 = vpop.permute.xlu0 %996
    %v999 = vmul.f32 %v987, %v997
    %1001 = vrot.lane.b32.xlu0 %v999, 32
    %v1002 = vpop.permute.xlu0 %1001
    %v1004 = vadd.f32 %v994, %v1002
    %v1005 = vtanh.pop %v1004
    %1007 = vrot.lane.b32.xlu0 %v1005, 32
    %v1008 = vpop.permute.xlu0 %1007
    %v1010 = vmul.f32 %v987, %v1008
    %v1011 = vrot.slane %v832, 2
    %1012 = vrot.lane.b32.xlu0 %v1011, 64
    %v1013 = vpop.permute.xlu0 %1012
    %v1015 = vsub.f32 %v1010, %v1013
    %v1016 = vmul.f32 %v437, %v1015
    %v1018 = vrot.slane %v1016, 6
    %1019 = vrot.lane.b32.xlu0 %v1018, 64
    %v1020 = vpop.permute.xlu0 %1019
    %v1022 = vadd.f32 %v832, %v1020
    %v1023 = vsub.f32 %v1004, %v992
    %v1024 = vmul.f32 %v437, %v1023
    %v1026 = vrot.slane %v1024, 6
    %1027 = vrot.lane.b32.xlu0 %v1026, 96
    %v1028 = vpop.permute.xlu0 %1027
    %v1030 = vadd.f32 %v840, %v1028
    %v1031 = vmul.f32 %v437, %v1010
    %1033 = vrot.lane.b32.xlu0 %v1031, 64
    %v1034 = vpop.permute.xlu0 %1033
    %1036 = vst.msk [vmem:[#allocation14] sm:$0xc0] %vm558, %v1034
    %v1038 = vsel %vm211, %v927, 0
    %1040 = vmatpush.msra.mxu0 0.0
    %1041 = vmatpush.msra.mxu0 0.0
    %1042 = vmatpush.msra.mxu0 0.0
    %1043 = vmatpush.msra.mxu0 0.0
    %1044 = vmatpush.msra.mxu0 0.0
    %1045 = vmatpush.msra.mxu0 0.0
    %1046 = vmatpush.msra.mxu0 0.0
    %1047 = vmatpush.msra.mxu0 0.0
    %1048 = vmatpush.msra.mxu0 0.0
    %1049 = vmatpush.msra.mxu0 0.0
    %1050 = vmatpush.msra.mxu0 0.0
    %1051 = vmatpush.msra.mxu0 0.0
    %1052 = vmatpush.msra.mxu0 %v356
    %1053 = vmatpush.msra.mxu0 %v355
    %1054 = vmatpush.msra.mxu0 %v354
    %1055 = vmatpush.msra.mxu0 %v353
    %1056 = vmatmul.f32.gmra.mxu0 %v1038
    %v1057 = vpop.f32.mrf.mxu0
    %v1058 = vadd.f32 0.0, %v1057
    %1059 = vdwg.mxu0
    %v1060 = vadd.f32 %v347, %v1058
    %v1061 = vxor.u32 %v1060, 2147483648
    %v1062 = vmul.f32 %v1061, 1.442695
    %v1063 = vpow.pop %v1062
    %v1064 = vadd.f32 %v1063, 1.0
    %v1065 = vrcp.pop %v1064
    %v1066 = vmul.f32 %v1064, %v1065
    %v1067 = vsub.f32 1.0, %v1066
    %v1068 = vmul.f32 %v1065, %v1067
    %v1069 = vadd.f32 %v1065, %v1068
    %vm1070 = vweird.f32 %v1064
    %vm1071 = vweird.f32 %v1065
    %vm1072 = vmor %vm1070, %vm1071
    %v1073 = vsel %vm1072, %v1065, %v1069
    %v1074 = vand.u32 2147483647, %v1064
    %vm1075 = vcmp.eq.f32.partialorder %v1074, 8.507059e+37
    %v1076 = vand.u32 %v1064, 2147483648
    %v1077 = vor.u32 1.1754944e-38, %v1076
    %v1078 = vsel %vm1075, %v1077, %v1073
    %v1079 = vmul.f32 1.0, %v1078
    %v1080 = vtanh.pop %v1060
    %1082 = vrot.lane.b32.xlu0 %v935, 32
    %v1083 = vpop.permute.xlu0 %1082
    %v1085 = vmul.f32 %v1079, %v1083
    %1087 = vrot.lane.b32.xlu0 %v1080, 32
    %v1088 = vpop.permute.xlu0 %1087
    %v1090 = vmul.f32 %v1079, %v1088
    %1092 = vrot.lane.b32.xlu0 %v1090, 32
    %v1093 = vpop.permute.xlu0 %1092
    %v1095 = vadd.f32 %v1085, %v1093
    %v1096 = vtanh.pop %v1095
    %1098 = vrot.lane.b32.xlu0 %v1096, 32
    %v1099 = vpop.permute.xlu0 %1098
    %v1101 = vmul.f32 %v1079, %v1099
    %1102 = vrot.lane.b32.xlu0 %v927, 64
    %v1103 = vpop.permute.xlu0 %1102
    %v1105 = vsub.f32 %v1101, %v1103
    %v1106 = vmul.f32 %v536, %v1105
    %1108 = vrot.lane.b32.xlu0 %v1106, 64
    %v1109 = vpop.permute.xlu0 %1108
    %v1111 = vadd.f32 %v927, %v1109
    %v1112 = vsub.f32 %v1095, %v1083
    %v1113 = vmul.f32 %v536, %v1112
    %1115 = vrot.lane.b32.xlu0 %v1113, 96
    %v1116 = vpop.permute.xlu0 %1115
    %v1118 = vadd.f32 %v935, %v1116
    %v1119 = vmul.f32 %v536, %v1101
    %1121 = vrot.lane.b32.xlu0 %v1119, 64
    %v1122 = vpop.permute.xlu0 %1121
    %1124 = vst.msk [vmem:[#allocation15 + $0x8] sm:$0x3] %vm457, %v1122
    %v1126 = vsel %vm211, %v1022, 0
    %1128 = vmatpush.msra.mxu0 0.0
    %1129 = vmatpush.msra.mxu0 0.0
    %1130 = vmatpush.msra.mxu0 0.0
    %1131 = vmatpush.msra.mxu0 0.0
    %1132 = vmatpush.msra.mxu0 0.0
    %1133 = vmatpush.msra.mxu0 0.0
    %1134 = vmatpush.msra.mxu0 0.0
    %1135 = vmatpush.msra.mxu0 0.0
    %1136 = vmatpush.msra.mxu0 0.0
    %1137 = vmatpush.msra.mxu0 0.0
    %1138 = vmatpush.msra.mxu0 0.0
    %1139 = vmatpush.msra.mxu0 0.0
    %1140 = vmatpush.msra.mxu0 %v351
    %1141 = vmatpush.msra.mxu0 %v350
    %1142 = vmatpush.msra.mxu0 %v349
    %1143 = vmatpush.msra.mxu0 %v348
    %1144 = vmatmul.f32.gmra.mxu0 %v1126
    %v1145 = vpop.f32.mrf.mxu0
    %v1146 = vadd.f32 0.0, %v1145
    %1147 = vdwg.mxu0
    %v1148 = vadd.f32 %v340, %v1146
    %v1149 = vxor.u32 %v1148, 2147483648
    %v1150 = vmul.f32 %v1149, 1.442695
    %v1151 = vpow.pop %v1150
    %v1152 = vadd.f32 %v1151, 1.0
    %v1153 = vrcp.pop %v1152
    %v1154 = vmul.f32 %v1152, %v1153
    %v1155 = vsub.f32 1.0, %v1154
    %v1156 = vmul.f32 %v1153, %v1155
    %v1157 = vadd.f32 %v1153, %v1156
    %vm1158 = vweird.f32 %v1152
    %vm1159 = vweird.f32 %v1153
    %vm1160 = vmor %vm1158, %vm1159
    %v1161 = vsel %vm1160, %v1153, %v1157
    %v1162 = vand.u32 2147483647, %v1152
    %vm1163 = vcmp.eq.f32.partialorder %v1162, 8.507059e+37
    %v1164 = vand.u32 %v1152, 2147483648
    %v1165 = vor.u32 1.1754944e-38, %v1164
    %v1166 = vsel %vm1163, %v1165, %v1161
    %v1167 = vmul.f32 1.0, %v1166
    %v1168 = vtanh.pop %v1148
    %1170 = vrot.lane.b32.xlu0 %v1030, 32
    %v1171 = vpop.permute.xlu0 %1170
    %v1173 = vmul.f32 %v1167, %v1171
    %1175 = vrot.lane.b32.xlu0 %v1168, 32
    %v1176 = vpop.permute.xlu0 %1175
    %v1178 = vmul.f32 %v1167, %v1176
    %1180 = vrot.lane.b32.xlu0 %v1178, 32
    %v1181 = vpop.permute.xlu0 %1180
    %v1183 = vadd.f32 %v1173, %v1181
    %v1184 = vtanh.pop %v1183
    %1186 = vrot.lane.b32.xlu0 %v1184, 32
    %v1187 = vpop.permute.xlu0 %1186
    %v1189 = vmul.f32 %v1167, %v1187
    %1190 = vrot.lane.b32.xlu0 %v1022, 64
    %v1191 = vpop.permute.xlu0 %1190
    %v1193 = vsub.f32 %v1189, %v1191
    %1195 = vset.pattern.permute.xlu0 0
    %1196 = vperm.xlu0 %1195, %v358
    %v1197 = vpop.permute.xlu0 %1196
    %v1199 = vmul.f32 %v1197, %v1193
    %1201 = vrot.lane.b32.xlu0 %v1199, 64
    %v1202 = vpop.permute.xlu0 %1201
    %v1204 = vadd.f32 %v1022, %v1202
    %v1205 = vsub.f32 %v1183, %v1171
    %v1206 = vmul.f32 %v1197, %v1205
    %1208 = vrot.lane.b32.xlu0 %v1206, 96
    %v1209 = vpop.permute.xlu0 %1208
    %v1211 = vadd.f32 %v1030, %v1209
    %v1212 = vmul.f32 %v1197, %v1189
    %1214 = vrot.lane.b32.xlu0 %v1212, 64
    %v1215 = vpop.permute.xlu0 %1214
    %1217 = vst.msk [vmem:[#allocation14 + $0x8] sm:$0x3] %vm457, %v1215
    %v1219 = vsel %vm211, %v1111, 0
    %1221 = vmatpush.msra.mxu0 0.0
    %1222 = vmatpush.msra.mxu0 0.0
    %1223 = vmatpush.msra.mxu0 0.0
    %1224 = vmatpush.msra.mxu0 0.0
    %1225 = vmatpush.msra.mxu0 0.0
    %1226 = vmatpush.msra.mxu0 0.0
    %1227 = vmatpush.msra.mxu0 0.0
    %1228 = vmatpush.msra.mxu0 0.0
    %1229 = vmatpush.msra.mxu0 0.0
    %1230 = vmatpush.msra.mxu0 0.0
    %1231 = vmatpush.msra.mxu0 0.0
    %1232 = vmatpush.msra.mxu0 0.0
    %1233 = vmatpush.msra.mxu0 %v356
    %1234 = vmatpush.msra.mxu0 %v355
    %1235 = vmatpush.msra.mxu0 %v354
    %1236 = vmatpush.msra.mxu0 %v353
    %1237 = vmatmul.f32.gmra.mxu0 %v1219
    %v1238 = vpop.f32.mrf.mxu0
    %v1239 = vadd.f32 0.0, %v1238
    %1240 = vdwg.mxu0
    %v1242 = vrot.slane %v1239, 2
    %v1244 = vadd.f32 %v346, %v1242
    %v1245 = vxor.u32 %v1244, 2147483648
    %v1246 = vmul.f32 %v1245, 1.442695
    %v1247 = vpow.pop %v1246
    %v1248 = vadd.f32 %v1247, 1.0
    %v1249 = vrcp.pop %v1248
    %v1250 = vmul.f32 %v1248, %v1249
    %v1251 = vsub.f32 1.0, %v1250
    %v1252 = vmul.f32 %v1249, %v1251
    %v1253 = vadd.f32 %v1249, %v1252
    %vm1254 = vweird.f32 %v1248
    %vm1255 = vweird.f32 %v1249
    %vm1256 = vmor %vm1254, %vm1255
    %v1257 = vsel %vm1256, %v1249, %v1253
    %v1258 = vand.u32 2147483647, %v1248
    %vm1259 = vcmp.eq.f32.partialorder %v1258, 8.507059e+37
    %v1260 = vand.u32 %v1248, 2147483648
    %v1261 = vor.u32 1.1754944e-38, %v1260
    %v1262 = vsel %vm1259, %v1261, %v1257
    %v1263 = vmul.f32 1.0, %v1262
    %v1264 = vtanh.pop %v1244
    %v1266 = vrot.slane %v1118, 2
    %1267 = vrot.lane.b32.xlu0 %v1266, 32
    %v1268 = vpop.permute.xlu0 %1267
    %v1270 = vmul.f32 %v1263, %v1268
    %1272 = vrot.lane.b32.xlu0 %v1264, 32
    %v1273 = vpop.permute.xlu0 %1272
    %v1275 = vmul.f32 %v1263, %v1273
    %1277 = vrot.lane.b32.xlu0 %v1275, 32
    %v1278 = vpop.permute.xlu0 %1277
    %v1280 = vadd.f32 %v1270, %v1278
    %v1281 = vtanh.pop %v1280
    %1283 = vrot.lane.b32.xlu0 %v1281, 32
    %v1284 = vpop.permute.xlu0 %1283
    %v1286 = vmul.f32 %v1263, %v1284
    %v1287 = vrot.slane %v1111, 2
    %1288 = vrot.lane.b32.xlu0 %v1287, 64
    %v1289 = vpop.permute.xlu0 %1288
    %v1291 = vsub.f32 %v1286, %v1289
    %1293 = vset.pattern.permute.xlu0 0
    %1294 = vperm.xlu0 %1293, %v359
    %v1295 = vpop.permute.xlu0 %1294
    %v1297 = vmul.f32 %v1295, %v1291
    %v1299 = vrot.slane %v1297, 6
    %1300 = vrot.lane.b32.xlu0 %v1299, 64
    %v1301 = vpop.permute.xlu0 %1300
    %v1303 = vadd.f32 %v1111, %v1301
    %v1304 = vsub.f32 %v1280, %v1268
    %v1305 = vmul.f32 %v1295, %v1304
    %v1307 = vrot.slane %v1305, 6
    %1308 = vrot.lane.b32.xlu0 %v1307, 96
    %v1309 = vpop.permute.xlu0 %1308
    %v1311 = vadd.f32 %v1118, %v1309
    %v1312 = vmul.f32 %v1295, %v1286
    %1314 = vrot.lane.b32.xlu0 %v1312, 64
    %v1315 = vpop.permute.xlu0 %1314
    %1317 = vst.msk [vmem:[#allocation15] sm:$0xc0] %vm558, %v1315
    %v1319 = vsel %vm211, %v1204, 0
    %1321 = vmatpush.msra.mxu0 0.0
    %1322 = vmatpush.msra.mxu0 0.0
    %1323 = vmatpush.msra.mxu0 0.0
    %1324 = vmatpush.msra.mxu0 0.0
    %1325 = vmatpush.msra.mxu0 0.0
    %1326 = vmatpush.msra.mxu0 0.0
    %1327 = vmatpush.msra.mxu0 0.0
    %1328 = vmatpush.msra.mxu0 0.0
    %1329 = vmatpush.msra.mxu0 0.0
    %1330 = vmatpush.msra.mxu0 0.0
    %1331 = vmatpush.msra.mxu0 0.0
    %1332 = vmatpush.msra.mxu0 0.0
    %1333 = vmatpush.msra.mxu0 %v351
    %1334 = vmatpush.msra.mxu0 %v350
    %1335 = vmatpush.msra.mxu0 %v349
    %1336 = vmatpush.msra.mxu0 %v348
    %1337 = vmatmul.f32.gmra.mxu0 %v1319
    %v1338 = vpop.f32.mrf.mxu0
    %v1339 = vadd.f32 0.0, %v1338
    %1340 = vdwg.mxu0
    %v1342 = vrot.slane %v1339, 6
    %v1344 = vadd.f32 %v340, %v1342
    %v1345 = vxor.u32 %v1344, 2147483648
    %v1346 = vmul.f32 %v1345, 1.442695
    %v1347 = vpow.pop %v1346
    %v1348 = vadd.f32 %v1347, 1.0
    %v1349 = vrcp.pop %v1348
    %v1350 = vmul.f32 %v1348, %v1349
    %v1351 = vsub.f32 1.0, %v1350
    %v1352 = vmul.f32 %v1349, %v1351
    %v1353 = vadd.f32 %v1349, %v1352
    %vm1354 = vweird.f32 %v1348
    %vm1355 = vweird.f32 %v1349
    %vm1356 = vmor %vm1354, %vm1355
    %v1357 = vsel %vm1356, %v1349, %v1353
    %v1358 = vand.u32 2147483647, %v1348
    %vm1359 = vcmp.eq.f32.partialorder %v1358, 8.507059e+37
    %v1360 = vand.u32 %v1348, 2147483648
    %v1361 = vor.u32 1.1754944e-38, %v1360
    %v1362 = vsel %vm1359, %v1361, %v1357
    %v1363 = vmul.f32 1.0, %v1362
    %v1364 = vtanh.pop %v1344
    %v1366 = vrot.slane %v1211, 6
    %1367 = vrot.lane.b32.xlu0 %v1366, 32
    %v1368 = vpop.permute.xlu0 %1367
    %v1370 = vmul.f32 %v1363, %v1368
    %1372 = vrot.lane.b32.xlu0 %v1364, 32
    %v1373 = vpop.permute.xlu0 %1372
    %v1375 = vmul.f32 %v1363, %v1373
    %1377 = vrot.lane.b32.xlu0 %v1375, 32
    %v1378 = vpop.permute.xlu0 %1377
    %v1380 = vadd.f32 %v1370, %v1378
    %v1381 = vtanh.pop %v1380
    %1383 = vrot.lane.b32.xlu0 %v1381, 32
    %v1384 = vpop.permute.xlu0 %1383
    %v1386 = vmul.f32 %v1363, %v1384
    %v1387 = vrot.slane %v1204, 6
    %1388 = vrot.lane.b32.xlu0 %v1387, 64
    %v1389 = vpop.permute.xlu0 %1388
    %v1391 = vsub.f32 %v1386, %v1389
    %v1392 = vmul.f32 %v1197, %v1391
    %v1394 = vrot.slane %v1392, 2
    %1395 = vrot.lane.b32.xlu0 %v1394, 64
    %v1396 = vpop.permute.xlu0 %1395
    %v1398 = vadd.f32 %v1204, %v1396
    %v1399 = vsub.f32 %v1380, %v1368
    %v1400 = vmul.f32 %v1197, %v1399
    %v1402 = vrot.slane %v1400, 2
    %1403 = vrot.lane.b32.xlu0 %v1402, 96
    %v1404 = vpop.permute.xlu0 %1403
    %v1406 = vadd.f32 %v1211, %v1404
    %v1407 = vmul.f32 %v1197, %v1386
    %1409 = vrot.lane.b32.xlu0 %v1407, 64
    %v1410 = vpop.permute.xlu0 %1409
    %1412 = vst.msk [vmem:[#allocation14 + $0x8] sm:$0xc] %vm654, %v1410
    %v1414 = vsel %vm211, %v1303, 0
    %1416 = vmatpush.msra.mxu0 0.0
    %1417 = vmatpush.msra.mxu0 0.0
    %1418 = vmatpush.msra.mxu0 0.0
    %1419 = vmatpush.msra.mxu0 0.0
    %1420 = vmatpush.msra.mxu0 0.0
    %1421 = vmatpush.msra.mxu0 0.0
    %1422 = vmatpush.msra.mxu0 0.0
    %1423 = vmatpush.msra.mxu0 0.0
    %1424 = vmatpush.msra.mxu0 0.0
    %1425 = vmatpush.msra.mxu0 0.0
    %1426 = vmatpush.msra.mxu0 0.0
    %1427 = vmatpush.msra.mxu0 0.0
    %1428 = vmatpush.msra.mxu0 %v356
    %1429 = vmatpush.msra.mxu0 %v355
    %1430 = vmatpush.msra.mxu0 %v354
    %1431 = vmatpush.msra.mxu0 %v353
    %1432 = vmatmul.f32.gmra.mxu0 %v1414
    %v1433 = vpop.f32.mrf.mxu0
    %v1434 = vadd.f32 0.0, %v1433
    %1435 = vdwg.mxu0
    %v1437 = vrot.slane %v1434, 4
    %v1439 = vadd.f32 %v346, %v1437
    %v1440 = vxor.u32 %v1439, 2147483648
    %v1441 = vmul.f32 %v1440, 1.442695
    %v1442 = vpow.pop %v1441
    %v1443 = vadd.f32 %v1442, 1.0
    %v1444 = vrcp.pop %v1443
    %v1445 = vmul.f32 %v1443, %v1444
    %v1446 = vsub.f32 1.0, %v1445
    %v1447 = vmul.f32 %v1444, %v1446
    %v1448 = vadd.f32 %v1444, %v1447
    %vm1449 = vweird.f32 %v1443
    %vm1450 = vweird.f32 %v1444
    %vm1451 = vmor %vm1449, %vm1450
    %v1452 = vsel %vm1451, %v1444, %v1448
    %v1453 = vand.u32 2147483647, %v1443
    %vm1454 = vcmp.eq.f32.partialorder %v1453, 8.507059e+37
    %v1455 = vand.u32 %v1443, 2147483648
    %v1456 = vor.u32 1.1754944e-38, %v1455
    %v1457 = vsel %vm1454, %v1456, %v1452
    %v1458 = vmul.f32 1.0, %v1457
    %v1459 = vtanh.pop %v1439
    %v1461 = vrot.slane %v1311, 4
    %1462 = vrot.lane.b32.xlu0 %v1461, 32
    %v1463 = vpop.permute.xlu0 %1462
    %v1465 = vmul.f32 %v1458, %v1463
    %1467 = vrot.lane.b32.xlu0 %v1459, 32
    %v1468 = vpop.permute.xlu0 %1467
    %v1470 = vmul.f32 %v1458, %v1468
    %1472 = vrot.lane.b32.xlu0 %v1470, 32
    %v1473 = vpop.permute.xlu0 %1472
    %v1475 = vadd.f32 %v1465, %v1473
    %v1476 = vtanh.pop %v1475
    %1478 = vrot.lane.b32.xlu0 %v1476, 32
    %v1479 = vpop.permute.xlu0 %1478
    %v1481 = vmul.f32 %v1458, %v1479
    %v1482 = vrot.slane %v1303, 4
    %1483 = vrot.lane.b32.xlu0 %v1482, 64
    %v1484 = vpop.permute.xlu0 %1483
    %v1486 = vsub.f32 %v1481, %v1484
    %v1487 = vmul.f32 %v1295, %v1486
    %v1489 = vrot.slane %v1487, 4
    %1490 = vrot.lane.b32.xlu0 %v1489, 64
    %v1491 = vpop.permute.xlu0 %1490
    %v1493 = vadd.f32 %v1303, %v1491
    %v1494 = vsub.f32 %v1475, %v1463
    %v1495 = vmul.f32 %v1295, %v1494
    %v1497 = vrot.slane %v1495, 4
    %1498 = vrot.lane.b32.xlu0 %v1497, 96
    %v1499 = vpop.permute.xlu0 %1498
    %v1501 = vadd.f32 %v1311, %v1499
    %v1502 = vmul.f32 %v1295, %v1481
    %1504 = vrot.lane.b32.xlu0 %v1502, 64
    %v1505 = vpop.permute.xlu0 %1504
    %1507 = vst.msk [vmem:[#allocation15] sm:$0x30] %vm750, %v1505
    %v1509 = vsel %vm211, %v1398, 0
    %1511 = vmatpush.msra.mxu0 0.0
    %1512 = vmatpush.msra.mxu0 0.0
    %1513 = vmatpush.msra.mxu0 0.0
    %1514 = vmatpush.msra.mxu0 0.0
    %1515 = vmatpush.msra.mxu0 0.0
    %1516 = vmatpush.msra.mxu0 0.0
    %1517 = vmatpush.msra.mxu0 0.0
    %1518 = vmatpush.msra.mxu0 0.0
    %1519 = vmatpush.msra.mxu0 0.0
    %1520 = vmatpush.msra.mxu0 0.0
    %1521 = vmatpush.msra.mxu0 0.0
    %1522 = vmatpush.msra.mxu0 0.0
    %1523 = vmatpush.msra.mxu0 %v351
    %1524 = vmatpush.msra.mxu0 %v350
    %1525 = vmatpush.msra.mxu0 %v349
    %1526 = vmatpush.msra.mxu0 %v348
    %1527 = vmatmul.f32.gmra.mxu0 %v1509
    %v1528 = vpop.f32.mrf.mxu0
    %v1529 = vadd.f32 0.0, %v1528
    %1530 = vdwg.mxu0
    %v1532 = vrot.slane %v1529, 4
    %v1534 = vadd.f32 %v340, %v1532
    %v1535 = vxor.u32 %v1534, 2147483648
    %v1536 = vmul.f32 %v1535, 1.442695
    %v1537 = vpow.pop %v1536
    %v1538 = vadd.f32 %v1537, 1.0
    %v1539 = vrcp.pop %v1538
    %v1540 = vmul.f32 %v1538, %v1539
    %v1541 = vsub.f32 1.0, %v1540
    %v1542 = vmul.f32 %v1539, %v1541
    %v1543 = vadd.f32 %v1539, %v1542
    %vm1544 = vweird.f32 %v1538
    %vm1545 = vweird.f32 %v1539
    %vm1546 = vmor %vm1544, %vm1545
    %v1547 = vsel %vm1546, %v1539, %v1543
    %v1548 = vand.u32 2147483647, %v1538
    %vm1549 = vcmp.eq.f32.partialorder %v1548, 8.507059e+37
    %v1550 = vand.u32 %v1538, 2147483648
    %v1551 = vor.u32 1.1754944e-38, %v1550
    %v1552 = vsel %vm1549, %v1551, %v1547
    %v1553 = vmul.f32 1.0, %v1552
    %v1554 = vtanh.pop %v1534
    %v1556 = vrot.slane %v1406, 4
    %1557 = vrot.lane.b32.xlu0 %v1556, 32
    %v1558 = vpop.permute.xlu0 %1557
    %v1560 = vmul.f32 %v1553, %v1558
    %1562 = vrot.lane.b32.xlu0 %v1554, 32
    %v1563 = vpop.permute.xlu0 %1562
    %v1565 = vmul.f32 %v1553, %v1563
    %1567 = vrot.lane.b32.xlu0 %v1565, 32
    %v1568 = vpop.permute.xlu0 %1567
    %v1570 = vadd.f32 %v1560, %v1568
    %v1571 = vtanh.pop %v1570
    %1573 = vrot.lane.b32.xlu0 %v1571, 32
    %v1574 = vpop.permute.xlu0 %1573
    %v1576 = vmul.f32 %v1553, %v1574
    %v1577 = vrot.slane %v1398, 4
    %1578 = vrot.lane.b32.xlu0 %v1577, 64
    %v1579 = vpop.permute.xlu0 %1578
    %v1581 = vsub.f32 %v1576, %v1579
    %v1582 = vmul.f32 %v1197, %v1581
    %v1584 = vrot.slane %v1582, 4
    %1585 = vrot.lane.b32.xlu0 %v1584, 64
    %v1586 = vpop.permute.xlu0 %1585
    %v1588 = vadd.f32 %v1398, %v1586
    %v1589 = vsub.f32 %v1570, %v1558
    %v1590 = vmul.f32 %v1197, %v1589
    %v1592 = vrot.slane %v1590, 4
    %1593 = vrot.lane.b32.xlu0 %v1592, 96
    %v1594 = vpop.permute.xlu0 %1593
    %v1596 = vadd.f32 %v1406, %v1594
    %v1597 = vmul.f32 %v1197, %v1576
    %1599 = vrot.lane.b32.xlu0 %v1597, 64
    %v1600 = vpop.permute.xlu0 %1599
    %1602 = vst.msk [vmem:[#allocation14 + $0x8] sm:$0x30] %vm750, %v1600
    %v1604 = vsel %vm211, %v1493, 0
    %1606 = vmatpush.msra.mxu0 0.0
    %1607 = vmatpush.msra.mxu0 0.0
    %1608 = vmatpush.msra.mxu0 0.0
    %1609 = vmatpush.msra.mxu0 0.0
    %1610 = vmatpush.msra.mxu0 0.0
    %1611 = vmatpush.msra.mxu0 0.0
    %1612 = vmatpush.msra.mxu0 0.0
    %1613 = vmatpush.msra.mxu0 0.0
    %1614 = vmatpush.msra.mxu0 0.0
    %1615 = vmatpush.msra.mxu0 0.0
    %1616 = vmatpush.msra.mxu0 0.0
    %1617 = vmatpush.msra.mxu0 0.0
    %1618 = vmatpush.msra.mxu0 %v356
    %1619 = vmatpush.msra.mxu0 %v355
    %1620 = vmatpush.msra.mxu0 %v354
    %1621 = vmatpush.msra.mxu0 %v353
    %1622 = vmatmul.f32.gmra.mxu0 %v1604
    %v1623 = vpop.f32.mrf.mxu0
    %v1624 = vadd.f32 0.0, %v1623
    %1625 = vdwg.mxu0
    %v1627 = vrot.slane %v1624, 6
    %v1629 = vadd.f32 %v346, %v1627
    %v1630 = vxor.u32 %v1629, 2147483648
    %v1631 = vmul.f32 %v1630, 1.442695
    %v1632 = vpow.pop %v1631
    %v1633 = vadd.f32 %v1632, 1.0
    %v1634 = vrcp.pop %v1633
    %v1635 = vmul.f32 %v1633, %v1634
    %v1636 = vsub.f32 1.0, %v1635
    %v1637 = vmul.f32 %v1634, %v1636
    %v1638 = vadd.f32 %v1634, %v1637
    %vm1639 = vweird.f32 %v1633
    %vm1640 = vweird.f32 %v1634
    %vm1641 = vmor %vm1639, %vm1640
    %v1642 = vsel %vm1641, %v1634, %v1638
    %v1643 = vand.u32 2147483647, %v1633
    %vm1644 = vcmp.eq.f32.partialorder %v1643, 8.507059e+37
    %v1645 = vand.u32 %v1633, 2147483648
    %v1646 = vor.u32 1.1754944e-38, %v1645
    %v1647 = vsel %vm1644, %v1646, %v1642
    %v1648 = vmul.f32 1.0, %v1647
    %v1649 = vtanh.pop %v1629
    %v1651 = vrot.slane %v1501, 6
    %1652 = vrot.lane.b32.xlu0 %v1651, 32
    %v1653 = vpop.permute.xlu0 %1652
    %v1655 = vmul.f32 %v1648, %v1653
    %1657 = vrot.lane.b32.xlu0 %v1649, 32
    %v1658 = vpop.permute.xlu0 %1657
    %v1660 = vmul.f32 %v1648, %v1658
    %1662 = vrot.lane.b32.xlu0 %v1660, 32
    %v1663 = vpop.permute.xlu0 %1662
    %v1665 = vadd.f32 %v1655, %v1663
    %v1666 = vtanh.pop %v1665
    %1668 = vrot.lane.b32.xlu0 %v1666, 32
    %v1669 = vpop.permute.xlu0 %1668
    %v1671 = vmul.f32 %v1648, %v1669
    %v1672 = vrot.slane %v1493, 6
    %1673 = vrot.lane.b32.xlu0 %v1672, 64
    %v1674 = vpop.permute.xlu0 %1673
    %v1676 = vsub.f32 %v1671, %v1674
    %v1677 = vmul.f32 %v1295, %v1676
    %v1679 = vrot.slane %v1677, 2
    %1680 = vrot.lane.b32.xlu0 %v1679, 64
    %v1681 = vpop.permute.xlu0 %1680
    %v1683 = vadd.f32 %v1493, %v1681
    %v1684 = vsub.f32 %v1665, %v1653
    %v1685 = vmul.f32 %v1295, %v1684
    %v1687 = vrot.slane %v1685, 2
    %1688 = vrot.lane.b32.xlu0 %v1687, 96
    %v1689 = vpop.permute.xlu0 %1688
    %v1691 = vadd.f32 %v1501, %v1689
    %v1692 = vmul.f32 %v1295, %v1671
    %1694 = vrot.lane.b32.xlu0 %v1692, 64
    %v1695 = vpop.permute.xlu0 %1694
    %1697 = vst.msk [vmem:[#allocation15] sm:$0xc] %vm654, %v1695
    %v1699 = vsel %vm211, %v1588, 0
    %1701 = vmatpush.msra.mxu0 0.0
    %1702 = vmatpush.msra.mxu0 0.0
    %1703 = vmatpush.msra.mxu0 0.0
    %1704 = vmatpush.msra.mxu0 0.0
    %1705 = vmatpush.msra.mxu0 0.0
    %1706 = vmatpush.msra.mxu0 0.0
    %1707 = vmatpush.msra.mxu0 0.0
    %1708 = vmatpush.msra.mxu0 0.0
    %1709 = vmatpush.msra.mxu0 0.0
    %1710 = vmatpush.msra.mxu0 0.0
    %1711 = vmatpush.msra.mxu0 0.0
    %1712 = vmatpush.msra.mxu0 0.0
    %1713 = vmatpush.msra.mxu0 %v351
    %1714 = vmatpush.msra.mxu0 %v350
    %1715 = vmatpush.msra.mxu0 %v349
    %1716 = vmatpush.msra.mxu0 %v348
    %1717 = vmatmul.f32.gmra.mxu0 %v1699
    %v1718 = vpop.f32.mrf.mxu0
    %v1719 = vadd.f32 0.0, %v1718
    %1720 = vdwg.mxu0
    %v1722 = vrot.slane %v1719, 2
    %v1724 = vadd.f32 %v340, %v1722
    %v1725 = vxor.u32 %v1724, 2147483648
    %v1726 = vmul.f32 %v1725, 1.442695
    %v1727 = vpow.pop %v1726
    %v1728 = vadd.f32 %v1727, 1.0
    %v1729 = vrcp.pop %v1728
    %v1730 = vmul.f32 %v1728, %v1729
    %v1731 = vsub.f32 1.0, %v1730
    %v1732 = vmul.f32 %v1729, %v1731
    %v1733 = vadd.f32 %v1729, %v1732
    %vm1734 = vweird.f32 %v1728
    %vm1735 = vweird.f32 %v1729
    %vm1736 = vmor %vm1734, %vm1735
    %v1737 = vsel %vm1736, %v1729, %v1733
    %v1738 = vand.u32 2147483647, %v1728
    %vm1739 = vcmp.eq.f32.partialorder %v1738, 8.507059e+37
    %v1740 = vand.u32 %v1728, 2147483648
    %v1741 = vor.u32 1.1754944e-38, %v1740
    %v1742 = vsel %vm1739, %v1741, %v1737
    %v1743 = vmul.f32 1.0, %v1742
    %v1744 = vtanh.pop %v1724
    %v1746 = vrot.slane %v1596, 2
    %1747 = vrot.lane.b32.xlu0 %v1746, 32
    %v1748 = vpop.permute.xlu0 %1747
    %v1750 = vmul.f32 %v1743, %v1748
    %1752 = vrot.lane.b32.xlu0 %v1744, 32
    %v1753 = vpop.permute.xlu0 %1752
    %v1755 = vmul.f32 %v1743, %v1753
    %1757 = vrot.lane.b32.xlu0 %v1755, 32
    %v1758 = vpop.permute.xlu0 %1757
    %v1760 = vadd.f32 %v1750, %v1758
    %v1761 = vtanh.pop %v1760
    %1763 = vrot.lane.b32.xlu0 %v1761, 32
    %v1764 = vpop.permute.xlu0 %1763
    %v1766 = vmul.f32 %v1743, %v1764
    %v1767 = vrot.slane %v1588, 2
    %1768 = vrot.lane.b32.xlu0 %v1767, 64
    %v1769 = vpop.permute.xlu0 %1768
    %v1771 = vsub.f32 %v1766, %v1769
    %v1772 = vmul.f32 %v1197, %v1771
    %v1774 = vrot.slane %v1772, 6
    %1775 = vrot.lane.b32.xlu0 %v1774, 64
    %v1776 = vpop.permute.xlu0 %1775
    %v1778 = vadd.f32 %v1588, %v1776
    %v1779 = vsub.f32 %v1760, %v1748
    %v1780 = vmul.f32 %v1197, %v1779
    %v1782 = vrot.slane %v1780, 6
    %1783 = vrot.lane.b32.xlu0 %v1782, 96
    %v1784 = vpop.permute.xlu0 %1783
    %v1786 = vadd.f32 %v1596, %v1784
    %v1787 = vmul.f32 %v1197, %v1766
    %1789 = vrot.lane.b32.xlu0 %v1787, 64
    %v1790 = vpop.permute.xlu0 %1789
    %1792 = vst.msk [vmem:[#allocation14 + $0x8] sm:$0xc0] %vm558, %v1790
    %v1794 = vsel %vm211, %v1683, 0
    %1796 = vmatpush.msra.mxu0 0.0
    %1797 = vmatpush.msra.mxu0 0.0
    %1798 = vmatpush.msra.mxu0 0.0
    %1799 = vmatpush.msra.mxu0 0.0
    %1800 = vmatpush.msra.mxu0 0.0
    %1801 = vmatpush.msra.mxu0 0.0
    %1802 = vmatpush.msra.mxu0 0.0
    %1803 = vmatpush.msra.mxu0 0.0
    %1804 = vmatpush.msra.mxu0 0.0
    %1805 = vmatpush.msra.mxu0 0.0
    %1806 = vmatpush.msra.mxu0 0.0
    %1807 = vmatpush.msra.mxu0 0.0
    %1808 = vmatpush.msra.mxu0 %v356
    %1809 = vmatpush.msra.mxu0 %v355
    %1810 = vmatpush.msra.mxu0 %v354
    %1811 = vmatpush.msra.mxu0 %v353
    %1812 = vmatmul.f32.gmra.mxu0 %v1794
    %v1813 = vpop.f32.mrf.mxu0
    %v1814 = vadd.f32 0.0, %v1813
    %1815 = vdwg.mxu0
    %v1816 = vadd.f32 %v346, %v1814
    %v1817 = vxor.u32 %v1816, 2147483648
    %v1818 = vmul.f32 %v1817, 1.442695
    %v1819 = vpow.pop %v1818
    %v1820 = vadd.f32 %v1819, 1.0
    %v1821 = vrcp.pop %v1820
    %v1822 = vmul.f32 %v1820, %v1821
    %v1823 = vsub.f32 1.0, %v1822
    %v1824 = vmul.f32 %v1821, %v1823
    %v1825 = vadd.f32 %v1821, %v1824
    %vm1826 = vweird.f32 %v1820
    %vm1827 = vweird.f32 %v1821
    %vm1828 = vmor %vm1826, %vm1827
    %v1829 = vsel %vm1828, %v1821, %v1825
    %v1830 = vand.u32 2147483647, %v1820
    %vm1831 = vcmp.eq.f32.partialorder %v1830, 8.507059e+37
    %v1832 = vand.u32 %v1820, 2147483648
    %v1833 = vor.u32 1.1754944e-38, %v1832
    %v1834 = vsel %vm1831, %v1833, %v1829
    %v1835 = vmul.f32 1.0, %v1834
    %v1836 = vtanh.pop %v1816
    %1838 = vrot.lane.b32.xlu0 %v1691, 32
    %v1839 = vpop.permute.xlu0 %1838
    %v1841 = vmul.f32 %v1835, %v1839
    %1843 = vrot.lane.b32.xlu0 %v1836, 32
    %v1844 = vpop.permute.xlu0 %1843
    %v1846 = vmul.f32 %v1835, %v1844
    %1848 = vrot.lane.b32.xlu0 %v1846, 32
    %v1849 = vpop.permute.xlu0 %1848
    %v1851 = vadd.f32 %v1841, %v1849
    %v1852 = vtanh.pop %v1851
    %1854 = vrot.lane.b32.xlu0 %v1852, 32
    %v1855 = vpop.permute.xlu0 %1854
    %v1857 = vmul.f32 %v1835, %v1855
    %1858 = vrot.lane.b32.xlu0 %v1683, 64
    %v1859 = vpop.permute.xlu0 %1858
    %v1861 = vsub.f32 %v1857, %v1859
    %v1862 = vmul.f32 %v1295, %v1861
    %1864 = vrot.lane.b32.xlu0 %v1862, 64
    %v1865 = vpop.permute.xlu0 %1864
    %v1867 = vadd.f32 %v1683, %v1865
    %v1868 = vsub.f32 %v1851, %v1839
    %v1869 = vmul.f32 %v1295, %v1868
    %1871 = vrot.lane.b32.xlu0 %v1869, 96
    %v1872 = vpop.permute.xlu0 %1871
    %v1874 = vadd.f32 %v1691, %v1872
    %v1875 = vmul.f32 %v1295, %v1857
    %1877 = vrot.lane.b32.xlu0 %v1875, 64
    %v1878 = vpop.permute.xlu0 %1877
    %1880 = vst.msk [vmem:[#allocation15] sm:$0x3] %vm457, %v1878
    %1881 = vst.msk [vmem:[#allocation2] sm:$0x3] %vm457, %v1778
    %1882 = vst.msk [vmem:[#allocation3] sm:$0x3] %vm457, %v1786
    %1883 = vst.msk [vmem:[#allocation4] sm:$0x3] %vm457, %v1867
    %1884 = vst.msk [vmem:[#allocation5] sm:$0x3] %vm457, %v1874
    %1885 = vst.msk [vmem:[%s14] sm:$0x3] %vm457, %v1778
    %s1886 = scalar_lea.vmem %s14, 2
    %1887 = vst.msk [vmem:[%s1886] sm:$0x3] %vm457, %v1867
    // Predicated region
    $region70: #{bilstm_bert_forward.3} parent=1 // pred_check
      _
    $region71: #{bilstm_bert_forward.3} parent=1 // pred_check_branch
      %1889 = sbr.rel (0) target = $region73
    $region72: #{bilstm_bert_forward.3} parent=1 // pred_region
      %1891 = vsyncadd [#allocation8], 0
      %s1892 = sshll.u32 [#allocation14], 4
      %s1893 = int_to_ptr.vmem [resolvable:$true] %s1892
      %s1894 = sshll.u32 %s12, 4
      %s1895 = int_to_ptr.hbm [resolvable:$true] %s1894
      %1900 = dma.vmem_to_hbm [thread:$0]  %s1893, 256, %s1895, [#allocation8], 128, 128, 8
    $region73: #{bilstm_bert_forward.3} parent=1 // pred_fallthru
      _
    // Predicated region
    $region74: #{bilstm_bert_forward.3} parent=1 // pred_check
      _
    $region75: #{bilstm_bert_forward.3} parent=1 // pred_check_branch
      %1902 = sbr.rel (0) target = $region77
    $region76: #{bilstm_bert_forward.3} parent=1 // pred_region
      %s1903 = ssub.s32 0, 0
      %s1904 = smul.u32 2, %s1903
      %1906 = vsyncadd [#allocation16], 0
      %s1907 = smul.addr %s1904, 8
      %s1908 = scalar_lea.hbm %s13, %s1907
      %s1909 = sshll.u32 [#allocation15], 4
      %s1910 = int_to_ptr.vmem [resolvable:$true] %s1909
      %s1911 = sshll.u32 %s1908, 4
      %s1912 = int_to_ptr.hbm [resolvable:$true] %s1911
      %1917 = dma.vmem_to_hbm [thread:$0]  %s1910, 256, %s1912, [#allocation16], 128, 128, 8
    $region77: #{bilstm_bert_forward.3} parent=1 // pred_fallthru
      _
    // Predicated region
    $region78: #{bilstm_bert_forward.3} parent=1 // pred_check
      _
    $region79: #{bilstm_bert_forward.3} parent=1 // pred_check_branch
      %1919 = sbr.rel (0) target = $region81
    $region80: #{bilstm_bert_forward.3} parent=1 // pred_region
      _
    $region81: #{bilstm_bert_forward.3} parent=1 // pred_fallthru
      _
    // Predicated region
    $region82: #{bilstm_bert_forward.3} parent=1 // pred_check
      _
    $region83: #{bilstm_bert_forward.3} parent=1 // pred_check_branch
      %1921 = sbr.rel (0) target = $region85
    $region84: #{bilstm_bert_forward.3} parent=1 // pred_region
      %1923 = dma.done [#allocation8], 256
    $region85: #{bilstm_bert_forward.3} parent=1 // pred_fallthru
      _
    // Predicated region
    $region86: #{bilstm_bert_forward.3} parent=1 // pred_check
      _
    $region87: #{bilstm_bert_forward.3} parent=1 // pred_check_branch
      %1925 = sbr.rel (0) target = $region89
    $region88: #{bilstm_bert_forward.3} parent=1 // pred_region
      %1927 = dma.done [#allocation16], 256
    $region89: #{bilstm_bert_forward.3} parent=1 // pred_fallthru
      _
    // Predicated region
    $region90: #{bilstm_bert_forward.3} parent=1 // pred_check
      _
    $region91: #{bilstm_bert_forward.3} parent=1 // pred_check_branch
      %1929 = sbr.rel (0) target = $region93
    $region92: #{bilstm_bert_forward.3} parent=1 // pred_region
      _
    $region93: #{bilstm_bert_forward.3} parent=1 // pred_fallthru
      _
    %1930 = vsyncpa [#allocation7], 1
    %1931 = vsyncpa [#allocation10], 1
    %1932 = vsyncpa [#allocation13], 1
    %1933 = vsyncpa [#allocation8], 1
    %1934 = vsyncpa [#allocation16], 1

</llo_original>
